<compile_context>
chip_gen: v5e
topology: v5e:2x2
jax: 0.10.0
libtpu: 0.0.40
codegen_flags: <defaults>
</compile_context>

<pallas_src>
import math
import numpy as np
import jax
import jax.numpy as jnp
from jax.experimental import pallas as pl
from jax.experimental.pallas import tpu as pltpu

D_MODEL = 64
NHEAD = 4
HEAD_DIM = D_MODEL // NHEAD
NUM_LAYERS = 3
DIM_FF = 256
NUM_CLASSES = 8
CLS_HIDDEN = 64
OUT_PAD = 128          # lane-dense padded logits width
LN_EPS = 1e-5


def _layernorm(x, w, b):
    mu = jnp.mean(x, axis=-1, keepdims=True)
    var = jnp.mean((x - mu) ** 2, axis=-1, keepdims=True)   # biased var, like torch LayerNorm
    return (x - mu) * jax.lax.rsqrt(var + LN_EPS) * w + b


def _gelu(x):
    # TODO(synk): torch nn.GELU() defaults to the exact erf form; tanh approximation is used
    # here (erf lowering inside Mosaic is not guaranteed). Max abs deviation ~1e-3.
    c = math.sqrt(2.0 / math.pi)
    return 0.5 * x * (1.0 + jnp.tanh(c * (x + 0.044715 * x * x * x)))


def _positional_encoding(seq_len, d_model):
    pos = np.arange(seq_len, dtype=np.float32)[:, None]
    div = np.exp(np.arange(0, d_model, 2, dtype=np.float32) * (-math.log(10000.0) / d_model))
    pe = np.zeros((seq_len, d_model), dtype=np.float32)
    pe[:, 0::2] = np.sin(pos * div)
    pe[:, 1::2] = np.cos(pos * div)
    return jnp.asarray(pe)


def seismic_transformer_kernel(
    x_ref,                                   # (BB, S)
    emb_w_ref, pe_ref,                       # (1,D), (S,D)  -- pe already includes emb bias
    q_w_ref, q_b_ref, k_w_ref, k_b_ref, v_w_ref, v_b_ref,   # (L,D,D)/(L,1,D) x3
    out_w_ref, out_b_ref,                    # (L,D,D), (L,1,D)
    ff1_w_ref, ff1_b_ref, ff2_w_ref, ff2_b_ref,              # (L,D,F),(L,1,F),(L,F,D),(L,1,D)
    n1_w_ref, n1_b_ref, n2_w_ref, n2_b_ref,  # (L,1,D) x4
    cls_w1_ref, cls_b1_ref, cls_w2_ref, cls_b2_ref,          # (D,64),(1,64),(64,128),(1,128)
    out_ref,                                 # (BB, OUT_PAD)
):
    BB, S = x_ref.shape
    D = D_MODEL
    hd = HEAD_DIM

    # Embedding Linear(1 -> D): per-timestep scalar times the weight row, plus
    # (bias + positional encoding) table (dropout = identity in eval mode).
    x = x_ref[...]                                           # (BB, S)
    h = x[:, :, None] * emb_w_ref[...] + pe_ref[...]         # (BB, S, D)

    h2 = h.reshape(BB * S, D)                                # flat activation slab

    for l in range(NUM_LAYERS):
        # ---- multi-head self-attention (scale already folded into q_w/q_b) ----
        q = jnp.dot(h2, q_w_ref[l], preferred_element_type=jnp.float32) + q_b_ref[l]
        k = jnp.dot(h2, k_w_ref[l], preferred_element_type=jnp.float32) + k_b_ref[l]
        v = jnp.dot(h2, v_w_ref[l], preferred_element_type=jnp.float32) + v_b_ref[l]

        q3 = q.reshape(BB, S, D)
        k3 = k.reshape(BB, S, D)
        v3 = v.reshape(BB, S, D)

        head_outs = []
        for hh in range(NHEAD):
            sl = slice(hh * hd, (hh + 1) * hd)
            q_h = q3[:, :, sl]                               # (BB, S, hd)
            k_h = k3[:, :, sl]
            v_h = v3[:, :, sl]
            sc = jnp.einsum("bqd,bkd->bqk", q_h, k_h,
                            preferred_element_type=jnp.float32)      # (BB, S, S)
            sc = sc - jnp.max(sc, axis=-1, keepdims=True)
            p = jnp.exp(sc)
            p = p * pl.reciprocal(jnp.sum(p, axis=-1, keepdims=True), approx=True)
            head_outs.append(jnp.einsum("bqk,bkd->bqd", p, v_h,
                                        preferred_element_type=jnp.float32))
        o = jnp.concatenate(head_outs, axis=-1).reshape(BB * S, D)
        attn = jnp.dot(o, out_w_ref[l], preferred_element_type=jnp.float32) + out_b_ref[l]

        h2 = _layernorm(h2 + attn, n1_w_ref[l], n1_b_ref[l])

        # ---- feed-forward (GELU) ----
        ff = jnp.dot(h2, ff1_w_ref[l], preferred_element_type=jnp.float32) + ff1_b_ref[l]
        ff = _gelu(ff)
        ff = jnp.dot(ff, ff2_w_ref[l], preferred_element_type=jnp.float32) + ff2_b_ref[l]
        h2 = _layernorm(h2 + ff, n2_w_ref[l], n2_b_ref[l])

    # ---- classifier on last hidden state (dropout = identity in eval) ----
    last = h2.reshape(BB, S, D)[:, S - 1, :]                 # (BB, D)
    c = jnp.dot(last, cls_w1_ref[...], preferred_element_type=jnp.float32) + cls_b1_ref[...]
    c = jnp.maximum(c, 0.0)
    out_ref[...] = (jnp.dot(c, cls_w2_ref[...], preferred_element_type=jnp.float32)
                    + cls_b2_ref[...])                       # (BB, OUT_PAD), cols >=8 are 0


def init_params(key):
    """Random parameters in torch layout (Linear weights are (out, in))."""
    ks = jax.random.split(key, 12)
    s = 0.05
    D, F, L, C = D_MODEL, DIM_FF, NUM_LAYERS, NUM_CLASSES
    return dict(
        emb_w=jax.random.normal(ks[0], (D, 1), jnp.float32) * s,
        emb_b=jax.random.normal(ks[1], (D,), jnp.float32) * s,
        in_w=jax.random.normal(ks[2], (L, 3 * D, D), jnp.float32) * s,   # fused qkv_proj
        in_b=jax.random.normal(ks[3], (L, 3 * D), jnp.float32) * s,
        out_w=jax.random.normal(ks[4], (L, D, D), jnp.float32) * s,
        out_b=jax.random.normal(ks[5], (L, D), jnp.float32) * s,
        ff1_w=jax.random.normal(ks[6], (L, F, D), jnp.float32) * s,
        ff1_b=jax.random.normal(ks[7], (L, F), jnp.float32) * s,
        ff2_w=jax.random.normal(ks[8], (L, D, F), jnp.float32) * s,
        ff2_b=jax.random.normal(ks[9], (L, D), jnp.float32) * s,
        n1_w=jnp.ones((L, D), jnp.float32), n1_b=jnp.zeros((L, D), jnp.float32),
        n2_w=jnp.ones((L, D), jnp.float32), n2_b=jnp.zeros((L, D), jnp.float32),
        cls_w1=jax.random.normal(ks[10], (CLS_HIDDEN, D), jnp.float32) * s,
        cls_b1=jnp.zeros((CLS_HIDDEN,), jnp.float32),
        cls_w2=jax.random.normal(ks[11], (C, CLS_HIDDEN), jnp.float32) * s,
        cls_b2=jnp.zeros((C,), jnp.float32),
    )


def prepare_kernel_weights(params, seq_len):
    """Host-side weight prep: split fused QKV, pre-transpose everything to (in, out),
    fold 1/sqrt(head_dim) into Q, fold embedding bias into the PE table, make every bias
    a lane-dense 2-D row, and pad the final classifier to a 128-lane output."""
    D, C = D_MODEL, NUM_CLASSES
    scale = 1.0 / math.sqrt(HEAD_DIM)
    pe = _positional_encoding(seq_len, D) + params["emb_b"][None, :]   # (S, D), bias folded in

    in_w, in_b = params["in_w"], params["in_b"]
    q_w = jnp.transpose(in_w[:, :D, :], (0, 2, 1)) * scale
    k_w = jnp.transpose(in_w[:, D:2 * D, :], (0, 2, 1))
    v_w = jnp.transpose(in_w[:, 2 * D:, :], (0, 2, 1))
    q_b = (in_b[:, :D] * scale)[:, None, :]
    k_b = in_b[:, D:2 * D][:, None, :]
    v_b = in_b[:, 2 * D:][:, None, :]

    out_w = jnp.transpose(params["out_w"], (0, 2, 1))
    out_b = params["out_b"][:, None, :]
    ff1_w = jnp.transpose(params["ff1_w"], (0, 2, 1))
    ff1_b = params["ff1_b"][:, None, :]
    ff2_w = jnp.transpose(params["ff2_w"], (0, 2, 1))
    ff2_b = params["ff2_b"][:, None, :]
    n1_w = params["n1_w"][:, None, :]
    n1_b = params["n1_b"][:, None, :]
    n2_w = params["n2_w"][:, None, :]
    n2_b = params["n2_b"][:, None, :]

    emb_w = params["emb_w"].T                 # (1, D)
    cls_w1 = params["cls_w1"].T               # (D, 64)
    cls_b1 = params["cls_b1"][None, :]        # (1, 64)
    # Pad classifier head to OUT_PAD lanes (zero columns) -> lane-dense unmasked store.
    cls_w2 = jnp.zeros((CLS_HIDDEN, OUT_PAD), jnp.float32).at[:, :C].set(params["cls_w2"].T)
    cls_b2 = jnp.zeros((1, OUT_PAD), jnp.float32).at[:, :C].set(params["cls_b2"][None, :])

    return [emb_w, pe,
            q_w, q_b, k_w, k_b, v_w, v_b,
            out_w, out_b,
            ff1_w, ff1_b, ff2_w, ff2_b,
            n1_w, n1_b, n2_w, n2_b,
            cls_w1, cls_b1, cls_w2, cls_b2]


def seismic_transformer(x, params, block_batch=None):
    """x: (B, S) or (B, S, 1) float32 -> logits (B, NUM_CLASSES)."""
    if x.ndim == 3:
        x = x[..., 0]
    B, S = x.shape

    if block_batch is None:
        target_rows = 256                     # fill a 256-wide MXU (v6e/v7x); >=128 for v5e
        bb = max(1, target_rows // max(S, 1))
        if B > bb:
            bb = max(8, (bb // 8) * 8)        # keep second-minor dim 8-aligned when tiling
        else:
            bb = B
        block_batch = bb
    BB = block_batch

    num_blocks = pl.cdiv(B, BB)
    Bp = num_blocks * BB
    if Bp != B:
        x = jnp.pad(x, ((0, Bp - B), (0, 0)))  # padded rows are independent; sliced off below

    weights = prepare_kernel_weights(params, S)

    def full_spec(a):
        nd = a.ndim
        return pl.BlockSpec(a.shape, lambda b, _nd=nd: (0,) * _nd)   # grid-constant -> fetched once

    out = pl.pallas_call(
        seismic_transformer_kernel,
        out_shape=jax.ShapeDtypeStruct((Bp, OUT_PAD), jnp.float32),
        grid=(num_blocks,),
        in_specs=[pl.BlockSpec((BB, S), lambda b: (b, 0))]
                 + [full_spec(w) for w in weights],
        out_specs=pl.BlockSpec((BB, OUT_PAD), lambda b: (b, 0)),
        compiler_params=pltpu.CompilerParams(dimension_semantics=("parallel",)),
    )(x, *weights)
    return out[:B, :NUM_CLASSES]


def seismic_transformer_ref(x, params):
    """Pure-JAX reference with torch-module semantics (for validation)."""
    if x.ndim == 3:
        x = x[..., 0]
    B, S = x.shape
    D, hd = D_MODEL, HEAD_DIM
    pe = _positional_encoding(S, D)

    h = x[..., None] * params["emb_w"][:, 0][None, None, :] + params["emb_b"][None, None, :]
    h = h + pe[None]

    def ln(x_, w, b):
        mu = jnp.mean(x_, -1, keepdims=True)
        var = jnp.mean((x_ - mu) ** 2, -1, keepdims=True)
        return (x_ - mu) * jax.lax.rsqrt(var + LN_EPS) * w + b

    for l in range(NUM_LAYERS):
        qkv = jnp.einsum("bsd,ed->bse", h, params["in_w"][l]) + params["in_b"][l][None, None]
        q, k, v = qkv[..., :D], qkv[..., D:2 * D], qkv[..., 2 * D:]
        qh = q.reshape(B, S, NHEAD, hd).transpose(0, 2, 1, 3)
        kh = k.reshape(B, S, NHEAD, hd).transpose(0, 2, 1, 3)
        vh = v.reshape(B, S, NHEAD, hd).transpose(0, 2, 1, 3)
        sc = jnp.einsum("bhqd,bhkd->bhqk", qh, kh) / math.sqrt(hd)
        p = jax.nn.softmax(sc, axis=-1)
        oh = jnp.einsum("bhqk,bhkd->bhqd", p, vh).transpose(0, 2, 1, 3).reshape(B, S, D)
        attn = jnp.einsum("bsd,ed->bse", oh, params["out_w"][l]) + params["out_b"][l][None, None]
        h = ln(h + attn, params["n1_w"][l], params["n1_b"][l])
        ff = _gelu(jnp.einsum("bsd,fd->bsf", h, params["ff1_w"][l]) + params["ff1_b"][l][None, None])
        ff = jnp.einsum("bsf,df->bsd", ff, params["ff2_w"][l]) + params["ff2_b"][l][None, None]
        h = ln(h + ff, params["n2_w"][l], params["n2_b"][l])

    last = h[:, -1, :]
    c = jnp.maximum(last @ params["cls_w1"].T + params["cls_b1"], 0.0)
    return c @ params["cls_w2"].T + params["cls_b2"]


if __name__ == "__main__":
    key = jax.random.PRNGKey(0)
    kp, kx1, kx2 = jax.random.split(key, 3)
    params = init_params(kp)

    # Small sanity shape (single grid step, whole batch in one program).
    x1 = jax.random.normal(kx1, (2, 8), jnp.float32)           # (batch, seq)
    out1 = jax.block_until_ready(seismic_transformer(x1, params))
    ref1 = jax.block_until_ready(seismic_transformer_ref(x1, params))
    assert out1.shape == (2, NUM_CLASSES)
    assert np.allclose(np.asarray(out1), np.asarray(ref1), rtol=2e-3, atol=2e-3)

    # Bigger batch: forces grid=2 programs of 8 sequences each with a padded ragged tail.
    x2 = jax.random.normal(kx2, (12, 16), jnp.float32)
    out2 = jax.block_until_ready(seismic_transformer(x2, params, block_batch=8))
    ref2 = jax.block_until_ready(seismic_transformer_ref(x2, params))
    assert out2.shape == (12, NUM_CLASSES)
    assert np.allclose(np.asarray(out2), np.asarray(ref2), rtol=2e-3, atol=2e-3)

    print("KERNEL_OK")
</pallas_src>

<mosaic_0001>
module attributes {stable_mosaic.version = 11 : i64} {
  func.func @seismic_transformer_kernel(%arg0: i32, %arg1: memref<2x8xf32, #tpu.memory_space<vmem>>, %arg2: memref<1x64xf32, #tpu.memory_space<vmem>>, %arg3: memref<8x64xf32, #tpu.memory_space<vmem>>, %arg4: memref<3x64x64xf32, #tpu.memory_space<vmem>>, %arg5: memref<3x1x64xf32, #tpu.memory_space<vmem>>, %arg6: memref<3x64x64xf32, #tpu.memory_space<vmem>>, %arg7: memref<3x1x64xf32, #tpu.memory_space<vmem>>, %arg8: memref<3x64x64xf32, #tpu.memory_space<vmem>>, %arg9: memref<3x1x64xf32, #tpu.memory_space<vmem>>, %arg10: memref<3x64x64xf32, #tpu.memory_space<vmem>>, %arg11: memref<3x1x64xf32, #tpu.memory_space<vmem>>, %arg12: memref<3x64x256xf32, #tpu.memory_space<vmem>>, %arg13: memref<3x1x256xf32, #tpu.memory_space<vmem>>, %arg14: memref<3x256x64xf32, #tpu.memory_space<vmem>>, %arg15: memref<3x1x64xf32, #tpu.memory_space<vmem>>, %arg16: memref<3x1x64xf32, #tpu.memory_space<vmem>>, %arg17: memref<3x1x64xf32, #tpu.memory_space<vmem>>, %arg18: memref<3x1x64xf32, #tpu.memory_space<vmem>>, %arg19: memref<3x1x64xf32, #tpu.memory_space<vmem>>, %arg20: memref<64x64xf32, #tpu.memory_space<vmem>>, %arg21: memref<1x64xf32, #tpu.memory_space<vmem>>, %arg22: memref<64x128xf32, #tpu.memory_space<vmem>>, %arg23: memref<1x128xf32, #tpu.memory_space<vmem>>, %arg24: memref<2x128xf32, #tpu.memory_space<vmem>>) attributes {dimension_semantics = [#tpu.dimension_semantics<parallel>], iteration_bounds = array<i64: 1>, scalar_prefetch = 0 : i64, scratch_operands = 0 : i64, tpu.core_type = #tpu.core_type<tc>, window_params = [{transform_indices = @transform_0, window_bounds = array<i64: 2, 8>}, {pipeline_mode = #tpu.pipeline_mode<synchronous>, transform_indices = @transform_1, window_bounds = array<i64: 1, 64>}, {pipeline_mode = #tpu.pipeline_mode<synchronous>, transform_indices = @transform_2, window_bounds = array<i64: 8, 64>}, {pipeline_mode = #tpu.pipeline_mode<synchronous>, transform_indices = @transform_3, window_bounds = array<i64: 3, 64, 64>}, {pipeline_mode = #tpu.pipeline_mode<synchronous>, transform_indices = @transform_4, window_bounds = array<i64: 3, 1, 64>}, {pipeline_mode = #tpu.pipeline_mode<synchronous>, transform_indices = @transform_5, window_bounds = array<i64: 3, 64, 64>}, {pipeline_mode = #tpu.pipeline_mode<synchronous>, transform_indices = @transform_6, window_bounds = array<i64: 3, 1, 64>}, {pipeline_mode = #tpu.pipeline_mode<synchronous>, transform_indices = @transform_7, window_bounds = array<i64: 3, 64, 64>}, {pipeline_mode = #tpu.pipeline_mode<synchronous>, transform_indices = @transform_8, window_bounds = array<i64: 3, 1, 64>}, {pipeline_mode = #tpu.pipeline_mode<synchronous>, transform_indices = @transform_9, window_bounds = array<i64: 3, 64, 64>}, {pipeline_mode = #tpu.pipeline_mode<synchronous>, transform_indices = @transform_10, window_bounds = array<i64: 3, 1, 64>}, {pipeline_mode = #tpu.pipeline_mode<synchronous>, transform_indices = @transform_11, window_bounds = array<i64: 3, 64, 256>}, {pipeline_mode = #tpu.pipeline_mode<synchronous>, transform_indices = @transform_12, window_bounds = array<i64: 3, 1, 256>}, {pipeline_mode = #tpu.pipeline_mode<synchronous>, transform_indices = @transform_13, window_bounds = array<i64: 3, 256, 64>}, {pipeline_mode = #tpu.pipeline_mode<synchronous>, transform_indices = @transform_14, window_bounds = array<i64: 3, 1, 64>}, {pipeline_mode = #tpu.pipeline_mode<synchronous>, transform_indices = @transform_15, window_bounds = array<i64: 3, 1, 64>}, {pipeline_mode = #tpu.pipeline_mode<synchronous>, transform_indices = @transform_16, window_bounds = array<i64: 3, 1, 64>}, {pipeline_mode = #tpu.pipeline_mode<synchronous>, transform_indices = @transform_17, window_bounds = array<i64: 3, 1, 64>}, {pipeline_mode = #tpu.pipeline_mode<synchronous>, transform_indices = @transform_18, window_bounds = array<i64: 3, 1, 64>}, {pipeline_mode = #tpu.pipeline_mode<synchronous>, transform_indices = @transform_19, window_bounds = array<i64: 64, 64>}, {pipeline_mode = #tpu.pipeline_mode<synchronous>, transform_indices = @transform_20, window_bounds = array<i64: 1, 64>}, {pipeline_mode = #tpu.pipeline_mode<synchronous>, transform_indices = @transform_21, window_bounds = array<i64: 64, 128>}, {pipeline_mode = #tpu.pipeline_mode<synchronous>, transform_indices = @transform_22, window_bounds = array<i64: 1, 128>}, {transform_indices = @transform_23, window_bounds = array<i64: 2, 128>}]} {
    %c0 = arith.constant 0 : index
    %c0_0 = arith.constant 0 : index
    %0 = vector.load %arg1[%c0, %c0_0] : memref<2x8xf32, #tpu.memory_space<vmem>>, vector<2x8xf32>
    %1 = vector.shape_cast %0 : vector<2x8xf32> to vector<2x8x1xf32>
    %c0_1 = arith.constant 0 : index
    %c0_2 = arith.constant 0 : index
    %2 = vector.load %arg2[%c0_1, %c0_2] : memref<1x64xf32, #tpu.memory_space<vmem>>, vector<1x64xf32>
    %3 = vector.shape_cast %2 : vector<1x64xf32> to vector<1x1x64xf32>
    %4 = vector.broadcast %1 : vector<2x8x1xf32> to vector<2x8x64xf32>
    %5 = vector.broadcast %3 : vector<1x1x64xf32> to vector<2x8x64xf32>
    %6 = arith.mulf %4, %5 : vector<2x8x64xf32>
    %c0_3 = arith.constant 0 : index
    %c0_4 = arith.constant 0 : index
    %7 = vector.load %arg3[%c0_3, %c0_4] : memref<8x64xf32, #tpu.memory_space<vmem>>, vector<8x64xf32>
    %8 = vector.shape_cast %7 : vector<8x64xf32> to vector<1x8x64xf32>
    %9 = vector.broadcast %8 : vector<1x8x64xf32> to vector<2x8x64xf32>
    %10 = arith.addf %6, %9 : vector<2x8x64xf32>
    %11 = vector.shape_cast %10 : vector<2x8x64xf32> to vector<16x64xf32>
    %c0_5 = arith.constant 0 : index
    %c0_6 = arith.constant 0 : index
    %c0_7 = arith.constant 0 : index
    %12 = vector.load %arg4[%c0_5, %c0_6, %c0_7] : memref<3x64x64xf32, #tpu.memory_space<vmem>>, vector<1x64x64xf32>
    %13 = vector.shape_cast %12 : vector<1x64x64xf32> to vector<64x64xf32>
    %cst = arith.constant dense<0.000000e+00> : vector<16x64xf32>
    %14 = tpu.matmul %11, %13, %cst {dimension_numbers = #tpu.dot_dimension_numbers<[1], [0], [0], [1], [0, 0, 1, 1], [], []>} : vector<16x64xf32>, vector<64x64xf32>, vector<16x64xf32> -> vector<16x64xf32>
    %c0_8 = arith.constant 0 : index
    %c0_9 = arith.constant 0 : index
    %c0_10 = arith.constant 0 : index
    %15 = vector.load %arg5[%c0_8, %c0_9, %c0_10] : memref<3x1x64xf32, #tpu.memory_space<vmem>>, vector<1x1x64xf32>
    %16 = vector.shape_cast %15 : vector<1x1x64xf32> to vector<1x64xf32>
    %17 = vector.broadcast %16 : vector<1x64xf32> to vector<16x64xf32>
    %18 = arith.addf %14, %17 : vector<16x64xf32>
    %c0_11 = arith.constant 0 : index
    %c0_12 = arith.constant 0 : index
    %c0_13 = arith.constant 0 : index
    %19 = vector.load %arg6[%c0_11, %c0_12, %c0_13] : memref<3x64x64xf32, #tpu.memory_space<vmem>>, vector<1x64x64xf32>
    %20 = vector.shape_cast %19 : vector<1x64x64xf32> to vector<64x64xf32>
    %cst_14 = arith.constant dense<0.000000e+00> : vector<16x64xf32>
    %21 = tpu.matmul %11, %20, %cst_14 {dimension_numbers = #tpu.dot_dimension_numbers<[1], [0], [0], [1], [0, 0, 1, 1], [], []>} : vector<16x64xf32>, vector<64x64xf32>, vector<16x64xf32> -> vector<16x64xf32>
    %c0_15 = arith.constant 0 : index
    %c0_16 = arith.constant 0 : index
    %c0_17 = arith.constant 0 : index
    %22 = vector.load %arg7[%c0_15, %c0_16, %c0_17] : memref<3x1x64xf32, #tpu.memory_space<vmem>>, vector<1x1x64xf32>
    %23 = vector.shape_cast %22 : vector<1x1x64xf32> to vector<1x64xf32>
    %24 = vector.broadcast %23 : vector<1x64xf32> to vector<16x64xf32>
    %25 = arith.addf %21, %24 : vector<16x64xf32>
    %c0_18 = arith.constant 0 : index
    %c0_19 = arith.constant 0 : index
    %c0_20 = arith.constant 0 : index
    %26 = vector.load %arg8[%c0_18, %c0_19, %c0_20] : memref<3x64x64xf32, #tpu.memory_space<vmem>>, vector<1x64x64xf32>
    %27 = vector.shape_cast %26 : vector<1x64x64xf32> to vector<64x64xf32>
    %cst_21 = arith.constant dense<0.000000e+00> : vector<16x64xf32>
    %28 = tpu.matmul %11, %27, %cst_21 {dimension_numbers = #tpu.dot_dimension_numbers<[1], [0], [0], [1], [0, 0, 1, 1], [], []>} : vector<16x64xf32>, vector<64x64xf32>, vector<16x64xf32> -> vector<16x64xf32>
    %c0_22 = arith.constant 0 : index
    %c0_23 = arith.constant 0 : index
    %c0_24 = arith.constant 0 : index
    %29 = vector.load %arg9[%c0_22, %c0_23, %c0_24] : memref<3x1x64xf32, #tpu.memory_space<vmem>>, vector<1x1x64xf32>
    %30 = vector.shape_cast %29 : vector<1x1x64xf32> to vector<1x64xf32>
    %31 = vector.broadcast %30 : vector<1x64xf32> to vector<16x64xf32>
    %32 = arith.addf %28, %31 : vector<16x64xf32>
    %33 = vector.shape_cast %18 : vector<16x64xf32> to vector<2x8x64xf32>
    %34 = vector.shape_cast %25 : vector<16x64xf32> to vector<2x8x64xf32>
    %35 = vector.shape_cast %32 : vector<16x64xf32> to vector<2x8x64xf32>
    %36 = vector.extract_strided_slice %33 {offsets = [0, 0, 0], sizes = [2, 8, 16], strides = [1, 1, 1]} : vector<2x8x64xf32> to vector<2x8x16xf32>
    %37 = vector.extract_strided_slice %34 {offsets = [0, 0, 0], sizes = [2, 8, 16], strides = [1, 1, 1]} : vector<2x8x64xf32> to vector<2x8x16xf32>
    %38 = vector.extract_strided_slice %35 {offsets = [0, 0, 0], sizes = [2, 8, 16], strides = [1, 1, 1]} : vector<2x8x64xf32> to vector<2x8x16xf32>
    "tpu.trace_start"() <{level = 10 : i32, message = "bqd,bkd->bqk"}> : () -> ()
    %cst_25 = arith.constant dense<0.000000e+00> : vector<2x8x8xf32>
    %39 = tpu.matmul %36, %37, %cst_25 {dimension_numbers = #tpu.dot_dimension_numbers<[2], [2], [1], [1], [0, 0, 0, 1, 1, 1], [0], [0]>} : vector<2x8x16xf32>, vector<2x8x16xf32>, vector<2x8x8xf32> -> vector<2x8x8xf32>
    "tpu.trace_stop"() : () -> ()
    %cst_26 = arith.constant dense<0xFF800000> : vector<2x8xf32>
    %40 = vector.multi_reduction <maximumf>, %39, %cst_26 [2] : vector<2x8x8xf32> to vector<2x8xf32>
    %41 = vector.shape_cast %40 : vector<2x8xf32> to vector<2x8x1xf32>
    %42 = vector.broadcast %41 : vector<2x8x1xf32> to vector<2x8x8xf32>
    %43 = arith.subf %39, %42 : vector<2x8x8xf32>
    %44 = math.exp %43 : vector<2x8x8xf32>
    %cst_27 = arith.constant dense<0.000000e+00> : vector<2x8xf32>
    %45 = vector.multi_reduction <add>, %44, %cst_27 [2] : vector<2x8x8xf32> to vector<2x8xf32>
    %46 = vector.shape_cast %45 : vector<2x8xf32> to vector<2x8x1xf32>
    %47 = tpu.reciprocal %46 {approx = true} : vector<2x8x1xf32> -> vector<2x8x1xf32>
    %48 = vector.broadcast %47 : vector<2x8x1xf32> to vector<2x8x8xf32>
    %49 = arith.mulf %44, %48 : vector<2x8x8xf32>
    "tpu.trace_start"() <{level = 10 : i32, message = "bqk,bkd->bqd"}> : () -> ()
    %cst_28 = arith.constant dense<0.000000e+00> : vector<2x8x16xf32>
    %50 = tpu.matmul %49, %38, %cst_28 {dimension_numbers = #tpu.dot_dimension_numbers<[2], [1], [1], [2], [0, 0, 0, 1, 1, 2], [0], [0]>} : vector<2x8x8xf32>, vector<2x8x16xf32>, vector<2x8x16xf32> -> vector<2x8x16xf32>
    "tpu.trace_stop"() : () -> ()
    %51 = vector.extract_strided_slice %33 {offsets = [0, 0, 16], sizes = [2, 8, 16], strides = [1, 1, 1]} : vector<2x8x64xf32> to vector<2x8x16xf32>
    %52 = vector.extract_strided_slice %34 {offsets = [0, 0, 16], sizes = [2, 8, 16], strides = [1, 1, 1]} : vector<2x8x64xf32> to vector<2x8x16xf32>
    %53 = vector.extract_strided_slice %35 {offsets = [0, 0, 16], sizes = [2, 8, 16], strides = [1, 1, 1]} : vector<2x8x64xf32> to vector<2x8x16xf32>
    "tpu.trace_start"() <{level = 10 : i32, message = "bqd,bkd->bqk"}> : () -> ()
    %cst_29 = arith.constant dense<0.000000e+00> : vector<2x8x8xf32>
    %54 = tpu.matmul %51, %52, %cst_29 {dimension_numbers = #tpu.dot_dimension_numbers<[2], [2], [1], [1], [0, 0, 0, 1, 1, 1], [0], [0]>} : vector<2x8x16xf32>, vector<2x8x16xf32>, vector<2x8x8xf32> -> vector<2x8x8xf32>
    "tpu.trace_stop"() : () -> ()
    %cst_30 = arith.constant dense<0xFF800000> : vector<2x8xf32>
    %55 = vector.multi_reduction <maximumf>, %54, %cst_30 [2] : vector<2x8x8xf32> to vector<2x8xf32>
    %56 = vector.shape_cast %55 : vector<2x8xf32> to vector<2x8x1xf32>
    %57 = vector.broadcast %56 : vector<2x8x1xf32> to vector<2x8x8xf32>
    %58 = arith.subf %54, %57 : vector<2x8x8xf32>
    %59 = math.exp %58 : vector<2x8x8xf32>
    %cst_31 = arith.constant dense<0.000000e+00> : vector<2x8xf32>
    %60 = vector.multi_reduction <add>, %59, %cst_31 [2] : vector<2x8x8xf32> to vector<2x8xf32>
    %61 = vector.shape_cast %60 : vector<2x8xf32> to vector<2x8x1xf32>
    %62 = tpu.reciprocal %61 {approx = true} : vector<2x8x1xf32> -> vector<2x8x1xf32>
    %63 = vector.broadcast %62 : vector<2x8x1xf32> to vector<2x8x8xf32>
    %64 = arith.mulf %59, %63 : vector<2x8x8xf32>
    "tpu.trace_start"() <{level = 10 : i32, message = "bqk,bkd->bqd"}> : () -> ()
    %cst_32 = arith.constant dense<0.000000e+00> : vector<2x8x16xf32>
    %65 = tpu.matmul %64, %53, %cst_32 {dimension_numbers = #tpu.dot_dimension_numbers<[2], [1], [1], [2], [0, 0, 0, 1, 1, 2], [0], [0]>} : vector<2x8x8xf32>, vector<2x8x16xf32>, vector<2x8x16xf32> -> vector<2x8x16xf32>
    "tpu.trace_stop"() : () -> ()
    %66 = vector.extract_strided_slice %33 {offsets = [0, 0, 32], sizes = [2, 8, 16], strides = [1, 1, 1]} : vector<2x8x64xf32> to vector<2x8x16xf32>
    %67 = vector.extract_strided_slice %34 {offsets = [0, 0, 32], sizes = [2, 8, 16], strides = [1, 1, 1]} : vector<2x8x64xf32> to vector<2x8x16xf32>
    %68 = vector.extract_strided_slice %35 {offsets = [0, 0, 32], sizes = [2, 8, 16], strides = [1, 1, 1]} : vector<2x8x64xf32> to vector<2x8x16xf32>
    "tpu.trace_start"() <{level = 10 : i32, message = "bqd,bkd->bqk"}> : () -> ()
    %cst_33 = arith.constant dense<0.000000e+00> : vector<2x8x8xf32>
    %69 = tpu.matmul %66, %67, %cst_33 {dimension_numbers = #tpu.dot_dimension_numbers<[2], [2], [1], [1], [0, 0, 0, 1, 1, 1], [0], [0]>} : vector<2x8x16xf32>, vector<2x8x16xf32>, vector<2x8x8xf32> -> vector<2x8x8xf32>
    "tpu.trace_stop"() : () -> ()
    %cst_34 = arith.constant dense<0xFF800000> : vector<2x8xf32>
    %70 = vector.multi_reduction <maximumf>, %69, %cst_34 [2] : vector<2x8x8xf32> to vector<2x8xf32>
    %71 = vector.shape_cast %70 : vector<2x8xf32> to vector<2x8x1xf32>
    %72 = vector.broadcast %71 : vector<2x8x1xf32> to vector<2x8x8xf32>
    %73 = arith.subf %69, %72 : vector<2x8x8xf32>
    %74 = math.exp %73 : vector<2x8x8xf32>
    %cst_35 = arith.constant dense<0.000000e+00> : vector<2x8xf32>
    %75 = vector.multi_reduction <add>, %74, %cst_35 [2] : vector<2x8x8xf32> to vector<2x8xf32>
    %76 = vector.shape_cast %75 : vector<2x8xf32> to vector<2x8x1xf32>
    %77 = tpu.reciprocal %76 {approx = true} : vector<2x8x1xf32> -> vector<2x8x1xf32>
    %78 = vector.broadcast %77 : vector<2x8x1xf32> to vector<2x8x8xf32>
    %79 = arith.mulf %74, %78 : vector<2x8x8xf32>
    "tpu.trace_start"() <{level = 10 : i32, message = "bqk,bkd->bqd"}> : () -> ()
    %cst_36 = arith.constant dense<0.000000e+00> : vector<2x8x16xf32>
    %80 = tpu.matmul %79, %68, %cst_36 {dimension_numbers = #tpu.dot_dimension_numbers<[2], [1], [1], [2], [0, 0, 0, 1, 1, 2], [0], [0]>} : vector<2x8x8xf32>, vector<2x8x16xf32>, vector<2x8x16xf32> -> vector<2x8x16xf32>
    "tpu.trace_stop"() : () -> ()
    %81 = vector.extract_strided_slice %33 {offsets = [0, 0, 48], sizes = [2, 8, 16], strides = [1, 1, 1]} : vector<2x8x64xf32> to vector<2x8x16xf32>
    %82 = vector.extract_strided_slice %34 {offsets = [0, 0, 48], sizes = [2, 8, 16], strides = [1, 1, 1]} : vector<2x8x64xf32> to vector<2x8x16xf32>
    %83 = vector.extract_strided_slice %35 {offsets = [0, 0, 48], sizes = [2, 8, 16], strides = [1, 1, 1]} : vector<2x8x64xf32> to vector<2x8x16xf32>
    "tpu.trace_start"() <{level = 10 : i32, message = "bqd,bkd->bqk"}> : () -> ()
    %cst_37 = arith.constant dense<0.000000e+00> : vector<2x8x8xf32>
    %84 = tpu.matmul %81, %82, %cst_37 {dimension_numbers = #tpu.dot_dimension_numbers<[2], [2], [1], [1], [0, 0, 0, 1, 1, 1], [0], [0]>} : vector<2x8x16xf32>, vector<2x8x16xf32>, vector<2x8x8xf32> -> vector<2x8x8xf32>
    "tpu.trace_stop"() : () -> ()
    %cst_38 = arith.constant dense<0xFF800000> : vector<2x8xf32>
    %85 = vector.multi_reduction <maximumf>, %84, %cst_38 [2] : vector<2x8x8xf32> to vector<2x8xf32>
    %86 = vector.shape_cast %85 : vector<2x8xf32> to vector<2x8x1xf32>
    %87 = vector.broadcast %86 : vector<2x8x1xf32> to vector<2x8x8xf32>
    %88 = arith.subf %84, %87 : vector<2x8x8xf32>
    %89 = math.exp %88 : vector<2x8x8xf32>
    %cst_39 = arith.constant dense<0.000000e+00> : vector<2x8xf32>
    %90 = vector.multi_reduction <add>, %89, %cst_39 [2] : vector<2x8x8xf32> to vector<2x8xf32>
    %91 = vector.shape_cast %90 : vector<2x8xf32> to vector<2x8x1xf32>
    %92 = tpu.reciprocal %91 {approx = true} : vector<2x8x1xf32> -> vector<2x8x1xf32>
    %93 = vector.broadcast %92 : vector<2x8x1xf32> to vector<2x8x8xf32>
    %94 = arith.mulf %89, %93 : vector<2x8x8xf32>
    "tpu.trace_start"() <{level = 10 : i32, message = "bqk,bkd->bqd"}> : () -> ()
    %cst_40 = arith.constant dense<0.000000e+00> : vector<2x8x16xf32>
    %95 = tpu.matmul %94, %83, %cst_40 {dimension_numbers = #tpu.dot_dimension_numbers<[2], [1], [1], [2], [0, 0, 0, 1, 1, 2], [0], [0]>} : vector<2x8x8xf32>, vector<2x8x16xf32>, vector<2x8x16xf32> -> vector<2x8x16xf32>
    "tpu.trace_stop"() : () -> ()
    %96 = tpu.concatenate %50, %65, %80, %95 in 2 : vector<2x8x16xf32>, vector<2x8x16xf32>, vector<2x8x16xf32>, vector<2x8x16xf32> -> vector<2x8x64xf32>
    %97 = vector.shape_cast %96 : vector<2x8x64xf32> to vector<16x64xf32>
    %c0_41 = arith.constant 0 : index
    %c0_42 = arith.constant 0 : index
    %c0_43 = arith.constant 0 : index
    %98 = vector.load %arg10[%c0_41, %c0_42, %c0_43] : memref<3x64x64xf32, #tpu.memory_space<vmem>>, vector<1x64x64xf32>
    %99 = vector.shape_cast %98 : vector<1x64x64xf32> to vector<64x64xf32>
    %cst_44 = arith.constant dense<0.000000e+00> : vector<16x64xf32>
    %100 = tpu.matmul %97, %99, %cst_44 {dimension_numbers = #tpu.dot_dimension_numbers<[1], [0], [0], [1], [0, 0, 1, 1], [], []>} : vector<16x64xf32>, vector<64x64xf32>, vector<16x64xf32> -> vector<16x64xf32>
    %c0_45 = arith.constant 0 : index
    %c0_46 = arith.constant 0 : index
    %c0_47 = arith.constant 0 : index
    %101 = vector.load %arg11[%c0_45, %c0_46, %c0_47] : memref<3x1x64xf32, #tpu.memory_space<vmem>>, vector<1x1x64xf32>
    %102 = vector.shape_cast %101 : vector<1x1x64xf32> to vector<1x64xf32>
    %103 = vector.broadcast %102 : vector<1x64xf32> to vector<16x64xf32>
    %104 = arith.addf %100, %103 : vector<16x64xf32>
    %105 = arith.addf %11, %104 : vector<16x64xf32>
    %c0_48 = arith.constant 0 : index
    %c0_49 = arith.constant 0 : index
    %c0_50 = arith.constant 0 : index
    %106 = vector.load %arg16[%c0_48, %c0_49, %c0_50] : memref<3x1x64xf32, #tpu.memory_space<vmem>>, vector<1x1x64xf32>
    %107 = vector.shape_cast %106 : vector<1x1x64xf32> to vector<1x64xf32>
    %c0_51 = arith.constant 0 : index
    %c0_52 = arith.constant 0 : index
    %c0_53 = arith.constant 0 : index
    %108 = vector.load %arg17[%c0_51, %c0_52, %c0_53] : memref<3x1x64xf32, #tpu.memory_space<vmem>>, vector<1x1x64xf32>
    %109 = vector.shape_cast %108 : vector<1x1x64xf32> to vector<1x64xf32>
    %cst_54 = arith.constant dense<0.000000e+00> : vector<16xf32>
    %110 = vector.multi_reduction <add>, %105, %cst_54 [1] : vector<16x64xf32> to vector<16xf32>
    %111 = vector.shape_cast %110 : vector<16xf32> to vector<16x1xf32>
    %cst_55 = arith.constant 6.400000e+01 : f32
    %112 = vector.broadcast %cst_55 : f32 to vector<16x1xf32>
    %113 = arith.divf %111, %112 : vector<16x1xf32>
    %114 = vector.broadcast %113 : vector<16x1xf32> to vector<16x64xf32>
    %115 = arith.subf %105, %114 : vector<16x64xf32>
    %116 = arith.mulf %115, %115 : vector<16x64xf32>
    %cst_56 = arith.constant dense<0.000000e+00> : vector<16xf32>
    %117 = vector.multi_reduction <add>, %116, %cst_56 [1] : vector<16x64xf32> to vector<16xf32>
    %118 = vector.shape_cast %117 : vector<16xf32> to vector<16x1xf32>
    %cst_57 = arith.constant 6.400000e+01 : f32
    %119 = vector.broadcast %cst_57 : f32 to vector<16x1xf32>
    %120 = arith.divf %118, %119 : vector<16x1xf32>
    %121 = vector.broadcast %113 : vector<16x1xf32> to vector<16x64xf32>
    %122 = arith.subf %105, %121 : vector<16x64xf32>
    %cst_58 = arith.constant 9.99999974E-6 : f32
    %123 = vector.broadcast %cst_58 : f32 to vector<16x1xf32>
    %124 = arith.addf %120, %123 : vector<16x1xf32>
    %125 = math.rsqrt %124 : vector<16x1xf32>
    %126 = vector.broadcast %125 : vector<16x1xf32> to vector<16x64xf32>
    %127 = arith.mulf %122, %126 : vector<16x64xf32>
    %128 = vector.broadcast %107 : vector<1x64xf32> to vector<16x64xf32>
    %129 = arith.mulf %127, %128 : vector<16x64xf32>
    %130 = vector.broadcast %109 : vector<1x64xf32> to vector<16x64xf32>
    %131 = arith.addf %129, %130 : vector<16x64xf32>
    %c0_59 = arith.constant 0 : index
    %c0_60 = arith.constant 0 : index
    %c0_61 = arith.constant 0 : index
    %132 = vector.load %arg12[%c0_59, %c0_60, %c0_61] : memref<3x64x256xf32, #tpu.memory_space<vmem>>, vector<1x64x256xf32>
    %133 = vector.shape_cast %132 : vector<1x64x256xf32> to vector<64x256xf32>
    %cst_62 = arith.constant dense<0.000000e+00> : vector<16x256xf32>
    %134 = tpu.matmul %131, %133, %cst_62 {dimension_numbers = #tpu.dot_dimension_numbers<[1], [0], [0], [1], [0, 0, 1, 1], [], []>} : vector<16x64xf32>, vector<64x256xf32>, vector<16x256xf32> -> vector<16x256xf32>
    %c0_63 = arith.constant 0 : index
    %c0_64 = arith.constant 0 : index
    %c0_65 = arith.constant 0 : index
    %135 = vector.load %arg13[%c0_63, %c0_64, %c0_65] : memref<3x1x256xf32, #tpu.memory_space<vmem>>, vector<1x1x256xf32>
    %136 = vector.shape_cast %135 : vector<1x1x256xf32> to vector<1x256xf32>
    %137 = vector.broadcast %136 : vector<1x256xf32> to vector<16x256xf32>
    %138 = arith.addf %134, %137 : vector<16x256xf32>
    %cst_66 = arith.constant 5.000000e-01 : f32
    %139 = vector.broadcast %cst_66 : f32 to vector<16x256xf32>
    %140 = arith.mulf %139, %138 : vector<16x256xf32>
    %cst_67 = arith.constant 4.471500e-02 : f32
    %141 = vector.broadcast %cst_67 : f32 to vector<16x256xf32>
    %142 = arith.mulf %141, %138 : vector<16x256xf32>
    %143 = arith.mulf %142, %138 : vector<16x256xf32>
    %144 = arith.mulf %143, %138 : vector<16x256xf32>
    %145 = arith.addf %138, %144 : vector<16x256xf32>
    %cst_68 = arith.constant 0.797884583 : f32
    %146 = vector.broadcast %cst_68 : f32 to vector<16x256xf32>
    %147 = arith.mulf %146, %145 : vector<16x256xf32>
    %148 = math.tanh %147 : vector<16x256xf32>
    %cst_69 = arith.constant 1.000000e+00 : f32
    %149 = vector.broadcast %cst_69 : f32 to vector<16x256xf32>
    %150 = arith.addf %149, %148 : vector<16x256xf32>
    %151 = arith.mulf %140, %150 : vector<16x256xf32>
    %c0_70 = arith.constant 0 : index
    %c0_71 = arith.constant 0 : index
    %c0_72 = arith.constant 0 : index
    %152 = vector.load %arg14[%c0_70, %c0_71, %c0_72] : memref<3x256x64xf32, #tpu.memory_space<vmem>>, vector<1x256x64xf32>
    %153 = vector.shape_cast %152 : vector<1x256x64xf32> to vector<256x64xf32>
    %cst_73 = arith.constant dense<0.000000e+00> : vector<16x64xf32>
    %154 = tpu.matmul %151, %153, %cst_73 {dimension_numbers = #tpu.dot_dimension_numbers<[1], [0], [0], [1], [0, 0, 1, 1], [], []>} : vector<16x256xf32>, vector<256x64xf32>, vector<16x64xf32> -> vector<16x64xf32>
    %c0_74 = arith.constant 0 : index
    %c0_75 = arith.constant 0 : index
    %c0_76 = arith.constant 0 : index
    %155 = vector.load %arg15[%c0_74, %c0_75, %c0_76] : memref<3x1x64xf32, #tpu.memory_space<vmem>>, vector<1x1x64xf32>
    %156 = vector.shape_cast %155 : vector<1x1x64xf32> to vector<1x64xf32>
    %157 = vector.broadcast %156 : vector<1x64xf32> to vector<16x64xf32>
    %158 = arith.addf %154, %157 : vector<16x64xf32>
    %159 = arith.addf %131, %158 : vector<16x64xf32>
    %c0_77 = arith.constant 0 : index
    %c0_78 = arith.constant 0 : index
    %c0_79 = arith.constant 0 : index
    %160 = vector.load %arg18[%c0_77, %c0_78, %c0_79] : memref<3x1x64xf32, #tpu.memory_space<vmem>>, vector<1x1x64xf32>
    %161 = vector.shape_cast %160 : vector<1x1x64xf32> to vector<1x64xf32>
    %c0_80 = arith.constant 0 : index
    %c0_81 = arith.constant 0 : index
    %c0_82 = arith.constant 0 : index
    %162 = vector.load %arg19[%c0_80, %c0_81, %c0_82] : memref<3x1x64xf32, #tpu.memory_space<vmem>>, vector<1x1x64xf32>
    %163 = vector.shape_cast %162 : vector<1x1x64xf32> to vector<1x64xf32>
    %cst_83 = arith.constant dense<0.000000e+00> : vector<16xf32>
    %164 = vector.multi_reduction <add>, %159, %cst_83 [1] : vector<16x64xf32> to vector<16xf32>
    %165 = vector.shape_cast %164 : vector<16xf32> to vector<16x1xf32>
    %cst_84 = arith.constant 6.400000e+01 : f32
    %166 = vector.broadcast %cst_84 : f32 to vector<16x1xf32>
    %167 = arith.divf %165, %166 : vector<16x1xf32>
    %168 = vector.broadcast %167 : vector<16x1xf32> to vector<16x64xf32>
    %169 = arith.subf %159, %168 : vector<16x64xf32>
    %170 = arith.mulf %169, %169 : vector<16x64xf32>
    %cst_85 = arith.constant dense<0.000000e+00> : vector<16xf32>
    %171 = vector.multi_reduction <add>, %170, %cst_85 [1] : vector<16x64xf32> to vector<16xf32>
    %172 = vector.shape_cast %171 : vector<16xf32> to vector<16x1xf32>
    %cst_86 = arith.constant 6.400000e+01 : f32
    %173 = vector.broadcast %cst_86 : f32 to vector<16x1xf32>
    %174 = arith.divf %172, %173 : vector<16x1xf32>
    %175 = vector.broadcast %167 : vector<16x1xf32> to vector<16x64xf32>
    %176 = arith.subf %159, %175 : vector<16x64xf32>
    %cst_87 = arith.constant 9.99999974E-6 : f32
    %177 = vector.broadcast %cst_87 : f32 to vector<16x1xf32>
    %178 = arith.addf %174, %177 : vector<16x1xf32>
    %179 = math.rsqrt %178 : vector<16x1xf32>
    %180 = vector.broadcast %179 : vector<16x1xf32> to vector<16x64xf32>
    %181 = arith.mulf %176, %180 : vector<16x64xf32>
    %182 = vector.broadcast %161 : vector<1x64xf32> to vector<16x64xf32>
    %183 = arith.mulf %181, %182 : vector<16x64xf32>
    %184 = vector.broadcast %163 : vector<1x64xf32> to vector<16x64xf32>
    %185 = arith.addf %183, %184 : vector<16x64xf32>
    %c1 = arith.constant 1 : index
    %c0_88 = arith.constant 0 : index
    %c0_89 = arith.constant 0 : index
    %186 = vector.load %arg4[%c1, %c0_88, %c0_89] : memref<3x64x64xf32, #tpu.memory_space<vmem>>, vector<1x64x64xf32>
    %187 = vector.shape_cast %186 : vector<1x64x64xf32> to vector<64x64xf32>
    %cst_90 = arith.constant dense<0.000000e+00> : vector<16x64xf32>
    %188 = tpu.matmul %185, %187, %cst_90 {dimension_numbers = #tpu.dot_dimension_numbers<[1], [0], [0], [1], [0, 0, 1, 1], [], []>} : vector<16x64xf32>, vector<64x64xf32>, vector<16x64xf32> -> vector<16x64xf32>
    %c1_91 = arith.constant 1 : index
    %c0_92 = arith.constant 0 : index
    %c0_93 = arith.constant 0 : index
    %189 = vector.load %arg5[%c1_91, %c0_92, %c0_93] : memref<3x1x64xf32, #tpu.memory_space<vmem>>, vector<1x1x64xf32>
    %190 = vector.shape_cast %189 : vector<1x1x64xf32> to vector<1x64xf32>
    %191 = vector.broadcast %190 : vector<1x64xf32> to vector<16x64xf32>
    %192 = arith.addf %188, %191 : vector<16x64xf32>
    %c1_94 = arith.constant 1 : index
    %c0_95 = arith.constant 0 : index
    %c0_96 = arith.constant 0 : index
    %193 = vector.load %arg6[%c1_94, %c0_95, %c0_96] : memref<3x64x64xf32, #tpu.memory_space<vmem>>, vector<1x64x64xf32>
    %194 = vector.shape_cast %193 : vector<1x64x64xf32> to vector<64x64xf32>
    %cst_97 = arith.constant dense<0.000000e+00> : vector<16x64xf32>
    %195 = tpu.matmul %185, %194, %cst_97 {dimension_numbers = #tpu.dot_dimension_numbers<[1], [0], [0], [1], [0, 0, 1, 1], [], []>} : vector<16x64xf32>, vector<64x64xf32>, vector<16x64xf32> -> vector<16x64xf32>
    %c1_98 = arith.constant 1 : index
    %c0_99 = arith.constant 0 : index
    %c0_100 = arith.constant 0 : index
    %196 = vector.load %arg7[%c1_98, %c0_99, %c0_100] : memref<3x1x64xf32, #tpu.memory_space<vmem>>, vector<1x1x64xf32>
    %197 = vector.shape_cast %196 : vector<1x1x64xf32> to vector<1x64xf32>
    %198 = vector.broadcast %197 : vector<1x64xf32> to vector<16x64xf32>
    %199 = arith.addf %195, %198 : vector<16x64xf32>
    %c1_101 = arith.constant 1 : index
    %c0_102 = arith.constant 0 : index
    %c0_103 = arith.constant 0 : index
    %200 = vector.load %arg8[%c1_101, %c0_102, %c0_103] : memref<3x64x64xf32, #tpu.memory_space<vmem>>, vector<1x64x64xf32>
    %201 = vector.shape_cast %200 : vector<1x64x64xf32> to vector<64x64xf32>
    %cst_104 = arith.constant dense<0.000000e+00> : vector<16x64xf32>
    %202 = tpu.matmul %185, %201, %cst_104 {dimension_numbers = #tpu.dot_dimension_numbers<[1], [0], [0], [1], [0, 0, 1, 1], [], []>} : vector<16x64xf32>, vector<64x64xf32>, vector<16x64xf32> -> vector<16x64xf32>
    %c1_105 = arith.constant 1 : index
    %c0_106 = arith.constant 0 : index
    %c0_107 = arith.constant 0 : index
    %203 = vector.load %arg9[%c1_105, %c0_106, %c0_107] : memref<3x1x64xf32, #tpu.memory_space<vmem>>, vector<1x1x64xf32>
    %204 = vector.shape_cast %203 : vector<1x1x64xf32> to vector<1x64xf32>
    %205 = vector.broadcast %204 : vector<1x64xf32> to vector<16x64xf32>
    %206 = arith.addf %202, %205 : vector<16x64xf32>
    %207 = vector.shape_cast %192 : vector<16x64xf32> to vector<2x8x64xf32>
    %208 = vector.shape_cast %199 : vector<16x64xf32> to vector<2x8x64xf32>
    %209 = vector.shape_cast %206 : vector<16x64xf32> to vector<2x8x64xf32>
    %210 = vector.extract_strided_slice %207 {offsets = [0, 0, 0], sizes = [2, 8, 16], strides = [1, 1, 1]} : vector<2x8x64xf32> to vector<2x8x16xf32>
    %211 = vector.extract_strided_slice %208 {offsets = [0, 0, 0], sizes = [2, 8, 16], strides = [1, 1, 1]} : vector<2x8x64xf32> to vector<2x8x16xf32>
    %212 = vector.extract_strided_slice %209 {offsets = [0, 0, 0], sizes = [2, 8, 16], strides = [1, 1, 1]} : vector<2x8x64xf32> to vector<2x8x16xf32>
    "tpu.trace_start"() <{level = 10 : i32, message = "bqd,bkd->bqk"}> : () -> ()
    %cst_108 = arith.constant dense<0.000000e+00> : vector<2x8x8xf32>
    %213 = tpu.matmul %210, %211, %cst_108 {dimension_numbers = #tpu.dot_dimension_numbers<[2], [2], [1], [1], [0, 0, 0, 1, 1, 1], [0], [0]>} : vector<2x8x16xf32>, vector<2x8x16xf32>, vector<2x8x8xf32> -> vector<2x8x8xf32>
    "tpu.trace_stop"() : () -> ()
    %cst_109 = arith.constant dense<0xFF800000> : vector<2x8xf32>
    %214 = vector.multi_reduction <maximumf>, %213, %cst_109 [2] : vector<2x8x8xf32> to vector<2x8xf32>
    %215 = vector.shape_cast %214 : vector<2x8xf32> to vector<2x8x1xf32>
    %216 = vector.broadcast %215 : vector<2x8x1xf32> to vector<2x8x8xf32>
    %217 = arith.subf %213, %216 : vector<2x8x8xf32>
    %218 = math.exp %217 : vector<2x8x8xf32>
    %cst_110 = arith.constant dense<0.000000e+00> : vector<2x8xf32>
    %219 = vector.multi_reduction <add>, %218, %cst_110 [2] : vector<2x8x8xf32> to vector<2x8xf32>
    %220 = vector.shape_cast %219 : vector<2x8xf32> to vector<2x8x1xf32>
    %221 = tpu.reciprocal %220 {approx = true} : vector<2x8x1xf32> -> vector<2x8x1xf32>
    %222 = vector.broadcast %221 : vector<2x8x1xf32> to vector<2x8x8xf32>
    %223 = arith.mulf %218, %222 : vector<2x8x8xf32>
    "tpu.trace_start"() <{level = 10 : i32, message = "bqk,bkd->bqd"}> : () -> ()
    %cst_111 = arith.constant dense<0.000000e+00> : vector<2x8x16xf32>
    %224 = tpu.matmul %223, %212, %cst_111 {dimension_numbers = #tpu.dot_dimension_numbers<[2], [1], [1], [2], [0, 0, 0, 1, 1, 2], [0], [0]>} : vector<2x8x8xf32>, vector<2x8x16xf32>, vector<2x8x16xf32> -> vector<2x8x16xf32>
    "tpu.trace_stop"() : () -> ()
    %225 = vector.extract_strided_slice %207 {offsets = [0, 0, 16], sizes = [2, 8, 16], strides = [1, 1, 1]} : vector<2x8x64xf32> to vector<2x8x16xf32>
    %226 = vector.extract_strided_slice %208 {offsets = [0, 0, 16], sizes = [2, 8, 16], strides = [1, 1, 1]} : vector<2x8x64xf32> to vector<2x8x16xf32>
    %227 = vector.extract_strided_slice %209 {offsets = [0, 0, 16], sizes = [2, 8, 16], strides = [1, 1, 1]} : vector<2x8x64xf32> to vector<2x8x16xf32>
    "tpu.trace_start"() <{level = 10 : i32, message = "bqd,bkd->bqk"}> : () -> ()
    %cst_112 = arith.constant dense<0.000000e+00> : vector<2x8x8xf32>
    %228 = tpu.matmul %225, %226, %cst_112 {dimension_numbers = #tpu.dot_dimension_numbers<[2], [2], [1], [1], [0, 0, 0, 1, 1, 1], [0], [0]>} : vector<2x8x16xf32>, vector<2x8x16xf32>, vector<2x8x8xf32> -> vector<2x8x8xf32>
    "tpu.trace_stop"() : () -> ()
    %cst_113 = arith.constant dense<0xFF800000> : vector<2x8xf32>
    %229 = vector.multi_reduction <maximumf>, %228, %cst_113 [2] : vector<2x8x8xf32> to vector<2x8xf32>
    %230 = vector.shape_cast %229 : vector<2x8xf32> to vector<2x8x1xf32>
    %231 = vector.broadcast %230 : vector<2x8x1xf32> to vector<2x8x8xf32>
    %232 = arith.subf %228, %231 : vector<2x8x8xf32>
    %233 = math.exp %232 : vector<2x8x8xf32>
    %cst_114 = arith.constant dense<0.000000e+00> : vector<2x8xf32>
    %234 = vector.multi_reduction <add>, %233, %cst_114 [2] : vector<2x8x8xf32> to vector<2x8xf32>
    %235 = vector.shape_cast %234 : vector<2x8xf32> to vector<2x8x1xf32>
    %236 = tpu.reciprocal %235 {approx = true} : vector<2x8x1xf32> -> vector<2x8x1xf32>
    %237 = vector.broadcast %236 : vector<2x8x1xf32> to vector<2x8x8xf32>
    %238 = arith.mulf %233, %237 : vector<2x8x8xf32>
    "tpu.trace_start"() <{level = 10 : i32, message = "bqk,bkd->bqd"}> : () -> ()
    %cst_115 = arith.constant dense<0.000000e+00> : vector<2x8x16xf32>
    %239 = tpu.matmul %238, %227, %cst_115 {dimension_numbers = #tpu.dot_dimension_numbers<[2], [1], [1], [2], [0, 0, 0, 1, 1, 2], [0], [0]>} : vector<2x8x8xf32>, vector<2x8x16xf32>, vector<2x8x16xf32> -> vector<2x8x16xf32>
    "tpu.trace_stop"() : () -> ()
    %240 = vector.extract_strided_slice %207 {offsets = [0, 0, 32], sizes = [2, 8, 16], strides = [1, 1, 1]} : vector<2x8x64xf32> to vector<2x8x16xf32>
    %241 = vector.extract_strided_slice %208 {offsets = [0, 0, 32], sizes = [2, 8, 16], strides = [1, 1, 1]} : vector<2x8x64xf32> to vector<2x8x16xf32>
    %242 = vector.extract_strided_slice %209 {offsets = [0, 0, 32], sizes = [2, 8, 16], strides = [1, 1, 1]} : vector<2x8x64xf32> to vector<2x8x16xf32>
    "tpu.trace_start"() <{level = 10 : i32, message = "bqd,bkd->bqk"}> : () -> ()
    %cst_116 = arith.constant dense<0.000000e+00> : vector<2x8x8xf32>
    %243 = tpu.matmul %240, %241, %cst_116 {dimension_numbers = #tpu.dot_dimension_numbers<[2], [2], [1], [1], [0, 0, 0, 1, 1, 1], [0], [0]>} : vector<2x8x16xf32>, vector<2x8x16xf32>, vector<2x8x8xf32> -> vector<2x8x8xf32>
    "tpu.trace_stop"() : () -> ()
    %cst_117 = arith.constant dense<0xFF800000> : vector<2x8xf32>
    %244 = vector.multi_reduction <maximumf>, %243, %cst_117 [2] : vector<2x8x8xf32> to vector<2x8xf32>
    %245 = vector.shape_cast %244 : vector<2x8xf32> to vector<2x8x1xf32>
    %246 = vector.broadcast %245 : vector<2x8x1xf32> to vector<2x8x8xf32>
    %247 = arith.subf %243, %246 : vector<2x8x8xf32>
    %248 = math.exp %247 : vector<2x8x8xf32>
    %cst_118 = arith.constant dense<0.000000e+00> : vector<2x8xf32>
    %249 = vector.multi_reduction <add>, %248, %cst_118 [2] : vector<2x8x8xf32> to vector<2x8xf32>
    %250 = vector.shape_cast %249 : vector<2x8xf32> to vector<2x8x1xf32>
    %251 = tpu.reciprocal %250 {approx = true} : vector<2x8x1xf32> -> vector<2x8x1xf32>
    %252 = vector.broadcast %251 : vector<2x8x1xf32> to vector<2x8x8xf32>
    %253 = arith.mulf %248, %252 : vector<2x8x8xf32>
    "tpu.trace_start"() <{level = 10 : i32, message = "bqk,bkd->bqd"}> : () -> ()
    %cst_119 = arith.constant dense<0.000000e+00> : vector<2x8x16xf32>
    %254 = tpu.matmul %253, %242, %cst_119 {dimension_numbers = #tpu.dot_dimension_numbers<[2], [1], [1], [2], [0, 0, 0, 1, 1, 2], [0], [0]>} : vector<2x8x8xf32>, vector<2x8x16xf32>, vector<2x8x16xf32> -> vector<2x8x16xf32>
    "tpu.trace_stop"() : () -> ()
    %255 = vector.extract_strided_slice %207 {offsets = [0, 0, 48], sizes = [2, 8, 16], strides = [1, 1, 1]} : vector<2x8x64xf32> to vector<2x8x16xf32>
    %256 = vector.extract_strided_slice %208 {offsets = [0, 0, 48], sizes = [2, 8, 16], strides = [1, 1, 1]} : vector<2x8x64xf32> to vector<2x8x16xf32>
    %257 = vector.extract_strided_slice %209 {offsets = [0, 0, 48], sizes = [2, 8, 16], strides = [1, 1, 1]} : vector<2x8x64xf32> to vector<2x8x16xf32>
    "tpu.trace_start"() <{level = 10 : i32, message = "bqd,bkd->bqk"}> : () -> ()
    %cst_120 = arith.constant dense<0.000000e+00> : vector<2x8x8xf32>
    %258 = tpu.matmul %255, %256, %cst_120 {dimension_numbers = #tpu.dot_dimension_numbers<[2], [2], [1], [1], [0, 0, 0, 1, 1, 1], [0], [0]>} : vector<2x8x16xf32>, vector<2x8x16xf32>, vector<2x8x8xf32> -> vector<2x8x8xf32>
    "tpu.trace_stop"() : () -> ()
    %cst_121 = arith.constant dense<0xFF800000> : vector<2x8xf32>
    %259 = vector.multi_reduction <maximumf>, %258, %cst_121 [2] : vector<2x8x8xf32> to vector<2x8xf32>
    %260 = vector.shape_cast %259 : vector<2x8xf32> to vector<2x8x1xf32>
    %261 = vector.broadcast %260 : vector<2x8x1xf32> to vector<2x8x8xf32>
    %262 = arith.subf %258, %261 : vector<2x8x8xf32>
    %263 = math.exp %262 : vector<2x8x8xf32>
    %cst_122 = arith.constant dense<0.000000e+00> : vector<2x8xf32>
    %264 = vector.multi_reduction <add>, %263, %cst_122 [2] : vector<2x8x8xf32> to vector<2x8xf32>
    %265 = vector.shape_cast %264 : vector<2x8xf32> to vector<2x8x1xf32>
    %266 = tpu.reciprocal %265 {approx = true} : vector<2x8x1xf32> -> vector<2x8x1xf32>
    %267 = vector.broadcast %266 : vector<2x8x1xf32> to vector<2x8x8xf32>
    %268 = arith.mulf %263, %267 : vector<2x8x8xf32>
    "tpu.trace_start"() <{level = 10 : i32, message = "bqk,bkd->bqd"}> : () -> ()
    %cst_123 = arith.constant dense<0.000000e+00> : vector<2x8x16xf32>
    %269 = tpu.matmul %268, %257, %cst_123 {dimension_numbers = #tpu.dot_dimension_numbers<[2], [1], [1], [2], [0, 0, 0, 1, 1, 2], [0], [0]>} : vector<2x8x8xf32>, vector<2x8x16xf32>, vector<2x8x16xf32> -> vector<2x8x16xf32>
    "tpu.trace_stop"() : () -> ()
    %270 = tpu.concatenate %224, %239, %254, %269 in 2 : vector<2x8x16xf32>, vector<2x8x16xf32>, vector<2x8x16xf32>, vector<2x8x16xf32> -> vector<2x8x64xf32>
    %271 = vector.shape_cast %270 : vector<2x8x64xf32> to vector<16x64xf32>
    %c1_124 = arith.constant 1 : index
    %c0_125 = arith.constant 0 : index
    %c0_126 = arith.constant 0 : index
    %272 = vector.load %arg10[%c1_124, %c0_125, %c0_126] : memref<3x64x64xf32, #tpu.memory_space<vmem>>, vector<1x64x64xf32>
    %273 = vector.shape_cast %272 : vector<1x64x64xf32> to vector<64x64xf32>
    %cst_127 = arith.constant dense<0.000000e+00> : vector<16x64xf32>
    %274 = tpu.matmul %271, %273, %cst_127 {dimension_numbers = #tpu.dot_dimension_numbers<[1], [0], [0], [1], [0, 0, 1, 1], [], []>} : vector<16x64xf32>, vector<64x64xf32>, vector<16x64xf32> -> vector<16x64xf32>
    %c1_128 = arith.constant 1 : index
    %c0_129 = arith.constant 0 : index
    %c0_130 = arith.constant 0 : index
    %275 = vector.load %arg11[%c1_128, %c0_129, %c0_130] : memref<3x1x64xf32, #tpu.memory_space<vmem>>, vector<1x1x64xf32>
    %276 = vector.shape_cast %275 : vector<1x1x64xf32> to vector<1x64xf32>
    %277 = vector.broadcast %276 : vector<1x64xf32> to vector<16x64xf32>
    %278 = arith.addf %274, %277 : vector<16x64xf32>
    %279 = arith.addf %185, %278 : vector<16x64xf32>
    %c1_131 = arith.constant 1 : index
    %c0_132 = arith.constant 0 : index
    %c0_133 = arith.constant 0 : index
    %280 = vector.load %arg16[%c1_131, %c0_132, %c0_133] : memref<3x1x64xf32, #tpu.memory_space<vmem>>, vector<1x1x64xf32>
    %281 = vector.shape_cast %280 : vector<1x1x64xf32> to vector<1x64xf32>
    %c1_134 = arith.constant 1 : index
    %c0_135 = arith.constant 0 : index
    %c0_136 = arith.constant 0 : index
    %282 = vector.load %arg17[%c1_134, %c0_135, %c0_136] : memref<3x1x64xf32, #tpu.memory_space<vmem>>, vector<1x1x64xf32>
    %283 = vector.shape_cast %282 : vector<1x1x64xf32> to vector<1x64xf32>
    %cst_137 = arith.constant dense<0.000000e+00> : vector<16xf32>
    %284 = vector.multi_reduction <add>, %279, %cst_137 [1] : vector<16x64xf32> to vector<16xf32>
    %285 = vector.shape_cast %284 : vector<16xf32> to vector<16x1xf32>
    %cst_138 = arith.constant 6.400000e+01 : f32
    %286 = vector.broadcast %cst_138 : f32 to vector<16x1xf32>
    %287 = arith.divf %285, %286 : vector<16x1xf32>
    %288 = vector.broadcast %287 : vector<16x1xf32> to vector<16x64xf32>
    %289 = arith.subf %279, %288 : vector<16x64xf32>
    %290 = arith.mulf %289, %289 : vector<16x64xf32>
    %cst_139 = arith.constant dense<0.000000e+00> : vector<16xf32>
    %291 = vector.multi_reduction <add>, %290, %cst_139 [1] : vector<16x64xf32> to vector<16xf32>
    %292 = vector.shape_cast %291 : vector<16xf32> to vector<16x1xf32>
    %cst_140 = arith.constant 6.400000e+01 : f32
    %293 = vector.broadcast %cst_140 : f32 to vector<16x1xf32>
    %294 = arith.divf %292, %293 : vector<16x1xf32>
    %295 = vector.broadcast %287 : vector<16x1xf32> to vector<16x64xf32>
    %296 = arith.subf %279, %295 : vector<16x64xf32>
    %cst_141 = arith.constant 9.99999974E-6 : f32
    %297 = vector.broadcast %cst_141 : f32 to vector<16x1xf32>
    %298 = arith.addf %294, %297 : vector<16x1xf32>
    %299 = math.rsqrt %298 : vector<16x1xf32>
    %300 = vector.broadcast %299 : vector<16x1xf32> to vector<16x64xf32>
    %301 = arith.mulf %296, %300 : vector<16x64xf32>
    %302 = vector.broadcast %281 : vector<1x64xf32> to vector<16x64xf32>
    %303 = arith.mulf %301, %302 : vector<16x64xf32>
    %304 = vector.broadcast %283 : vector<1x64xf32> to vector<16x64xf32>
    %305 = arith.addf %303, %304 : vector<16x64xf32>
    %c1_142 = arith.constant 1 : index
    %c0_143 = arith.constant 0 : index
    %c0_144 = arith.constant 0 : index
    %306 = vector.load %arg12[%c1_142, %c0_143, %c0_144] : memref<3x64x256xf32, #tpu.memory_space<vmem>>, vector<1x64x256xf32>
    %307 = vector.shape_cast %306 : vector<1x64x256xf32> to vector<64x256xf32>
    %cst_145 = arith.constant dense<0.000000e+00> : vector<16x256xf32>
    %308 = tpu.matmul %305, %307, %cst_145 {dimension_numbers = #tpu.dot_dimension_numbers<[1], [0], [0], [1], [0, 0, 1, 1], [], []>} : vector<16x64xf32>, vector<64x256xf32>, vector<16x256xf32> -> vector<16x256xf32>
    %c1_146 = arith.constant 1 : index
    %c0_147 = arith.constant 0 : index
    %c0_148 = arith.constant 0 : index
    %309 = vector.load %arg13[%c1_146, %c0_147, %c0_148] : memref<3x1x256xf32, #tpu.memory_space<vmem>>, vector<1x1x256xf32>
    %310 = vector.shape_cast %309 : vector<1x1x256xf32> to vector<1x256xf32>
    %311 = vector.broadcast %310 : vector<1x256xf32> to vector<16x256xf32>
    %312 = arith.addf %308, %311 : vector<16x256xf32>
    %cst_149 = arith.constant 5.000000e-01 : f32
    %313 = vector.broadcast %cst_149 : f32 to vector<16x256xf32>
    %314 = arith.mulf %313, %312 : vector<16x256xf32>
    %cst_150 = arith.constant 4.471500e-02 : f32
    %315 = vector.broadcast %cst_150 : f32 to vector<16x256xf32>
    %316 = arith.mulf %315, %312 : vector<16x256xf32>
    %317 = arith.mulf %316, %312 : vector<16x256xf32>
    %318 = arith.mulf %317, %312 : vector<16x256xf32>
    %319 = arith.addf %312, %318 : vector<16x256xf32>
    %cst_151 = arith.constant 0.797884583 : f32
    %320 = vector.broadcast %cst_151 : f32 to vector<16x256xf32>
    %321 = arith.mulf %320, %319 : vector<16x256xf32>
    %322 = math.tanh %321 : vector<16x256xf32>
    %cst_152 = arith.constant 1.000000e+00 : f32
    %323 = vector.broadcast %cst_152 : f32 to vector<16x256xf32>
    %324 = arith.addf %323, %322 : vector<16x256xf32>
    %325 = arith.mulf %314, %324 : vector<16x256xf32>
    %c1_153 = arith.constant 1 : index
    %c0_154 = arith.constant 0 : index
    %c0_155 = arith.constant 0 : index
    %326 = vector.load %arg14[%c1_153, %c0_154, %c0_155] : memref<3x256x64xf32, #tpu.memory_space<vmem>>, vector<1x256x64xf32>
    %327 = vector.shape_cast %326 : vector<1x256x64xf32> to vector<256x64xf32>
    %cst_156 = arith.constant dense<0.000000e+00> : vector<16x64xf32>
    %328 = tpu.matmul %325, %327, %cst_156 {dimension_numbers = #tpu.dot_dimension_numbers<[1], [0], [0], [1], [0, 0, 1, 1], [], []>} : vector<16x256xf32>, vector<256x64xf32>, vector<16x64xf32> -> vector<16x64xf32>
    %c1_157 = arith.constant 1 : index
    %c0_158 = arith.constant 0 : index
    %c0_159 = arith.constant 0 : index
    %329 = vector.load %arg15[%c1_157, %c0_158, %c0_159] : memref<3x1x64xf32, #tpu.memory_space<vmem>>, vector<1x1x64xf32>
    %330 = vector.shape_cast %329 : vector<1x1x64xf32> to vector<1x64xf32>
    %331 = vector.broadcast %330 : vector<1x64xf32> to vector<16x64xf32>
    %332 = arith.addf %328, %331 : vector<16x64xf32>
    %333 = arith.addf %305, %332 : vector<16x64xf32>
    %c1_160 = arith.constant 1 : index
    %c0_161 = arith.constant 0 : index
    %c0_162 = arith.constant 0 : index
    %334 = vector.load %arg18[%c1_160, %c0_161, %c0_162] : memref<3x1x64xf32, #tpu.memory_space<vmem>>, vector<1x1x64xf32>
    %335 = vector.shape_cast %334 : vector<1x1x64xf32> to vector<1x64xf32>
    %c1_163 = arith.constant 1 : index
    %c0_164 = arith.constant 0 : index
    %c0_165 = arith.constant 0 : index
    %336 = vector.load %arg19[%c1_163, %c0_164, %c0_165] : memref<3x1x64xf32, #tpu.memory_space<vmem>>, vector<1x1x64xf32>
    %337 = vector.shape_cast %336 : vector<1x1x64xf32> to vector<1x64xf32>
    %cst_166 = arith.constant dense<0.000000e+00> : vector<16xf32>
    %338 = vector.multi_reduction <add>, %333, %cst_166 [1] : vector<16x64xf32> to vector<16xf32>
    %339 = vector.shape_cast %338 : vector<16xf32> to vector<16x1xf32>
    %cst_167 = arith.constant 6.400000e+01 : f32
    %340 = vector.broadcast %cst_167 : f32 to vector<16x1xf32>
    %341 = arith.divf %339, %340 : vector<16x1xf32>
    %342 = vector.broadcast %341 : vector<16x1xf32> to vector<16x64xf32>
    %343 = arith.subf %333, %342 : vector<16x64xf32>
    %344 = arith.mulf %343, %343 : vector<16x64xf32>
    %cst_168 = arith.constant dense<0.000000e+00> : vector<16xf32>
    %345 = vector.multi_reduction <add>, %344, %cst_168 [1] : vector<16x64xf32> to vector<16xf32>
    %346 = vector.shape_cast %345 : vector<16xf32> to vector<16x1xf32>
    %cst_169 = arith.constant 6.400000e+01 : f32
    %347 = vector.broadcast %cst_169 : f32 to vector<16x1xf32>
    %348 = arith.divf %346, %347 : vector<16x1xf32>
    %349 = vector.broadcast %341 : vector<16x1xf32> to vector<16x64xf32>
    %350 = arith.subf %333, %349 : vector<16x64xf32>
    %cst_170 = arith.constant 9.99999974E-6 : f32
    %351 = vector.broadcast %cst_170 : f32 to vector<16x1xf32>
    %352 = arith.addf %348, %351 : vector<16x1xf32>
    %353 = math.rsqrt %352 : vector<16x1xf32>
    %354 = vector.broadcast %353 : vector<16x1xf32> to vector<16x64xf32>
    %355 = arith.mulf %350, %354 : vector<16x64xf32>
    %356 = vector.broadcast %335 : vector<1x64xf32> to vector<16x64xf32>
    %357 = arith.mulf %355, %356 : vector<16x64xf32>
    %358 = vector.broadcast %337 : vector<1x64xf32> to vector<16x64xf32>
    %359 = arith.addf %357, %358 : vector<16x64xf32>
    %c2 = arith.constant 2 : index
    %c0_171 = arith.constant 0 : index
    %c0_172 = arith.constant 0 : index
    %360 = vector.load %arg4[%c2, %c0_171, %c0_172] : memref<3x64x64xf32, #tpu.memory_space<vmem>>, vector<1x64x64xf32>
    %361 = vector.shape_cast %360 : vector<1x64x64xf32> to vector<64x64xf32>
    %cst_173 = arith.constant dense<0.000000e+00> : vector<16x64xf32>
    %362 = tpu.matmul %359, %361, %cst_173 {dimension_numbers = #tpu.dot_dimension_numbers<[1], [0], [0], [1], [0, 0, 1, 1], [], []>} : vector<16x64xf32>, vector<64x64xf32>, vector<16x64xf32> -> vector<16x64xf32>
    %c2_174 = arith.constant 2 : index
    %c0_175 = arith.constant 0 : index
    %c0_176 = arith.constant 0 : index
    %363 = vector.load %arg5[%c2_174, %c0_175, %c0_176] : memref<3x1x64xf32, #tpu.memory_space<vmem>>, vector<1x1x64xf32>
    %364 = vector.shape_cast %363 : vector<1x1x64xf32> to vector<1x64xf32>
    %365 = vector.broadcast %364 : vector<1x64xf32> to vector<16x64xf32>
    %366 = arith.addf %362, %365 : vector<16x64xf32>
    %c2_177 = arith.constant 2 : index
    %c0_178 = arith.constant 0 : index
    %c0_179 = arith.constant 0 : index
    %367 = vector.load %arg6[%c2_177, %c0_178, %c0_179] : memref<3x64x64xf32, #tpu.memory_space<vmem>>, vector<1x64x64xf32>
    %368 = vector.shape_cast %367 : vector<1x64x64xf32> to vector<64x64xf32>
    %cst_180 = arith.constant dense<0.000000e+00> : vector<16x64xf32>
    %369 = tpu.matmul %359, %368, %cst_180 {dimension_numbers = #tpu.dot_dimension_numbers<[1], [0], [0], [1], [0, 0, 1, 1], [], []>} : vector<16x64xf32>, vector<64x64xf32>, vector<16x64xf32> -> vector<16x64xf32>
    %c2_181 = arith.constant 2 : index
    %c0_182 = arith.constant 0 : index
    %c0_183 = arith.constant 0 : index
    %370 = vector.load %arg7[%c2_181, %c0_182, %c0_183] : memref<3x1x64xf32, #tpu.memory_space<vmem>>, vector<1x1x64xf32>
    %371 = vector.shape_cast %370 : vector<1x1x64xf32> to vector<1x64xf32>
    %372 = vector.broadcast %371 : vector<1x64xf32> to vector<16x64xf32>
    %373 = arith.addf %369, %372 : vector<16x64xf32>
    %c2_184 = arith.constant 2 : index
    %c0_185 = arith.constant 0 : index
    %c0_186 = arith.constant 0 : index
    %374 = vector.load %arg8[%c2_184, %c0_185, %c0_186] : memref<3x64x64xf32, #tpu.memory_space<vmem>>, vector<1x64x64xf32>
    %375 = vector.shape_cast %374 : vector<1x64x64xf32> to vector<64x64xf32>
    %cst_187 = arith.constant dense<0.000000e+00> : vector<16x64xf32>
    %376 = tpu.matmul %359, %375, %cst_187 {dimension_numbers = #tpu.dot_dimension_numbers<[1], [0], [0], [1], [0, 0, 1, 1], [], []>} : vector<16x64xf32>, vector<64x64xf32>, vector<16x64xf32> -> vector<16x64xf32>
    %c2_188 = arith.constant 2 : index
    %c0_189 = arith.constant 0 : index
    %c0_190 = arith.constant 0 : index
    %377 = vector.load %arg9[%c2_188, %c0_189, %c0_190] : memref<3x1x64xf32, #tpu.memory_space<vmem>>, vector<1x1x64xf32>
    %378 = vector.shape_cast %377 : vector<1x1x64xf32> to vector<1x64xf32>
    %379 = vector.broadcast %378 : vector<1x64xf32> to vector<16x64xf32>
    %380 = arith.addf %376, %379 : vector<16x64xf32>
    %381 = vector.shape_cast %366 : vector<16x64xf32> to vector<2x8x64xf32>
    %382 = vector.shape_cast %373 : vector<16x64xf32> to vector<2x8x64xf32>
    %383 = vector.shape_cast %380 : vector<16x64xf32> to vector<2x8x64xf32>
    %384 = vector.extract_strided_slice %381 {offsets = [0, 0, 0], sizes = [2, 8, 16], strides = [1, 1, 1]} : vector<2x8x64xf32> to vector<2x8x16xf32>
    %385 = vector.extract_strided_slice %382 {offsets = [0, 0, 0], sizes = [2, 8, 16], strides = [1, 1, 1]} : vector<2x8x64xf32> to vector<2x8x16xf32>
    %386 = vector.extract_strided_slice %383 {offsets = [0, 0, 0], sizes = [2, 8, 16], strides = [1, 1, 1]} : vector<2x8x64xf32> to vector<2x8x16xf32>
    "tpu.trace_start"() <{level = 10 : i32, message = "bqd,bkd->bqk"}> : () -> ()
    %cst_191 = arith.constant dense<0.000000e+00> : vector<2x8x8xf32>
    %387 = tpu.matmul %384, %385, %cst_191 {dimension_numbers = #tpu.dot_dimension_numbers<[2], [2], [1], [1], [0, 0, 0, 1, 1, 1], [0], [0]>} : vector<2x8x16xf32>, vector<2x8x16xf32>, vector<2x8x8xf32> -> vector<2x8x8xf32>
    "tpu.trace_stop"() : () -> ()
    %cst_192 = arith.constant dense<0xFF800000> : vector<2x8xf32>
    %388 = vector.multi_reduction <maximumf>, %387, %cst_192 [2] : vector<2x8x8xf32> to vector<2x8xf32>
    %389 = vector.shape_cast %388 : vector<2x8xf32> to vector<2x8x1xf32>
    %390 = vector.broadcast %389 : vector<2x8x1xf32> to vector<2x8x8xf32>
    %391 = arith.subf %387, %390 : vector<2x8x8xf32>
    %392 = math.exp %391 : vector<2x8x8xf32>
    %cst_193 = arith.constant dense<0.000000e+00> : vector<2x8xf32>
    %393 = vector.multi_reduction <add>, %392, %cst_193 [2] : vector<2x8x8xf32> to vector<2x8xf32>
    %394 = vector.shape_cast %393 : vector<2x8xf32> to vector<2x8x1xf32>
    %395 = tpu.reciprocal %394 {approx = true} : vector<2x8x1xf32> -> vector<2x8x1xf32>
    %396 = vector.broadcast %395 : vector<2x8x1xf32> to vector<2x8x8xf32>
    %397 = arith.mulf %392, %396 : vector<2x8x8xf32>
    "tpu.trace_start"() <{level = 10 : i32, message = "bqk,bkd->bqd"}> : () -> ()
    %cst_194 = arith.constant dense<0.000000e+00> : vector<2x8x16xf32>
    %398 = tpu.matmul %397, %386, %cst_194 {dimension_numbers = #tpu.dot_dimension_numbers<[2], [1], [1], [2], [0, 0, 0, 1, 1, 2], [0], [0]>} : vector<2x8x8xf32>, vector<2x8x16xf32>, vector<2x8x16xf32> -> vector<2x8x16xf32>
    "tpu.trace_stop"() : () -> ()
    %399 = vector.extract_strided_slice %381 {offsets = [0, 0, 16], sizes = [2, 8, 16], strides = [1, 1, 1]} : vector<2x8x64xf32> to vector<2x8x16xf32>
    %400 = vector.extract_strided_slice %382 {offsets = [0, 0, 16], sizes = [2, 8, 16], strides = [1, 1, 1]} : vector<2x8x64xf32> to vector<2x8x16xf32>
    %401 = vector.extract_strided_slice %383 {offsets = [0, 0, 16], sizes = [2, 8, 16], strides = [1, 1, 1]} : vector<2x8x64xf32> to vector<2x8x16xf32>
    "tpu.trace_start"() <{level = 10 : i32, message = "bqd,bkd->bqk"}> : () -> ()
    %cst_195 = arith.constant dense<0.000000e+00> : vector<2x8x8xf32>
    %402 = tpu.matmul %399, %400, %cst_195 {dimension_numbers = #tpu.dot_dimension_numbers<[2], [2], [1], [1], [0, 0, 0, 1, 1, 1], [0], [0]>} : vector<2x8x16xf32>, vector<2x8x16xf32>, vector<2x8x8xf32> -> vector<2x8x8xf32>
    "tpu.trace_stop"() : () -> ()
    %cst_196 = arith.constant dense<0xFF800000> : vector<2x8xf32>
    %403 = vector.multi_reduction <maximumf>, %402, %cst_196 [2] : vector<2x8x8xf32> to vector<2x8xf32>
    %404 = vector.shape_cast %403 : vector<2x8xf32> to vector<2x8x1xf32>
    %405 = vector.broadcast %404 : vector<2x8x1xf32> to vector<2x8x8xf32>
    %406 = arith.subf %402, %405 : vector<2x8x8xf32>
    %407 = math.exp %406 : vector<2x8x8xf32>
    %cst_197 = arith.constant dense<0.000000e+00> : vector<2x8xf32>
    %408 = vector.multi_reduction <add>, %407, %cst_197 [2] : vector<2x8x8xf32> to vector<2x8xf32>
    %409 = vector.shape_cast %408 : vector<2x8xf32> to vector<2x8x1xf32>
    %410 = tpu.reciprocal %409 {approx = true} : vector<2x8x1xf32> -> vector<2x8x1xf32>
    %411 = vector.broadcast %410 : vector<2x8x1xf32> to vector<2x8x8xf32>
    %412 = arith.mulf %407, %411 : vector<2x8x8xf32>
    "tpu.trace_start"() <{level = 10 : i32, message = "bqk,bkd->bqd"}> : () -> ()
    %cst_198 = arith.constant dense<0.000000e+00> : vector<2x8x16xf32>
    %413 = tpu.matmul %412, %401, %cst_198 {dimension_numbers = #tpu.dot_dimension_numbers<[2], [1], [1], [2], [0, 0, 0, 1, 1, 2], [0], [0]>} : vector<2x8x8xf32>, vector<2x8x16xf32>, vector<2x8x16xf32> -> vector<2x8x16xf32>
    "tpu.trace_stop"() : () -> ()
    %414 = vector.extract_strided_slice %381 {offsets = [0, 0, 32], sizes = [2, 8, 16], strides = [1, 1, 1]} : vector<2x8x64xf32> to vector<2x8x16xf32>
    %415 = vector.extract_strided_slice %382 {offsets = [0, 0, 32], sizes = [2, 8, 16], strides = [1, 1, 1]} : vector<2x8x64xf32> to vector<2x8x16xf32>
    %416 = vector.extract_strided_slice %383 {offsets = [0, 0, 32], sizes = [2, 8, 16], strides = [1, 1, 1]} : vector<2x8x64xf32> to vector<2x8x16xf32>
    "tpu.trace_start"() <{level = 10 : i32, message = "bqd,bkd->bqk"}> : () -> ()
    %cst_199 = arith.constant dense<0.000000e+00> : vector<2x8x8xf32>
    %417 = tpu.matmul %414, %415, %cst_199 {dimension_numbers = #tpu.dot_dimension_numbers<[2], [2], [1], [1], [0, 0, 0, 1, 1, 1], [0], [0]>} : vector<2x8x16xf32>, vector<2x8x16xf32>, vector<2x8x8xf32> -> vector<2x8x8xf32>
    "tpu.trace_stop"() : () -> ()
    %cst_200 = arith.constant dense<0xFF800000> : vector<2x8xf32>
    %418 = vector.multi_reduction <maximumf>, %417, %cst_200 [2] : vector<2x8x8xf32> to vector<2x8xf32>
    %419 = vector.shape_cast %418 : vector<2x8xf32> to vector<2x8x1xf32>
    %420 = vector.broadcast %419 : vector<2x8x1xf32> to vector<2x8x8xf32>
    %421 = arith.subf %417, %420 : vector<2x8x8xf32>
    %422 = math.exp %421 : vector<2x8x8xf32>
    %cst_201 = arith.constant dense<0.000000e+00> : vector<2x8xf32>
    %423 = vector.multi_reduction <add>, %422, %cst_201 [2] : vector<2x8x8xf32> to vector<2x8xf32>
    %424 = vector.shape_cast %423 : vector<2x8xf32> to vector<2x8x1xf32>
    %425 = tpu.reciprocal %424 {approx = true} : vector<2x8x1xf32> -> vector<2x8x1xf32>
    %426 = vector.broadcast %425 : vector<2x8x1xf32> to vector<2x8x8xf32>
    %427 = arith.mulf %422, %426 : vector<2x8x8xf32>
    "tpu.trace_start"() <{level = 10 : i32, message = "bqk,bkd->bqd"}> : () -> ()
    %cst_202 = arith.constant dense<0.000000e+00> : vector<2x8x16xf32>
    %428 = tpu.matmul %427, %416, %cst_202 {dimension_numbers = #tpu.dot_dimension_numbers<[2], [1], [1], [2], [0, 0, 0, 1, 1, 2], [0], [0]>} : vector<2x8x8xf32>, vector<2x8x16xf32>, vector<2x8x16xf32> -> vector<2x8x16xf32>
    "tpu.trace_stop"() : () -> ()
    %429 = vector.extract_strided_slice %381 {offsets = [0, 0, 48], sizes = [2, 8, 16], strides = [1, 1, 1]} : vector<2x8x64xf32> to vector<2x8x16xf32>
    %430 = vector.extract_strided_slice %382 {offsets = [0, 0, 48], sizes = [2, 8, 16], strides = [1, 1, 1]} : vector<2x8x64xf32> to vector<2x8x16xf32>
    %431 = vector.extract_strided_slice %383 {offsets = [0, 0, 48], sizes = [2, 8, 16], strides = [1, 1, 1]} : vector<2x8x64xf32> to vector<2x8x16xf32>
    "tpu.trace_start"() <{level = 10 : i32, message = "bqd,bkd->bqk"}> : () -> ()
    %cst_203 = arith.constant dense<0.000000e+00> : vector<2x8x8xf32>
    %432 = tpu.matmul %429, %430, %cst_203 {dimension_numbers = #tpu.dot_dimension_numbers<[2], [2], [1], [1], [0, 0, 0, 1, 1, 1], [0], [0]>} : vector<2x8x16xf32>, vector<2x8x16xf32>, vector<2x8x8xf32> -> vector<2x8x8xf32>
    "tpu.trace_stop"() : () -> ()
    %cst_204 = arith.constant dense<0xFF800000> : vector<2x8xf32>
    %433 = vector.multi_reduction <maximumf>, %432, %cst_204 [2] : vector<2x8x8xf32> to vector<2x8xf32>
    %434 = vector.shape_cast %433 : vector<2x8xf32> to vector<2x8x1xf32>
    %435 = vector.broadcast %434 : vector<2x8x1xf32> to vector<2x8x8xf32>
    %436 = arith.subf %432, %435 : vector<2x8x8xf32>
    %437 = math.exp %436 : vector<2x8x8xf32>
    %cst_205 = arith.constant dense<0.000000e+00> : vector<2x8xf32>
    %438 = vector.multi_reduction <add>, %437, %cst_205 [2] : vector<2x8x8xf32> to vector<2x8xf32>
    %439 = vector.shape_cast %438 : vector<2x8xf32> to vector<2x8x1xf32>
    %440 = tpu.reciprocal %439 {approx = true} : vector<2x8x1xf32> -> vector<2x8x1xf32>
    %441 = vector.broadcast %440 : vector<2x8x1xf32> to vector<2x8x8xf32>
    %442 = arith.mulf %437, %441 : vector<2x8x8xf32>
    "tpu.trace_start"() <{level = 10 : i32, message = "bqk,bkd->bqd"}> : () -> ()
    %cst_206 = arith.constant dense<0.000000e+00> : vector<2x8x16xf32>
    %443 = tpu.matmul %442, %431, %cst_206 {dimension_numbers = #tpu.dot_dimension_numbers<[2], [1], [1], [2], [0, 0, 0, 1, 1, 2], [0], [0]>} : vector<2x8x8xf32>, vector<2x8x16xf32>, vector<2x8x16xf32> -> vector<2x8x16xf32>
    "tpu.trace_stop"() : () -> ()
    %444 = tpu.concatenate %398, %413, %428, %443 in 2 : vector<2x8x16xf32>, vector<2x8x16xf32>, vector<2x8x16xf32>, vector<2x8x16xf32> -> vector<2x8x64xf32>
    %445 = vector.shape_cast %444 : vector<2x8x64xf32> to vector<16x64xf32>
    %c2_207 = arith.constant 2 : index
    %c0_208 = arith.constant 0 : index
    %c0_209 = arith.constant 0 : index
    %446 = vector.load %arg10[%c2_207, %c0_208, %c0_209] : memref<3x64x64xf32, #tpu.memory_space<vmem>>, vector<1x64x64xf32>
    %447 = vector.shape_cast %446 : vector<1x64x64xf32> to vector<64x64xf32>
    %cst_210 = arith.constant dense<0.000000e+00> : vector<16x64xf32>
    %448 = tpu.matmul %445, %447, %cst_210 {dimension_numbers = #tpu.dot_dimension_numbers<[1], [0], [0], [1], [0, 0, 1, 1], [], []>} : vector<16x64xf32>, vector<64x64xf32>, vector<16x64xf32> -> vector<16x64xf32>
    %c2_211 = arith.constant 2 : index
    %c0_212 = arith.constant 0 : index
    %c0_213 = arith.constant 0 : index
    %449 = vector.load %arg11[%c2_211, %c0_212, %c0_213] : memref<3x1x64xf32, #tpu.memory_space<vmem>>, vector<1x1x64xf32>
    %450 = vector.shape_cast %449 : vector<1x1x64xf32> to vector<1x64xf32>
    %451 = vector.broadcast %450 : vector<1x64xf32> to vector<16x64xf32>
    %452 = arith.addf %448, %451 : vector<16x64xf32>
    %453 = arith.addf %359, %452 : vector<16x64xf32>
    %c2_214 = arith.constant 2 : index
    %c0_215 = arith.constant 0 : index
    %c0_216 = arith.constant 0 : index
    %454 = vector.load %arg16[%c2_214, %c0_215, %c0_216] : memref<3x1x64xf32, #tpu.memory_space<vmem>>, vector<1x1x64xf32>
    %455 = vector.shape_cast %454 : vector<1x1x64xf32> to vector<1x64xf32>
    %c2_217 = arith.constant 2 : index
    %c0_218 = arith.constant 0 : index
    %c0_219 = arith.constant 0 : index
    %456 = vector.load %arg17[%c2_217, %c0_218, %c0_219] : memref<3x1x64xf32, #tpu.memory_space<vmem>>, vector<1x1x64xf32>
    %457 = vector.shape_cast %456 : vector<1x1x64xf32> to vector<1x64xf32>
    %cst_220 = arith.constant dense<0.000000e+00> : vector<16xf32>
    %458 = vector.multi_reduction <add>, %453, %cst_220 [1] : vector<16x64xf32> to vector<16xf32>
    %459 = vector.shape_cast %458 : vector<16xf32> to vector<16x1xf32>
    %cst_221 = arith.constant 6.400000e+01 : f32
    %460 = vector.broadcast %cst_221 : f32 to vector<16x1xf32>
    %461 = arith.divf %459, %460 : vector<16x1xf32>
    %462 = vector.broadcast %461 : vector<16x1xf32> to vector<16x64xf32>
    %463 = arith.subf %453, %462 : vector<16x64xf32>
    %464 = arith.mulf %463, %463 : vector<16x64xf32>
    %cst_222 = arith.constant dense<0.000000e+00> : vector<16xf32>
    %465 = vector.multi_reduction <add>, %464, %cst_222 [1] : vector<16x64xf32> to vector<16xf32>
    %466 = vector.shape_cast %465 : vector<16xf32> to vector<16x1xf32>
    %cst_223 = arith.constant 6.400000e+01 : f32
    %467 = vector.broadcast %cst_223 : f32 to vector<16x1xf32>
    %468 = arith.divf %466, %467 : vector<16x1xf32>
    %469 = vector.broadcast %461 : vector<16x1xf32> to vector<16x64xf32>
    %470 = arith.subf %453, %469 : vector<16x64xf32>
    %cst_224 = arith.constant 9.99999974E-6 : f32
    %471 = vector.broadcast %cst_224 : f32 to vector<16x1xf32>
    %472 = arith.addf %468, %471 : vector<16x1xf32>
    %473 = math.rsqrt %472 : vector<16x1xf32>
    %474 = vector.broadcast %473 : vector<16x1xf32> to vector<16x64xf32>
    %475 = arith.mulf %470, %474 : vector<16x64xf32>
    %476 = vector.broadcast %455 : vector<1x64xf32> to vector<16x64xf32>
    %477 = arith.mulf %475, %476 : vector<16x64xf32>
    %478 = vector.broadcast %457 : vector<1x64xf32> to vector<16x64xf32>
    %479 = arith.addf %477, %478 : vector<16x64xf32>
    %c2_225 = arith.constant 2 : index
    %c0_226 = arith.constant 0 : index
    %c0_227 = arith.constant 0 : index
    %480 = vector.load %arg12[%c2_225, %c0_226, %c0_227] : memref<3x64x256xf32, #tpu.memory_space<vmem>>, vector<1x64x256xf32>
    %481 = vector.shape_cast %480 : vector<1x64x256xf32> to vector<64x256xf32>
    %cst_228 = arith.constant dense<0.000000e+00> : vector<16x256xf32>
    %482 = tpu.matmul %479, %481, %cst_228 {dimension_numbers = #tpu.dot_dimension_numbers<[1], [0], [0], [1], [0, 0, 1, 1], [], []>} : vector<16x64xf32>, vector<64x256xf32>, vector<16x256xf32> -> vector<16x256xf32>
    %c2_229 = arith.constant 2 : index
    %c0_230 = arith.constant 0 : index
    %c0_231 = arith.constant 0 : index
    %483 = vector.load %arg13[%c2_229, %c0_230, %c0_231] : memref<3x1x256xf32, #tpu.memory_space<vmem>>, vector<1x1x256xf32>
    %484 = vector.shape_cast %483 : vector<1x1x256xf32> to vector<1x256xf32>
    %485 = vector.broadcast %484 : vector<1x256xf32> to vector<16x256xf32>
    %486 = arith.addf %482, %485 : vector<16x256xf32>
    %cst_232 = arith.constant 5.000000e-01 : f32
    %487 = vector.broadcast %cst_232 : f32 to vector<16x256xf32>
    %488 = arith.mulf %487, %486 : vector<16x256xf32>
    %cst_233 = arith.constant 4.471500e-02 : f32
    %489 = vector.broadcast %cst_233 : f32 to vector<16x256xf32>
    %490 = arith.mulf %489, %486 : vector<16x256xf32>
    %491 = arith.mulf %490, %486 : vector<16x256xf32>
    %492 = arith.mulf %491, %486 : vector<16x256xf32>
    %493 = arith.addf %486, %492 : vector<16x256xf32>
    %cst_234 = arith.constant 0.797884583 : f32
    %494 = vector.broadcast %cst_234 : f32 to vector<16x256xf32>
    %495 = arith.mulf %494, %493 : vector<16x256xf32>
    %496 = math.tanh %495 : vector<16x256xf32>
    %cst_235 = arith.constant 1.000000e+00 : f32
    %497 = vector.broadcast %cst_235 : f32 to vector<16x256xf32>
    %498 = arith.addf %497, %496 : vector<16x256xf32>
    %499 = arith.mulf %488, %498 : vector<16x256xf32>
    %c2_236 = arith.constant 2 : index
    %c0_237 = arith.constant 0 : index
    %c0_238 = arith.constant 0 : index
    %500 = vector.load %arg14[%c2_236, %c0_237, %c0_238] : memref<3x256x64xf32, #tpu.memory_space<vmem>>, vector<1x256x64xf32>
    %501 = vector.shape_cast %500 : vector<1x256x64xf32> to vector<256x64xf32>
    %cst_239 = arith.constant dense<0.000000e+00> : vector<16x64xf32>
    %502 = tpu.matmul %499, %501, %cst_239 {dimension_numbers = #tpu.dot_dimension_numbers<[1], [0], [0], [1], [0, 0, 1, 1], [], []>} : vector<16x256xf32>, vector<256x64xf32>, vector<16x64xf32> -> vector<16x64xf32>
    %c2_240 = arith.constant 2 : index
    %c0_241 = arith.constant 0 : index
    %c0_242 = arith.constant 0 : index
    %503 = vector.load %arg15[%c2_240, %c0_241, %c0_242] : memref<3x1x64xf32, #tpu.memory_space<vmem>>, vector<1x1x64xf32>
    %504 = vector.shape_cast %503 : vector<1x1x64xf32> to vector<1x64xf32>
    %505 = vector.broadcast %504 : vector<1x64xf32> to vector<16x64xf32>
    %506 = arith.addf %502, %505 : vector<16x64xf32>
    %507 = arith.addf %479, %506 : vector<16x64xf32>
    %c2_243 = arith.constant 2 : index
    %c0_244 = arith.constant 0 : index
    %c0_245 = arith.constant 0 : index
    %508 = vector.load %arg18[%c2_243, %c0_244, %c0_245] : memref<3x1x64xf32, #tpu.memory_space<vmem>>, vector<1x1x64xf32>
    %509 = vector.shape_cast %508 : vector<1x1x64xf32> to vector<1x64xf32>
    %c2_246 = arith.constant 2 : index
    %c0_247 = arith.constant 0 : index
    %c0_248 = arith.constant 0 : index
    %510 = vector.load %arg19[%c2_246, %c0_247, %c0_248] : memref<3x1x64xf32, #tpu.memory_space<vmem>>, vector<1x1x64xf32>
    %511 = vector.shape_cast %510 : vector<1x1x64xf32> to vector<1x64xf32>
    %cst_249 = arith.constant dense<0.000000e+00> : vector<16xf32>
    %512 = vector.multi_reduction <add>, %507, %cst_249 [1] : vector<16x64xf32> to vector<16xf32>
    %513 = vector.shape_cast %512 : vector<16xf32> to vector<16x1xf32>
    %cst_250 = arith.constant 6.400000e+01 : f32
    %514 = vector.broadcast %cst_250 : f32 to vector<16x1xf32>
    %515 = arith.divf %513, %514 : vector<16x1xf32>
    %516 = vector.broadcast %515 : vector<16x1xf32> to vector<16x64xf32>
    %517 = arith.subf %507, %516 : vector<16x64xf32>
    %518 = arith.mulf %517, %517 : vector<16x64xf32>
    %cst_251 = arith.constant dense<0.000000e+00> : vector<16xf32>
    %519 = vector.multi_reduction <add>, %518, %cst_251 [1] : vector<16x64xf32> to vector<16xf32>
    %520 = vector.shape_cast %519 : vector<16xf32> to vector<16x1xf32>
    %cst_252 = arith.constant 6.400000e+01 : f32
    %521 = vector.broadcast %cst_252 : f32 to vector<16x1xf32>
    %522 = arith.divf %520, %521 : vector<16x1xf32>
    %523 = vector.broadcast %515 : vector<16x1xf32> to vector<16x64xf32>
    %524 = arith.subf %507, %523 : vector<16x64xf32>
    %cst_253 = arith.constant 9.99999974E-6 : f32
    %525 = vector.broadcast %cst_253 : f32 to vector<16x1xf32>
    %526 = arith.addf %522, %525 : vector<16x1xf32>
    %527 = math.rsqrt %526 : vector<16x1xf32>
    %528 = vector.broadcast %527 : vector<16x1xf32> to vector<16x64xf32>
    %529 = arith.mulf %524, %528 : vector<16x64xf32>
    %530 = vector.broadcast %509 : vector<1x64xf32> to vector<16x64xf32>
    %531 = arith.mulf %529, %530 : vector<16x64xf32>
    %532 = vector.broadcast %511 : vector<1x64xf32> to vector<16x64xf32>
    %533 = arith.addf %531, %532 : vector<16x64xf32>
    %534 = vector.shape_cast %533 : vector<16x64xf32> to vector<2x8x64xf32>
    %535 = vector.extract_strided_slice %534 {offsets = [0, 7, 0], sizes = [2, 1, 64], strides = [1, 1, 1]} : vector<2x8x64xf32> to vector<2x1x64xf32>
    %536 = vector.shape_cast %535 : vector<2x1x64xf32> to vector<2x64xf32>
    %c0_254 = arith.constant 0 : index
    %c0_255 = arith.constant 0 : index
    %537 = vector.load %arg20[%c0_254, %c0_255] : memref<64x64xf32, #tpu.memory_space<vmem>>, vector<64x64xf32>
    %cst_256 = arith.constant dense<0.000000e+00> : vector<2x64xf32>
    %538 = tpu.matmul %536, %537, %cst_256 {dimension_numbers = #tpu.dot_dimension_numbers<[1], [0], [0], [1], [0, 0, 1, 1], [], []>} : vector<2x64xf32>, vector<64x64xf32>, vector<2x64xf32> -> vector<2x64xf32>
    %c0_257 = arith.constant 0 : index
    %c0_258 = arith.constant 0 : index
    %539 = vector.load %arg21[%c0_257, %c0_258] : memref<1x64xf32, #tpu.memory_space<vmem>>, vector<1x64xf32>
    %540 = vector.broadcast %539 : vector<1x64xf32> to vector<2x64xf32>
    %541 = arith.addf %538, %540 : vector<2x64xf32>
    %cst_259 = arith.constant 0.000000e+00 : f32
    %542 = vector.broadcast %cst_259 : f32 to vector<2x64xf32>
    %543 = arith.maximumf %541, %542 : vector<2x64xf32>
    %c0_260 = arith.constant 0 : index
    %c0_261 = arith.constant 0 : index
    %544 = vector.load %arg22[%c0_260, %c0_261] : memref<64x128xf32, #tpu.memory_space<vmem>>, vector<64x128xf32>
    %cst_262 = arith.constant dense<0.000000e+00> : vector<2x128xf32>
    %545 = tpu.matmul %543, %544, %cst_262 {dimension_numbers = #tpu.dot_dimension_numbers<[1], [0], [0], [1], [0, 0, 1, 1], [], []>} : vector<2x64xf32>, vector<64x128xf32>, vector<2x128xf32> -> vector<2x128xf32>
    %c0_263 = arith.constant 0 : index
    %c0_264 = arith.constant 0 : index
    %546 = vector.load %arg23[%c0_263, %c0_264] : memref<1x128xf32, #tpu.memory_space<vmem>>, vector<1x128xf32>
    %547 = vector.broadcast %546 : vector<1x128xf32> to vector<2x128xf32>
    %548 = arith.addf %545, %547 : vector<2x128xf32>
    %c0_265 = arith.constant 0 : index
    %c0_266 = arith.constant 0 : index
    %549 = vector.load %arg24[%c0_265, %c0_266] : memref<2x128xf32, #tpu.memory_space<vmem>>, vector<2x128xf32>
    tpu.vector_store %arg24[%c0_265, %c0_266], %548 {strides = array<i32>} : memref<2x128xf32, #tpu.memory_space<vmem>>, vector<2x128xf32>,
    return
  }
  func.func @transform_0(%arg0: i32) -> (i32, i32) {
    %c0_i32 = arith.constant 0 : i32
    %c0_i32_0 = arith.constant 0 : i32
    return %arg0, %c0_i32 : i32, i32
  }
  func.func @transform_1(%arg0: i32) -> (i32, i32) {
    %c0_i32 = arith.constant 0 : i32
    %c0_i32_0 = arith.constant 0 : i32
    %c0_i32_1 = arith.constant 0 : i32
    return %c0_i32, %c0_i32_0 : i32, i32
  }
  func.func @transform_2(%arg0: i32) -> (i32, i32) {
    %c0_i32 = arith.constant 0 : i32
    %c0_i32_0 = arith.constant 0 : i32
    %c0_i32_1 = arith.constant 0 : i32
    return %c0_i32, %c0_i32_0 : i32, i32
  }
  func.func @transform_3(%arg0: i32) -> (i32, i32, i32) {
    %c0_i32 = arith.constant 0 : i32
    %c0_i32_0 = arith.constant 0 : i32
    %c0_i32_1 = arith.constant 0 : i32
    %c0_i32_2 = arith.constant 0 : i32
    return %c0_i32, %c0_i32_0, %c0_i32_1 : i32, i32, i32
  }
  func.func @transform_4(%arg0: i32) -> (i32, i32, i32) {
    %c0_i32 = arith.constant 0 : i32
    %c0_i32_0 = arith.constant 0 : i32
    %c0_i32_1 = arith.constant 0 : i32
    %c0_i32_2 = arith.constant 0 : i32
    return %c0_i32, %c0_i32_0, %c0_i32_1 : i32, i32, i32
  }
  func.func @transform_5(%arg0: i32) -> (i32, i32, i32) {
    %c0_i32 = arith.constant 0 : i32
    %c0_i32_0 = arith.constant 0 : i32
    %c0_i32_1 = arith.constant 0 : i32
    %c0_i32_2 = arith.constant 0 : i32
    return %c0_i32, %c0_i32_0, %c0_i32_1 : i32, i32, i32
  }
  func.func @transform_6(%arg0: i32) -> (i32, i32, i32) {
    %c0_i32 = arith.constant 0 : i32
    %c0_i32_0 = arith.constant 0 : i32
    %c0_i32_1 = arith.constant 0 : i32
    %c0_i32_2 = arith.constant 0 : i32
    return %c0_i32, %c0_i32_0, %c0_i32_1 : i32, i32, i32
  }
  func.func @transform_7(%arg0: i32) -> (i32, i32, i32) {
    %c0_i32 = arith.constant 0 : i32
    %c0_i32_0 = arith.constant 0 : i32
    %c0_i32_1 = arith.constant 0 : i32
    %c0_i32_2 = arith.constant 0 : i32
    return %c0_i32, %c0_i32_0, %c0_i32_1 : i32, i32, i32
  }
  func.func @transform_8(%arg0: i32) -> (i32, i32, i32) {
    %c0_i32 = arith.constant 0 : i32
    %c0_i32_0 = arith.constant 0 : i32
    %c0_i32_1 = arith.constant 0 : i32
    %c0_i32_2 = arith.constant 0 : i32
    return %c0_i32, %c0_i32_0, %c0_i32_1 : i32, i32, i32
  }
  func.func @transform_9(%arg0: i32) -> (i32, i32, i32) {
    %c0_i32 = arith.constant 0 : i32
    %c0_i32_0 = arith.constant 0 : i32
    %c0_i32_1 = arith.constant 0 : i32
    %c0_i32_2 = arith.constant 0 : i32
    return %c0_i32, %c0_i32_0, %c0_i32_1 : i32, i32, i32
  }
  func.func @transform_10(%arg0: i32) -> (i32, i32, i32) {
    %c0_i32 = arith.constant 0 : i32
    %c0_i32_0 = arith.constant 0 : i32
    %c0_i32_1 = arith.constant 0 : i32
    %c0_i32_2 = arith.constant 0 : i32
    return %c0_i32, %c0_i32_0, %c0_i32_1 : i32, i32, i32
  }
  func.func @transform_11(%arg0: i32) -> (i32, i32, i32) {
    %c0_i32 = arith.constant 0 : i32
    %c0_i32_0 = arith.constant 0 : i32
    %c0_i32_1 = arith.constant 0 : i32
    %c0_i32_2 = arith.constant 0 : i32
    return %c0_i32, %c0_i32_0, %c0_i32_1 : i32, i32, i32
  }
  func.func @transform_12(%arg0: i32) -> (i32, i32, i32) {
    %c0_i32 = arith.constant 0 : i32
    %c0_i32_0 = arith.constant 0 : i32
    %c0_i32_1 = arith.constant 0 : i32
    %c0_i32_2 = arith.constant 0 : i32
    return %c0_i32, %c0_i32_0, %c0_i32_1 : i32, i32, i32
  }
  func.func @transform_13(%arg0: i32) -> (i32, i32, i32) {
    %c0_i32 = arith.constant 0 : i32
    %c0_i32_0 = arith.constant 0 : i32
    %c0_i32_1 = arith.constant 0 : i32
    %c0_i32_2 = arith.constant 0 : i32
    return %c0_i32, %c0_i32_0, %c0_i32_1 : i32, i32, i32
  }
  func.func @transform_14(%arg0: i32) -> (i32, i32, i32) {
    %c0_i32 = arith.constant 0 : i32
    %c0_i32_0 = arith.constant 0 : i32
    %c0_i32_1 = arith.constant 0 : i32
    %c0_i32_2 = arith.constant 0 : i32
    return %c0_i32, %c0_i32_0, %c0_i32_1 : i32, i32, i32
  }
  func.func @transform_15(%arg0: i32) -> (i32, i32, i32) {
    %c0_i32 = arith.constant 0 : i32
    %c0_i32_0 = arith.constant 0 : i32
    %c0_i32_1 = arith.constant 0 : i32
    %c0_i32_2 = arith.constant 0 : i32
    return %c0_i32, %c0_i32_0, %c0_i32_1 : i32, i32, i32
  }
  func.func @transform_16(%arg0: i32) -> (i32, i32, i32) {
    %c0_i32 = arith.constant 0 : i32
    %c0_i32_0 = arith.constant 0 : i32
    %c0_i32_1 = arith.constant 0 : i32
    %c0_i32_2 = arith.constant 0 : i32
    return %c0_i32, %c0_i32_0, %c0_i32_1 : i32, i32, i32
  }
  func.func @transform_17(%arg0: i32) -> (i32, i32, i32) {
    %c0_i32 = arith.constant 0 : i32
    %c0_i32_0 = arith.constant 0 : i32
    %c0_i32_1 = arith.constant 0 : i32
    %c0_i32_2 = arith.constant 0 : i32
    return %c0_i32, %c0_i32_0, %c0_i32_1 : i32, i32, i32
  }
  func.func @transform_18(%arg0: i32) -> (i32, i32, i32) {
    %c0_i32 = arith.constant 0 : i32
    %c0_i32_0 = arith.constant 0 : i32
    %c0_i32_1 = arith.constant 0 : i32
    %c0_i32_2 = arith.constant 0 : i32
    return %c0_i32, %c0_i32_0, %c0_i32_1 : i32, i32, i32
  }
  func.func @transform_19(%arg0: i32) -> (i32, i32) {
    %c0_i32 = arith.constant 0 : i32
    %c0_i32_0 = arith.constant 0 : i32
    %c0_i32_1 = arith.constant 0 : i32
    return %c0_i32, %c0_i32_0 : i32, i32
  }
  func.func @transform_20(%arg0: i32) -> (i32, i32) {
    %c0_i32 = arith.constant 0 : i32
    %c0_i32_0 = arith.constant 0 : i32
    %c0_i32_1 = arith.constant 0 : i32
    return %c0_i32, %c0_i32_0 : i32, i32
  }
  func.func @transform_21(%arg0: i32) -> (i32, i32) {
    %c0_i32 = arith.constant 0 : i32
    %c0_i32_0 = arith.constant 0 : i32
    %c0_i32_1 = arith.constant 0 : i32
    return %c0_i32, %c0_i32_0 : i32, i32
  }
  func.func @transform_22(%arg0: i32) -> (i32, i32) {
    %c0_i32 = arith.constant 0 : i32
    %c0_i32_0 = arith.constant 0 : i32
    %c0_i32_1 = arith.constant 0 : i32
    return %c0_i32, %c0_i32_0 : i32, i32
  }
  func.func @transform_23(%arg0: i32) -> (i32, i32) {
    %c0_i32 = arith.constant 0 : i32
    %c0_i32_0 = arith.constant 0 : i32
    return %arg0, %c0_i32 : i32, i32
  }
}

</mosaic_0001>

<llo_original>
// kernel: tpu_custom_call.1
$region0: #{tpu_custom_call.1}
  #allocation0 [shape = 'u32[]', space=smem, size = 0x4, offset = 0x4, fixed_abs, tag = 'smem constant byte address 0x4 - core index']
  #allocation1 [shape = 'u32[72,128]{1,0:T(1,128)}', space=vmem, size = 0x9000, scoped, tag = 'internal scratch']
  %s0 = inlined_call_operand.hbm [shape: f32[2,8], index: 0, kind: input, shape index: {}]
  %s1 = inlined_call_operand.hbm [shape: f32[1,64], index: 1, kind: input, shape index: {}]
  %s2 = inlined_call_operand.hbm [shape: f32[8,64], index: 2, kind: input, shape index: {}]
  %s3 = inlined_call_operand.vmem [shape: f32[3,64,64], index: 3, kind: input, shape index: {}]
  %s4 = inlined_call_operand.hbm [shape: f32[3,1,64], index: 4, kind: input, shape index: {}]
  %s5 = inlined_call_operand.vmem [shape: f32[3,64,64], index: 5, kind: input, shape index: {}]
  %s6 = inlined_call_operand.hbm [shape: f32[3,1,64], index: 6, kind: input, shape index: {}]
  %s7 = inlined_call_operand.vmem [shape: f32[3,64,64], index: 7, kind: input, shape index: {}]
  %s8 = inlined_call_operand.hbm [shape: f32[3,1,64], index: 8, kind: input, shape index: {}]
  %s9 = inlined_call_operand.vmem [shape: f32[3,64,64], index: 9, kind: input, shape index: {}]
  %s10 = inlined_call_operand.hbm [shape: f32[3,1,64], index: 10, kind: input, shape index: {}]
  %s11 = inlined_call_operand.vmem [shape: f32[3,64,256], index: 11, kind: input, shape index: {}]
  %s12 = inlined_call_operand.hbm [shape: f32[3,1,256], index: 12, kind: input, shape index: {}]
  %s13 = inlined_call_operand.vmem [shape: f32[3,256,64], index: 13, kind: input, shape index: {}]
  %s14 = inlined_call_operand.vmem [shape: f32[3,1,64], index: 14, kind: input, shape index: {}]
  %s15 = inlined_call_operand.vmem [shape: f32[3,1,64], index: 15, kind: input, shape index: {}]
  %s16 = inlined_call_operand.vmem [shape: f32[3,1,64], index: 16, kind: input, shape index: {}]
  %s17 = inlined_call_operand.vmem [shape: f32[3,1,64], index: 17, kind: input, shape index: {}]
  %s18 = inlined_call_operand.hbm [shape: f32[3,1,64], index: 18, kind: input, shape index: {}]
  %s19 = inlined_call_operand.hbm [shape: f32[64,64], index: 19, kind: input, shape index: {}]
  %s20 = inlined_call_operand.hbm [shape: f32[1,64], index: 20, kind: input, shape index: {}]
  %s21 = inlined_call_operand.hbm [shape: f32[64,128], index: 21, kind: input, shape index: {}]
  %s22 = inlined_call_operand.hbm [shape: f32[1,128], index: 22, kind: input, shape index: {}]
  %s23 = inlined_call_operand.hbm [shape: f32[2,128], index: 23, kind: output, shape index: {}]
  %s24 = sld [smem:[#allocation0]]
  $region154: #{tpu_custom_call.1} parent=0
    _
  %s26 = ssub.s32 1, %s24
  %s27 = scalar_select 0, %s26, %s24
  $region1: #{tpu_custom_call.1} parent=0
    #allocation2 [shape = 'u8[1024]{0}', space=vmem, size = 0x400, scoped, tag = 'input window, operand 0, single buffered']
    #allocation3 [shape = 's32[1]{0}', space=sflag, size = 0x4, scoped, tag = 'scoped memory for tpu_custom_call.1']
    #allocation4 [shape = 's32[1]{0}', space=sflag, size = 0x4, scoped, tag = 'scoped memory for tpu_custom_call.1']
    #allocation5 [shape = 'u8[512]{0}', space=vmem, size = 0x400, scoped, tag = 'input window, operand 1, single buffered']
    #allocation6 [shape = 's32[1]{0}', space=sflag, size = 0x4, scoped, tag = 'scoped memory for tpu_custom_call.1']
    #allocation7 [shape = 'u8[4096]{0}', space=vmem, size = 0x1000, scoped, tag = 'input window, operand 2, single buffered']
    #allocation8 [shape = 'u8[1536]{0}', space=vmem, size = 0x800, scoped, tag = 'input window, operand 4, single buffered']
    #allocation9 [shape = 's32[1]{0}', space=sflag, size = 0x4, scoped, tag = 'scoped memory for tpu_custom_call.1']
    #allocation10 [shape = 'u8[1536]{0}', space=vmem, size = 0x800, scoped, tag = 'input window, operand 6, single buffered']
    #allocation11 [shape = 'u8[1536]{0}', space=vmem, size = 0x800, scoped, tag = 'input window, operand 8, single buffered']
    #allocation12 [shape = 's32[1]{0}', space=sflag, size = 0x4, scoped, tag = 'scoped memory for tpu_custom_call.1']
    #allocation13 [shape = 'u8[1536]{0}', space=vmem, size = 0x800, scoped, tag = 'input window, operand 10, single buffered']
    #allocation14 [shape = 'u8[3072]{0}', space=vmem, size = 0xc00, scoped, tag = 'input window, operand 12, single buffered']
    #allocation15 [shape = 's32[1]{0}', space=sflag, size = 0x4, scoped, tag = 'scoped memory for tpu_custom_call.1']
    #allocation16 [shape = 'u8[1536]{0}', space=vmem, size = 0x800, scoped, tag = 'input window, operand 18, single buffered']
    #allocation17 [shape = 'u8[32768]{0}', space=vmem, size = 0x8000, scoped, tag = 'input window, operand 19, single buffered']
    #allocation18 [shape = 's32[1]{0}', space=sflag, size = 0x4, scoped, tag = 'scoped memory for tpu_custom_call.1']
    #allocation19 [shape = 'u8[512]{0}', space=vmem, size = 0x400, scoped, tag = 'input window, operand 20, single buffered']
    #allocation20 [shape = 'u8[32768]{0}', space=vmem, size = 0x8000, scoped, tag = 'input window, operand 21, single buffered']
    #allocation21 [shape = 's32[1]{0}', space=sflag, size = 0x4, scoped, tag = 'scoped memory for tpu_custom_call.1']
    #allocation22 [shape = 'u8[512]{0}', space=vmem, size = 0x400, scoped, tag = 'input window, operand 22, single buffered']
    #allocation23 [shape = 'u8[1024]{0}', space=vmem, size = 0x400, scoped, tag = 'output window, operand 0, single buffered']
    %28 = vsyncpa [#allocation3], 0
    %29 = vsyncpa [#allocation6], 0
    %30 = vsyncpa [#allocation9], 0
    %31 = vsyncpa [#allocation12], 0
    %32 = vsyncpa [#allocation15], 0
    %33 = vsyncpa [#allocation18], 0
    %34 = vsyncpa [#allocation21], 0
    %35 = vsyncpa [#allocation4], 0
    // Predicated region
    $region2: #{tpu_custom_call.1} parent=1 // pred_check
      _
    $region3: #{tpu_custom_call.1} parent=1 // pred_check_branch
      %37 = sbr.rel (0) target = $region5
    $region4: #{tpu_custom_call.1} parent=1 // pred_region
      %39 = vsyncadd [#allocation3], 0
      %s41 = sshll.u32 %s0, 4
      %s42 = int_to_ptr.hbm [resolvable:$true] %s41
      %s43 = sshll.u32 [#allocation2], 4
      %s44 = int_to_ptr.vmem [resolvable:$true] %s43
      %46 = dma.hbm_to_vmem [thread:$0]  %s42, 32, %s44, [#allocation3]
    $region5: #{tpu_custom_call.1} parent=1 // pred_fallthru
      _
    // Predicated region
    $region6: #{tpu_custom_call.1} parent=1 // pred_check
      _
    $region7: #{tpu_custom_call.1} parent=1 // pred_check_branch
      %48 = sbr.rel (0) target = $region9
    $region8: #{tpu_custom_call.1} parent=1 // pred_region
      %50 = vsyncadd [#allocation6], 0
      %s52 = sshll.u32 %s1, 4
      %s53 = int_to_ptr.hbm [resolvable:$true] %s52
      %s54 = sshll.u32 [#allocation5], 4
      %s55 = int_to_ptr.vmem [resolvable:$true] %s54
      %57 = dma.hbm_to_vmem [thread:$0]  %s53, 16, %s55, [#allocation6]
    $region9: #{tpu_custom_call.1} parent=1 // pred_fallthru
      _
    // Predicated region
    $region10: #{tpu_custom_call.1} parent=1 // pred_check
      _
    $region11: #{tpu_custom_call.1} parent=1 // pred_check_branch
      %59 = sbr.rel (0) target = $region13
    $region12: #{tpu_custom_call.1} parent=1 // pred_region
      %61 = vsyncadd [#allocation6], 0
      %s63 = sshll.u32 %s2, 4
      %s64 = int_to_ptr.hbm [resolvable:$true] %s63
      %s65 = sshll.u32 [#allocation7], 4
      %s66 = int_to_ptr.vmem [resolvable:$true] %s65
      %68 = dma.hbm_to_vmem [thread:$0]  %s64, 128, %s66, [#allocation6]
    $region13: #{tpu_custom_call.1} parent=1 // pred_fallthru
      _
    // Predicated region
    $region14: #{tpu_custom_call.1} parent=1 // pred_check
      _
    $region15: #{tpu_custom_call.1} parent=1 // pred_check_branch
      %70 = sbr.rel (0) target = $region17
    $region16: #{tpu_custom_call.1} parent=1 // pred_region
      _
    $region17: #{tpu_custom_call.1} parent=1 // pred_fallthru
      _
    // Predicated region
    $region18: #{tpu_custom_call.1} parent=1 // pred_check
      _
    $region19: #{tpu_custom_call.1} parent=1 // pred_check_branch
      %72 = sbr.rel (0) target = $region21
    $region20: #{tpu_custom_call.1} parent=1 // pred_region
      %74 = vsyncadd [#allocation9], 0
      %s75 = sshll.u32 %s4, 4
      %s76 = int_to_ptr.hbm [resolvable:$true] %s75
      %s77 = sshll.u32 [#allocation8], 4
      %s78 = int_to_ptr.vmem [resolvable:$true] %s77
      %83 = dma.hbm_to_vmem [thread:$0]  %s76, 48, %s78, [#allocation9], 16, 16, 1
    $region21: #{tpu_custom_call.1} parent=1 // pred_fallthru
      _
    // Predicated region
    $region22: #{tpu_custom_call.1} parent=1 // pred_check
      _
    $region23: #{tpu_custom_call.1} parent=1 // pred_check_branch
      %85 = sbr.rel (0) target = $region25
    $region24: #{tpu_custom_call.1} parent=1 // pred_region
      _
    $region25: #{tpu_custom_call.1} parent=1 // pred_fallthru
      _
    // Predicated region
    $region26: #{tpu_custom_call.1} parent=1 // pred_check
      _
    $region27: #{tpu_custom_call.1} parent=1 // pred_check_branch
      %87 = sbr.rel (0) target = $region29
    $region28: #{tpu_custom_call.1} parent=1 // pred_region
      %89 = vsyncadd [#allocation9], 0
      %s90 = sshll.u32 %s6, 4
      %s91 = int_to_ptr.hbm [resolvable:$true] %s90
      %s92 = sshll.u32 [#allocation10], 4
      %s93 = int_to_ptr.vmem [resolvable:$true] %s92
      %98 = dma.hbm_to_vmem [thread:$0]  %s91, 48, %s93, [#allocation9], 16, 16, 1
    $region29: #{tpu_custom_call.1} parent=1 // pred_fallthru
      _
    // Predicated region
    $region30: #{tpu_custom_call.1} parent=1 // pred_check
      _
    $region31: #{tpu_custom_call.1} parent=1 // pred_check_branch
      %100 = sbr.rel (0) target = $region33
    $region32: #{tpu_custom_call.1} parent=1 // pred_region
      _
    $region33: #{tpu_custom_call.1} parent=1 // pred_fallthru
      _
    // Predicated region
    $region34: #{tpu_custom_call.1} parent=1 // pred_check
      _
    $region35: #{tpu_custom_call.1} parent=1 // pred_check_branch
      %102 = sbr.rel (0) target = $region37
    $region36: #{tpu_custom_call.1} parent=1 // pred_region
      %104 = vsyncadd [#allocation12], 0
      %s105 = sshll.u32 %s8, 4
      %s106 = int_to_ptr.hbm [resolvable:$true] %s105
      %s107 = sshll.u32 [#allocation11], 4
      %s108 = int_to_ptr.vmem [resolvable:$true] %s107
      %113 = dma.hbm_to_vmem [thread:$0]  %s106, 48, %s108, [#allocation12], 16, 16, 1
    $region37: #{tpu_custom_call.1} parent=1 // pred_fallthru
      _
    // Predicated region
    $region38: #{tpu_custom_call.1} parent=1 // pred_check
      _
    $region39: #{tpu_custom_call.1} parent=1 // pred_check_branch
      %115 = sbr.rel (0) target = $region41
    $region40: #{tpu_custom_call.1} parent=1 // pred_region
      _
    $region41: #{tpu_custom_call.1} parent=1 // pred_fallthru
      _
    // Predicated region
    $region42: #{tpu_custom_call.1} parent=1 // pred_check
      _
    $region43: #{tpu_custom_call.1} parent=1 // pred_check_branch
      %117 = sbr.rel (0) target = $region45
    $region44: #{tpu_custom_call.1} parent=1 // pred_region
      %119 = vsyncadd [#allocation12], 0
      %s120 = sshll.u32 %s10, 4
      %s121 = int_to_ptr.hbm [resolvable:$true] %s120
      %s122 = sshll.u32 [#allocation13], 4
      %s123 = int_to_ptr.vmem [resolvable:$true] %s122
      %128 = dma.hbm_to_vmem [thread:$0]  %s121, 48, %s123, [#allocation12], 16, 16, 1
    $region45: #{tpu_custom_call.1} parent=1 // pred_fallthru
      _
    // Predicated region
    $region46: #{tpu_custom_call.1} parent=1 // pred_check
      _
    $region47: #{tpu_custom_call.1} parent=1 // pred_check_branch
      %130 = sbr.rel (0) target = $region49
    $region48: #{tpu_custom_call.1} parent=1 // pred_region
      _
    $region49: #{tpu_custom_call.1} parent=1 // pred_fallthru
      _
    // Predicated region
    $region50: #{tpu_custom_call.1} parent=1 // pred_check
      _
    $region51: #{tpu_custom_call.1} parent=1 // pred_check_branch
      %132 = sbr.rel (0) target = $region53
    $region52: #{tpu_custom_call.1} parent=1 // pred_region
      %134 = vsyncadd [#allocation15], 0
      %s135 = sshll.u32 %s12, 4
      %s136 = int_to_ptr.hbm [resolvable:$true] %s135
      %s137 = sshll.u32 [#allocation14], 4
      %s138 = int_to_ptr.vmem [resolvable:$true] %s137
      %143 = dma.hbm_to_vmem [thread:$0]  %s136, 96, %s138, [#allocation15], 32, 32, 2
    $region53: #{tpu_custom_call.1} parent=1 // pred_fallthru
      _
    // Predicated region
    $region54: #{tpu_custom_call.1} parent=1 // pred_check
      _
    $region55: #{tpu_custom_call.1} parent=1 // pred_check_branch
      %145 = sbr.rel (0) target = $region57
    $region56: #{tpu_custom_call.1} parent=1 // pred_region
      _
    $region57: #{tpu_custom_call.1} parent=1 // pred_fallthru
      _
    // Predicated region
    $region58: #{tpu_custom_call.1} parent=1 // pred_check
      _
    $region59: #{tpu_custom_call.1} parent=1 // pred_check_branch
      %147 = sbr.rel (0) target = $region61
    $region60: #{tpu_custom_call.1} parent=1 // pred_region
      _
    $region61: #{tpu_custom_call.1} parent=1 // pred_fallthru
      _
    // Predicated region
    $region62: #{tpu_custom_call.1} parent=1 // pred_check
      _
    $region63: #{tpu_custom_call.1} parent=1 // pred_check_branch
      %149 = sbr.rel (0) target = $region65
    $region64: #{tpu_custom_call.1} parent=1 // pred_region
      _
    $region65: #{tpu_custom_call.1} parent=1 // pred_fallthru
      _
    // Predicated region
    $region66: #{tpu_custom_call.1} parent=1 // pred_check
      _
    $region67: #{tpu_custom_call.1} parent=1 // pred_check_branch
      %151 = sbr.rel (0) target = $region69
    $region68: #{tpu_custom_call.1} parent=1 // pred_region
      _
    $region69: #{tpu_custom_call.1} parent=1 // pred_fallthru
      _
    // Predicated region
    $region70: #{tpu_custom_call.1} parent=1 // pred_check
      _
    $region71: #{tpu_custom_call.1} parent=1 // pred_check_branch
      %153 = sbr.rel (0) target = $region73
    $region72: #{tpu_custom_call.1} parent=1 // pred_region
      _
    $region73: #{tpu_custom_call.1} parent=1 // pred_fallthru
      _
    // Predicated region
    $region74: #{tpu_custom_call.1} parent=1 // pred_check
      _
    $region75: #{tpu_custom_call.1} parent=1 // pred_check_branch
      %155 = sbr.rel (0) target = $region77
    $region76: #{tpu_custom_call.1} parent=1 // pred_region
      %157 = vsyncadd [#allocation15], 0
      %s158 = sshll.u32 %s18, 4
      %s159 = int_to_ptr.hbm [resolvable:$true] %s158
      %s160 = sshll.u32 [#allocation16], 4
      %s161 = int_to_ptr.vmem [resolvable:$true] %s160
      %166 = dma.hbm_to_vmem [thread:$0]  %s159, 48, %s161, [#allocation15], 16, 16, 1
    $region77: #{tpu_custom_call.1} parent=1 // pred_fallthru
      _
    // Predicated region
    $region78: #{tpu_custom_call.1} parent=1 // pred_check
      _
    $region79: #{tpu_custom_call.1} parent=1 // pred_check_branch
      %168 = sbr.rel (0) target = $region81
    $region80: #{tpu_custom_call.1} parent=1 // pred_region
      %170 = vsyncadd [#allocation18], 0
      %s171 = sshll.u32 %s19, 4
      %s172 = int_to_ptr.hbm [resolvable:$true] %s171
      %s173 = sshll.u32 [#allocation17], 4
      %s174 = int_to_ptr.vmem [resolvable:$true] %s173
      %179 = dma.hbm_to_vmem [thread:$0]  %s172, 1024, %s174, [#allocation18], 128, 128, 8
    $region81: #{tpu_custom_call.1} parent=1 // pred_fallthru
      _
    // Predicated region
    $region82: #{tpu_custom_call.1} parent=1 // pred_check
      _
    $region83: #{tpu_custom_call.1} parent=1 // pred_check_branch
      %181 = sbr.rel (0) target = $region85
    $region84: #{tpu_custom_call.1} parent=1 // pred_region
      %183 = vsyncadd [#allocation18], 0
      %s185 = sshll.u32 %s20, 4
      %s186 = int_to_ptr.hbm [resolvable:$true] %s185
      %s187 = sshll.u32 [#allocation19], 4
      %s188 = int_to_ptr.vmem [resolvable:$true] %s187
      %190 = dma.hbm_to_vmem [thread:$0]  %s186, 16, %s188, [#allocation18]
    $region85: #{tpu_custom_call.1} parent=1 // pred_fallthru
      _
    // Predicated region
    $region86: #{tpu_custom_call.1} parent=1 // pred_check
      _
    $region87: #{tpu_custom_call.1} parent=1 // pred_check_branch
      %192 = sbr.rel (0) target = $region89
    $region88: #{tpu_custom_call.1} parent=1 // pred_region
      %194 = vsyncadd [#allocation21], 0
      %s195 = sshll.u32 %s21, 4
      %s196 = int_to_ptr.hbm [resolvable:$true] %s195
      %s197 = sshll.u32 [#allocation20], 4
      %s198 = int_to_ptr.vmem [resolvable:$true] %s197
      %203 = dma.hbm_to_vmem [thread:$0]  %s196, 1024, %s198, [#allocation21], 128, 128, 8
    $region89: #{tpu_custom_call.1} parent=1 // pred_fallthru
      _
    // Predicated region
    $region90: #{tpu_custom_call.1} parent=1 // pred_check
      _
    $region91: #{tpu_custom_call.1} parent=1 // pred_check_branch
      %205 = sbr.rel (0) target = $region93
    $region92: #{tpu_custom_call.1} parent=1 // pred_region
      %207 = vsyncadd [#allocation21], 0
      %s209 = sshll.u32 %s22, 4
      %s210 = int_to_ptr.hbm [resolvable:$true] %s209
      %s211 = sshll.u32 [#allocation22], 4
      %s212 = int_to_ptr.vmem [resolvable:$true] %s211
      %214 = dma.hbm_to_vmem [thread:$0]  %s210, 16, %s212, [#allocation21]
    $region93: #{tpu_custom_call.1} parent=1 // pred_fallthru
      _
    // Predicated region
    $region94: #{tpu_custom_call.1} parent=1 // pred_check
      _
    $region95: #{tpu_custom_call.1} parent=1 // pred_check_branch
      %216 = sbr.rel (0) target = $region97
    $region96: #{tpu_custom_call.1} parent=1 // pred_region
      %218 = dma.done [#allocation3], 32
    $region97: #{tpu_custom_call.1} parent=1 // pred_fallthru
      _
    // Predicated region
    $region98: #{tpu_custom_call.1} parent=1 // pred_check
      _
    $region99: #{tpu_custom_call.1} parent=1 // pred_check_branch
      %220 = sbr.rel (0) target = $region101
    $region100: #{tpu_custom_call.1} parent=1 // pred_region
      %222 = dma.done [#allocation6], 16
    $region101: #{tpu_custom_call.1} parent=1 // pred_fallthru
      _
    // Predicated region
    $region102: #{tpu_custom_call.1} parent=1 // pred_check
      _
    $region103: #{tpu_custom_call.1} parent=1 // pred_check_branch
      %224 = sbr.rel (0) target = $region105
    $region104: #{tpu_custom_call.1} parent=1 // pred_region
      %226 = dma.done [#allocation6], 128
    $region105: #{tpu_custom_call.1} parent=1 // pred_fallthru
      _
    // Predicated region
    $region106: #{tpu_custom_call.1} parent=1 // pred_check
      _
    $region107: #{tpu_custom_call.1} parent=1 // pred_check_branch
      %228 = sbr.rel (0) target = $region109
    $region108: #{tpu_custom_call.1} parent=1 // pred_region
      %230 = dma.done [#allocation9], 48
    $region109: #{tpu_custom_call.1} parent=1 // pred_fallthru
      _
    // Predicated region
    $region110: #{tpu_custom_call.1} parent=1 // pred_check
      _
    $region111: #{tpu_custom_call.1} parent=1 // pred_check_branch
      %232 = sbr.rel (0) target = $region113
    $region112: #{tpu_custom_call.1} parent=1 // pred_region
      %234 = dma.done [#allocation9], 48
    $region113: #{tpu_custom_call.1} parent=1 // pred_fallthru
      _
    // Predicated region
    $region114: #{tpu_custom_call.1} parent=1 // pred_check
      _
    $region115: #{tpu_custom_call.1} parent=1 // pred_check_branch
      %236 = sbr.rel (0) target = $region117
    $region116: #{tpu_custom_call.1} parent=1 // pred_region
      %238 = dma.done [#allocation12], 48
    $region117: #{tpu_custom_call.1} parent=1 // pred_fallthru
      _
    // Predicated region
    $region118: #{tpu_custom_call.1} parent=1 // pred_check
      _
    $region119: #{tpu_custom_call.1} parent=1 // pred_check_branch
      %240 = sbr.rel (0) target = $region121
    $region120: #{tpu_custom_call.1} parent=1 // pred_region
      %242 = dma.done [#allocation12], 48
    $region121: #{tpu_custom_call.1} parent=1 // pred_fallthru
      _
    // Predicated region
    $region122: #{tpu_custom_call.1} parent=1 // pred_check
      _
    $region123: #{tpu_custom_call.1} parent=1 // pred_check_branch
      %244 = sbr.rel (0) target = $region125
    $region124: #{tpu_custom_call.1} parent=1 // pred_region
      %246 = dma.done [#allocation15], 96
    $region125: #{tpu_custom_call.1} parent=1 // pred_fallthru
      _
    // Predicated region
    $region126: #{tpu_custom_call.1} parent=1 // pred_check
      _
    $region127: #{tpu_custom_call.1} parent=1 // pred_check_branch
      %248 = sbr.rel (0) target = $region129
    $region128: #{tpu_custom_call.1} parent=1 // pred_region
      %250 = dma.done [#allocation15], 48
    $region129: #{tpu_custom_call.1} parent=1 // pred_fallthru
      _
    // Predicated region
    $region130: #{tpu_custom_call.1} parent=1 // pred_check
      _
    $region131: #{tpu_custom_call.1} parent=1 // pred_check_branch
      %252 = sbr.rel (0) target = $region133
    $region132: #{tpu_custom_call.1} parent=1 // pred_region
      %254 = dma.done [#allocation18], 1024
    $region133: #{tpu_custom_call.1} parent=1 // pred_fallthru
      _
    // Predicated region
    $region134: #{tpu_custom_call.1} parent=1 // pred_check
      _
    $region135: #{tpu_custom_call.1} parent=1 // pred_check_branch
      %256 = sbr.rel (0) target = $region137
    $region136: #{tpu_custom_call.1} parent=1 // pred_region
      %258 = dma.done [#allocation18], 16
    $region137: #{tpu_custom_call.1} parent=1 // pred_fallthru
      _
    // Predicated region
    $region138: #{tpu_custom_call.1} parent=1 // pred_check
      _
    $region139: #{tpu_custom_call.1} parent=1 // pred_check_branch
      %260 = sbr.rel (0) target = $region141
    $region140: #{tpu_custom_call.1} parent=1 // pred_region
      %262 = dma.done [#allocation21], 1024
    $region141: #{tpu_custom_call.1} parent=1 // pred_fallthru
      _
    // Predicated region
    $region142: #{tpu_custom_call.1} parent=1 // pred_check
      _
    $region143: #{tpu_custom_call.1} parent=1 // pred_check_branch
      %264 = sbr.rel (0) target = $region145
    $region144: #{tpu_custom_call.1} parent=1 // pred_region
      %266 = dma.done [#allocation21], 16
    $region145: #{tpu_custom_call.1} parent=1 // pred_fallthru
      _
    %v267 = vld [vmem:[#allocation2] sm:$0x3]
    %v268 = vperm.slane %v267, 0
    %v269 = vlaneseq
    %v270 = vshrl.u32 %v269, 7
    %272 = vset.pattern.permute.xlu0 %v270
    %273 = vperm.xlu0 %272, %v268
    %v274 = vpop.permute.xlu0 %273
    %v275 = vperm.slane %v267, 1
    %v276 = vlaneseq
    %v277 = vshrl.u32 %v276, 7
    %279 = vset.pattern.permute.xlu0 %v277
    %280 = vperm.xlu0 %279, %v275
    %v281 = vpop.permute.xlu0 %280
    %v282 = vld [vmem:[#allocation5] sm:$0x1]
    %v284 = vperm.slane %v282, 0
    %v286 = vmul.f32 %v274, %v284
    %v287 = vmul.f32 %v281, %v284
    %v288 = vld [vmem:[#allocation7] sm:$0xff]
    %v289 = vadd.f32 %v286, %v288
    %v290 = vadd.f32 %v287, %v288
    %v291 = vld [vmem:[%s3] sm:$0xff]
    %v292 = vld [vmem:[%s3 + $0x8] sm:$0xff]
    %v293 = vld [vmem:[%s3 + $0x10] sm:$0xff]
    %v294 = vld [vmem:[%s3 + $0x18] sm:$0xff]
    %v295 = vld [vmem:[%s3 + $0x20] sm:$0xff]
    %v296 = vld [vmem:[%s3 + $0x28] sm:$0xff]
    %v297 = vld [vmem:[%s3 + $0x30] sm:$0xff]
    %v298 = vld [vmem:[%s3 + $0x38] sm:$0xff]
    %v299 = vld [vmem:[#allocation8] sm:$0x1]
    %v301 = vperm.slane %v299, 0
    %vm303 = vcmask 523264
    %v305 = vsel %vm303, %v289, 0
    %v308 = vsel %vm303, %v290, 0
    %310 = vmatpush.msra.mxu0 0.0
    %311 = vmatpush.msra.mxu0 0.0
    %312 = vmatpush.msra.mxu0 0.0
    %313 = vmatpush.msra.mxu0 0.0
    %314 = vmatpush.msra.mxu0 0.0
    %315 = vmatpush.msra.mxu0 0.0
    %316 = vmatpush.msra.mxu0 0.0
    %317 = vmatpush.msra.mxu0 0.0
    %318 = vmatpush.msra.mxu0 %v298
    %319 = vmatpush.msra.mxu0 %v297
    %320 = vmatpush.msra.mxu0 %v296
    %321 = vmatpush.msra.mxu0 %v295
    %322 = vmatpush.msra.mxu0 %v294
    %323 = vmatpush.msra.mxu0 %v293
    %324 = vmatpush.msra.mxu0 %v292
    %325 = vmatpush.msra.mxu0 %v291
    %326 = vmatmul.f32.gmra.mxu0 %v305
    %v327 = vpop.f32.mrf.mxu0
    %v328 = vadd.f32 %v301, %v327
    %329 = vmatmul.f32.gmra.mxu0 %v308
    %v330 = vpop.f32.mrf.mxu0
    %v331 = vadd.f32 %v301, %v330
    %332 = vdwg.mxu0
    %v333 = vld [vmem:[%s5] sm:$0xff]
    %v334 = vld [vmem:[%s5 + $0x8] sm:$0xff]
    %v335 = vld [vmem:[%s5 + $0x10] sm:$0xff]
    %v336 = vld [vmem:[%s5 + $0x18] sm:$0xff]
    %v337 = vld [vmem:[%s5 + $0x20] sm:$0xff]
    %v338 = vld [vmem:[%s5 + $0x28] sm:$0xff]
    %v339 = vld [vmem:[%s5 + $0x30] sm:$0xff]
    %v340 = vld [vmem:[%s5 + $0x38] sm:$0xff]
    %v341 = vld [vmem:[#allocation10] sm:$0x1]
    %v343 = vperm.slane %v341, 0
    %345 = vmatpush.msra.mxu0 0.0
    %346 = vmatpush.msra.mxu0 0.0
    %347 = vmatpush.msra.mxu0 0.0
    %348 = vmatpush.msra.mxu0 0.0
    %349 = vmatpush.msra.mxu0 0.0
    %350 = vmatpush.msra.mxu0 0.0
    %351 = vmatpush.msra.mxu0 0.0
    %352 = vmatpush.msra.mxu0 0.0
    %353 = vmatpush.msra.mxu0 %v340
    %354 = vmatpush.msra.mxu0 %v339
    %355 = vmatpush.msra.mxu0 %v338
    %356 = vmatpush.msra.mxu0 %v337
    %357 = vmatpush.msra.mxu0 %v336
    %358 = vmatpush.msra.mxu0 %v335
    %359 = vmatpush.msra.mxu0 %v334
    %360 = vmatpush.msra.mxu0 %v333
    %361 = vmatmul.f32.gmra.mxu0 %v305
    %v362 = vpop.f32.mrf.mxu0
    %v363 = vadd.f32 %v343, %v362
    %364 = vmatmul.f32.gmra.mxu0 %v308
    %v365 = vpop.f32.mrf.mxu0
    %v366 = vadd.f32 %v343, %v365
    %367 = vdwg.mxu0
    %v368 = vld [vmem:[%s7] sm:$0xff]
    %v369 = vld [vmem:[%s7 + $0x8] sm:$0xff]
    %v370 = vld [vmem:[%s7 + $0x10] sm:$0xff]
    %v371 = vld [vmem:[%s7 + $0x18] sm:$0xff]
    %v372 = vld [vmem:[%s7 + $0x20] sm:$0xff]
    %v373 = vld [vmem:[%s7 + $0x28] sm:$0xff]
    %v374 = vld [vmem:[%s7 + $0x30] sm:$0xff]
    %v375 = vld [vmem:[%s7 + $0x38] sm:$0xff]
    %v376 = vld [vmem:[#allocation11] sm:$0x1]
    %v378 = vperm.slane %v376, 0
    %380 = vmatpush.msra.mxu0 0.0
    %381 = vmatpush.msra.mxu0 0.0
    %382 = vmatpush.msra.mxu0 0.0
    %383 = vmatpush.msra.mxu0 0.0
    %384 = vmatpush.msra.mxu0 0.0
    %385 = vmatpush.msra.mxu0 0.0
    %386 = vmatpush.msra.mxu0 0.0
    %387 = vmatpush.msra.mxu0 0.0
    %388 = vmatpush.msra.mxu0 %v375
    %389 = vmatpush.msra.mxu0 %v374
    %390 = vmatpush.msra.mxu0 %v373
    %391 = vmatpush.msra.mxu0 %v372
    %392 = vmatpush.msra.mxu0 %v371
    %393 = vmatpush.msra.mxu0 %v370
    %394 = vmatpush.msra.mxu0 %v369
    %395 = vmatpush.msra.mxu0 %v368
    %396 = vmatmul.f32.gmra.mxu0 %v305
    %v397 = vpop.f32.mrf.mxu0
    %v398 = vadd.f32 %v378, %v397
    %399 = vmatmul.f32.gmra.mxu0 %v308
    %v400 = vpop.f32.mrf.mxu0
    %v401 = vadd.f32 %v378, %v400
    %402 = vdwg.mxu0
    %vm403 = vcmask 130048
    %v405 = vsel %vm403, %v328, 0
    %v408 = vsel %vm403, %v363, 0
    %410 = vmatpush.xpose.msra.mxu0 0.0
    %411 = vmatpush.xpose.msra.mxu0 0.0
    %412 = vmatpush.xpose.msra.mxu0 0.0
    %413 = vmatpush.xpose.msra.mxu0 0.0
    %414 = vmatpush.xpose.msra.mxu0 0.0
    %415 = vmatpush.xpose.msra.mxu0 0.0
    %416 = vmatpush.xpose.msra.mxu0 0.0
    %417 = vmatpush.xpose.msra.mxu0 0.0
    %418 = vmatpush.xpose.msra.mxu0 0.0
    %419 = vmatpush.xpose.msra.mxu0 0.0
    %420 = vmatpush.xpose.msra.mxu0 0.0
    %421 = vmatpush.xpose.msra.mxu0 0.0
    %422 = vmatpush.xpose.msra.mxu0 0.0
    %423 = vmatpush.xpose.msra.mxu0 0.0
    %424 = vmatpush.xpose.msra.mxu0 0.0
    %425 = vmatpush.xpose.msra.mxu0 %v408
    %426 = vmatmul.f32.gmra.mxu0 %v405
    %v427 = vpop.f32.mrf.mxu0
    %v428 = vadd.f32 0.0, %v427
    %429 = vdwg.mxu0
    %v431 = vsel %vm403, %v331, 0
    %v434 = vsel %vm403, %v366, 0
    %436 = vmatpush.xpose.msra.mxu0 0.0
    %437 = vmatpush.xpose.msra.mxu0 0.0
    %438 = vmatpush.xpose.msra.mxu0 0.0
    %439 = vmatpush.xpose.msra.mxu0 0.0
    %440 = vmatpush.xpose.msra.mxu0 0.0
    %441 = vmatpush.xpose.msra.mxu0 0.0
    %442 = vmatpush.xpose.msra.mxu0 0.0
    %443 = vmatpush.xpose.msra.mxu0 0.0
    %444 = vmatpush.xpose.msra.mxu0 0.0
    %445 = vmatpush.xpose.msra.mxu0 0.0
    %446 = vmatpush.xpose.msra.mxu0 0.0
    %447 = vmatpush.xpose.msra.mxu0 0.0
    %448 = vmatpush.xpose.msra.mxu0 0.0
    %449 = vmatpush.xpose.msra.mxu0 0.0
    %450 = vmatpush.xpose.msra.mxu0 0.0
    %451 = vmatpush.xpose.msra.mxu0 %v434
    %452 = vmatmul.f32.gmra.mxu0 %v431
    %v453 = vpop.f32.mrf.mxu0
    %v454 = vadd.f32 0.0, %v453
    %455 = vdwg.mxu0
    %vm456 = vcmask 64512
    %v457 = vsel %vm456, %v428, -inf
    %458 = vmax.xlane.f32.xlu0 %v457
    %v459 = vpop.xlane.xlu0 %458
    %v460 = vsel %vm456, %v454, -inf
    %461 = vmax.xlane.f32.xlu0 %v460
    %v462 = vpop.xlane.xlu0 %461
    %v463 = vsub.f32 %v428, %v459
    %v464 = vsub.f32 %v454, %v462
    %v465 = vmul.f32 %v463, 1.442695
    %v466 = vpow.pop %v465
    %v467 = vmul.f32 %v464, 1.442695
    %v468 = vpow.pop %v467
    %v469 = vsel %vm456, %v466, 0.0
    %470 = vadd.xlane.f32.xlu0 %v469
    %v471 = vpop.xlane.xlu0 %470
    %v472 = vsel %vm456, %v468, 0.0
    %473 = vadd.xlane.f32.xlu0 %v472
    %v474 = vpop.xlane.xlu0 %473
    %v475 = vrcp.pop %v471
    %v476 = vrcp.pop %v474
    %v477 = vmul.f32 %v466, %v475
    %v478 = vmul.f32 %v468, %v476
    %v480 = vsel %vm456, %v477, 0
    %482 = vmatpush.msra.mxu0 0.0
    %483 = vmatpush.msra.mxu0 0.0
    %484 = vmatpush.msra.mxu0 0.0
    %485 = vmatpush.msra.mxu0 0.0
    %486 = vmatpush.msra.mxu0 0.0
    %487 = vmatpush.msra.mxu0 0.0
    %488 = vmatpush.msra.mxu0 0.0
    %489 = vmatpush.msra.mxu0 0.0
    %490 = vmatpush.msra.mxu0 0.0
    %491 = vmatpush.msra.mxu0 0.0
    %492 = vmatpush.msra.mxu0 0.0
    %493 = vmatpush.msra.mxu0 0.0
    %494 = vmatpush.msra.mxu0 0.0
    %495 = vmatpush.msra.mxu0 0.0
    %496 = vmatpush.msra.mxu0 0.0
    %497 = vmatpush.msra.mxu0 %v398
    %498 = vmatmul.f32.gmra.mxu0 %v480
    %v499 = vpop.f32.mrf.mxu0
    %v500 = vadd.f32 0.0, %v499
    %501 = vdwg.mxu0
    %v503 = vsel %vm456, %v478, 0
    %505 = vmatpush.msra.mxu0 0.0
    %506 = vmatpush.msra.mxu0 0.0
    %507 = vmatpush.msra.mxu0 0.0
    %508 = vmatpush.msra.mxu0 0.0
    %509 = vmatpush.msra.mxu0 0.0
    %510 = vmatpush.msra.mxu0 0.0
    %511 = vmatpush.msra.mxu0 0.0
    %512 = vmatpush.msra.mxu0 0.0
    %513 = vmatpush.msra.mxu0 0.0
    %514 = vmatpush.msra.mxu0 0.0
    %515 = vmatpush.msra.mxu0 0.0
    %516 = vmatpush.msra.mxu0 0.0
    %517 = vmatpush.msra.mxu0 0.0
    %518 = vmatpush.msra.mxu0 0.0
    %519 = vmatpush.msra.mxu0 0.0
    %520 = vmatpush.msra.mxu0 %v401
    %521 = vmatmul.f32.gmra.mxu0 %v503
    %v522 = vpop.f32.mrf.mxu0
    %v523 = vadd.f32 0.0, %v522
    %524 = vdwg.mxu0
    %525 = vrot.lane.b32.xlu0 %v328, 112
    %v526 = vpop.permute.xlu0 %525
    %527 = vrot.lane.b32.xlu0 %v363, 112
    %v528 = vpop.permute.xlu0 %527
    %v529 = vsel %vm403, %v526, 0
    %v531 = vsel %vm403, %v528, 0
    %533 = vmatpush.xpose.msra.mxu0 0.0
    %534 = vmatpush.xpose.msra.mxu0 0.0
    %535 = vmatpush.xpose.msra.mxu0 0.0
    %536 = vmatpush.xpose.msra.mxu0 0.0
    %537 = vmatpush.xpose.msra.mxu0 0.0
    %538 = vmatpush.xpose.msra.mxu0 0.0
    %539 = vmatpush.xpose.msra.mxu0 0.0
    %540 = vmatpush.xpose.msra.mxu0 0.0
    %541 = vmatpush.xpose.msra.mxu0 0.0
    %542 = vmatpush.xpose.msra.mxu0 0.0
    %543 = vmatpush.xpose.msra.mxu0 0.0
    %544 = vmatpush.xpose.msra.mxu0 0.0
    %545 = vmatpush.xpose.msra.mxu0 0.0
    %546 = vmatpush.xpose.msra.mxu0 0.0
    %547 = vmatpush.xpose.msra.mxu0 0.0
    %548 = vmatpush.xpose.msra.mxu0 %v531
    %549 = vmatmul.f32.gmra.mxu0 %v529
    %v550 = vpop.f32.mrf.mxu0
    %v551 = vadd.f32 0.0, %v550
    %552 = vdwg.mxu0
    %553 = vrot.lane.b32.xlu0 %v331, 112
    %v554 = vpop.permute.xlu0 %553
    %555 = vrot.lane.b32.xlu0 %v366, 112
    %v556 = vpop.permute.xlu0 %555
    %v557 = vsel %vm403, %v554, 0
    %v559 = vsel %vm403, %v556, 0
    %561 = vmatpush.xpose.msra.mxu0 0.0
    %562 = vmatpush.xpose.msra.mxu0 0.0
    %563 = vmatpush.xpose.msra.mxu0 0.0
    %564 = vmatpush.xpose.msra.mxu0 0.0
    %565 = vmatpush.xpose.msra.mxu0 0.0
    %566 = vmatpush.xpose.msra.mxu0 0.0
    %567 = vmatpush.xpose.msra.mxu0 0.0
    %568 = vmatpush.xpose.msra.mxu0 0.0
    %569 = vmatpush.xpose.msra.mxu0 0.0
    %570 = vmatpush.xpose.msra.mxu0 0.0
    %571 = vmatpush.xpose.msra.mxu0 0.0
    %572 = vmatpush.xpose.msra.mxu0 0.0
    %573 = vmatpush.xpose.msra.mxu0 0.0
    %574 = vmatpush.xpose.msra.mxu0 0.0
    %575 = vmatpush.xpose.msra.mxu0 0.0
    %576 = vmatpush.xpose.msra.mxu0 %v559
    %577 = vmatmul.f32.gmra.mxu0 %v557
    %v578 = vpop.f32.mrf.mxu0
    %v579 = vadd.f32 0.0, %v578
    %580 = vdwg.mxu0
    %v581 = vsel %vm456, %v551, -inf
    %582 = vmax.xlane.f32.xlu0 %v581
    %v583 = vpop.xlane.xlu0 %582
    %v584 = vsel %vm456, %v579, -inf
    %585 = vmax.xlane.f32.xlu0 %v584
    %v586 = vpop.xlane.xlu0 %585
    %v587 = vsub.f32 %v551, %v583
    %v588 = vsub.f32 %v579, %v586
    %v589 = vmul.f32 %v587, 1.442695
    %v590 = vpow.pop %v589
    %v591 = vmul.f32 %v588, 1.442695
    %v592 = vpow.pop %v591
    %v593 = vsel %vm456, %v590, 0.0
    %594 = vadd.xlane.f32.xlu0 %v593
    %v595 = vpop.xlane.xlu0 %594
    %v596 = vsel %vm456, %v592, 0.0
    %597 = vadd.xlane.f32.xlu0 %v596
    %v598 = vpop.xlane.xlu0 %597
    %v599 = vrcp.pop %v595
    %v600 = vrcp.pop %v598
    %v601 = vmul.f32 %v590, %v599
    %v602 = vmul.f32 %v592, %v600
    %604 = vrot.lane.b32.xlu0 %v398, 112
    %v605 = vpop.permute.xlu0 %604
    %v608 = vsel %vm456, %v601, 0
    %610 = vmatpush.msra.mxu0 0.0
    %611 = vmatpush.msra.mxu0 0.0
    %612 = vmatpush.msra.mxu0 0.0
    %613 = vmatpush.msra.mxu0 0.0
    %614 = vmatpush.msra.mxu0 0.0
    %615 = vmatpush.msra.mxu0 0.0
    %616 = vmatpush.msra.mxu0 0.0
    %617 = vmatpush.msra.mxu0 0.0
    %618 = vmatpush.msra.mxu0 0.0
    %619 = vmatpush.msra.mxu0 0.0
    %620 = vmatpush.msra.mxu0 0.0
    %621 = vmatpush.msra.mxu0 0.0
    %622 = vmatpush.msra.mxu0 0.0
    %623 = vmatpush.msra.mxu0 0.0
    %624 = vmatpush.msra.mxu0 0.0
    %625 = vmatpush.msra.mxu0 %v605
    %626 = vmatmul.f32.gmra.mxu0 %v608
    %v627 = vpop.f32.mrf.mxu0
    %v628 = vadd.f32 0.0, %v627
    %629 = vdwg.mxu0
    %631 = vrot.lane.b32.xlu0 %v401, 112
    %v632 = vpop.permute.xlu0 %631
    %v635 = vsel %vm456, %v602, 0
    %637 = vmatpush.msra.mxu0 0.0
    %638 = vmatpush.msra.mxu0 0.0
    %639 = vmatpush.msra.mxu0 0.0
    %640 = vmatpush.msra.mxu0 0.0
    %641 = vmatpush.msra.mxu0 0.0
    %642 = vmatpush.msra.mxu0 0.0
    %643 = vmatpush.msra.mxu0 0.0
    %644 = vmatpush.msra.mxu0 0.0
    %645 = vmatpush.msra.mxu0 0.0
    %646 = vmatpush.msra.mxu0 0.0
    %647 = vmatpush.msra.mxu0 0.0
    %648 = vmatpush.msra.mxu0 0.0
    %649 = vmatpush.msra.mxu0 0.0
    %650 = vmatpush.msra.mxu0 0.0
    %651 = vmatpush.msra.mxu0 0.0
    %652 = vmatpush.msra.mxu0 %v632
    %653 = vmatmul.f32.gmra.mxu0 %v635
    %v654 = vpop.f32.mrf.mxu0
    %v655 = vadd.f32 0.0, %v654
    %656 = vdwg.mxu0
    %657 = vrot.lane.b32.xlu0 %v328, 96
    %v658 = vpop.permute.xlu0 %657
    %659 = vrot.lane.b32.xlu0 %v363, 96
    %v660 = vpop.permute.xlu0 %659
    %v661 = vsel %vm403, %v658, 0
    %v663 = vsel %vm403, %v660, 0
    %665 = vmatpush.xpose.msra.mxu0 0.0
    %666 = vmatpush.xpose.msra.mxu0 0.0
    %667 = vmatpush.xpose.msra.mxu0 0.0
    %668 = vmatpush.xpose.msra.mxu0 0.0
    %669 = vmatpush.xpose.msra.mxu0 0.0
    %670 = vmatpush.xpose.msra.mxu0 0.0
    %671 = vmatpush.xpose.msra.mxu0 0.0
    %672 = vmatpush.xpose.msra.mxu0 0.0
    %673 = vmatpush.xpose.msra.mxu0 0.0
    %674 = vmatpush.xpose.msra.mxu0 0.0
    %675 = vmatpush.xpose.msra.mxu0 0.0
    %676 = vmatpush.xpose.msra.mxu0 0.0
    %677 = vmatpush.xpose.msra.mxu0 0.0
    %678 = vmatpush.xpose.msra.mxu0 0.0
    %679 = vmatpush.xpose.msra.mxu0 0.0
    %680 = vmatpush.xpose.msra.mxu0 %v663
    %681 = vmatmul.f32.gmra.mxu0 %v661
    %v682 = vpop.f32.mrf.mxu0
    %v683 = vadd.f32 0.0, %v682
    %684 = vdwg.mxu0
    %685 = vrot.lane.b32.xlu0 %v331, 96
    %v686 = vpop.permute.xlu0 %685
    %687 = vrot.lane.b32.xlu0 %v366, 96
    %v688 = vpop.permute.xlu0 %687
    %v689 = vsel %vm403, %v686, 0
    %v691 = vsel %vm403, %v688, 0
    %693 = vmatpush.xpose.msra.mxu0 0.0
    %694 = vmatpush.xpose.msra.mxu0 0.0
    %695 = vmatpush.xpose.msra.mxu0 0.0
    %696 = vmatpush.xpose.msra.mxu0 0.0
    %697 = vmatpush.xpose.msra.mxu0 0.0
    %698 = vmatpush.xpose.msra.mxu0 0.0
    %699 = vmatpush.xpose.msra.mxu0 0.0
    %700 = vmatpush.xpose.msra.mxu0 0.0
    %701 = vmatpush.xpose.msra.mxu0 0.0
    %702 = vmatpush.xpose.msra.mxu0 0.0
    %703 = vmatpush.xpose.msra.mxu0 0.0
    %704 = vmatpush.xpose.msra.mxu0 0.0
    %705 = vmatpush.xpose.msra.mxu0 0.0
    %706 = vmatpush.xpose.msra.mxu0 0.0
    %707 = vmatpush.xpose.msra.mxu0 0.0
    %708 = vmatpush.xpose.msra.mxu0 %v691
    %709 = vmatmul.f32.gmra.mxu0 %v689
    %v710 = vpop.f32.mrf.mxu0
    %v711 = vadd.f32 0.0, %v710
    %712 = vdwg.mxu0
    %v713 = vsel %vm456, %v683, -inf
    %714 = vmax.xlane.f32.xlu0 %v713
    %v715 = vpop.xlane.xlu0 %714
    %v716 = vsel %vm456, %v711, -inf
    %717 = vmax.xlane.f32.xlu0 %v716
    %v718 = vpop.xlane.xlu0 %717
    %v719 = vsub.f32 %v683, %v715
    %v720 = vsub.f32 %v711, %v718
    %v721 = vmul.f32 %v719, 1.442695
    %v722 = vpow.pop %v721
    %v723 = vmul.f32 %v720, 1.442695
    %v724 = vpow.pop %v723
    %v725 = vsel %vm456, %v722, 0.0
    %726 = vadd.xlane.f32.xlu0 %v725
    %v727 = vpop.xlane.xlu0 %726
    %v728 = vsel %vm456, %v724, 0.0
    %729 = vadd.xlane.f32.xlu0 %v728
    %v730 = vpop.xlane.xlu0 %729
    %v731 = vrcp.pop %v727
    %v732 = vrcp.pop %v730
    %v733 = vmul.f32 %v722, %v731
    %v734 = vmul.f32 %v724, %v732
    %735 = vrot.lane.b32.xlu0 %v398, 96
    %v736 = vpop.permute.xlu0 %735
    %v739 = vsel %vm456, %v733, 0
    %741 = vmatpush.msra.mxu0 0.0
    %742 = vmatpush.msra.mxu0 0.0
    %743 = vmatpush.msra.mxu0 0.0
    %744 = vmatpush.msra.mxu0 0.0
    %745 = vmatpush.msra.mxu0 0.0
    %746 = vmatpush.msra.mxu0 0.0
    %747 = vmatpush.msra.mxu0 0.0
    %748 = vmatpush.msra.mxu0 0.0
    %749 = vmatpush.msra.mxu0 0.0
    %750 = vmatpush.msra.mxu0 0.0
    %751 = vmatpush.msra.mxu0 0.0
    %752 = vmatpush.msra.mxu0 0.0
    %753 = vmatpush.msra.mxu0 0.0
    %754 = vmatpush.msra.mxu0 0.0
    %755 = vmatpush.msra.mxu0 0.0
    %756 = vmatpush.msra.mxu0 %v736
    %757 = vmatmul.f32.gmra.mxu0 %v739
    %v758 = vpop.f32.mrf.mxu0
    %v759 = vadd.f32 0.0, %v758
    %760 = vdwg.mxu0
    %761 = vrot.lane.b32.xlu0 %v401, 96
    %v762 = vpop.permute.xlu0 %761
    %v765 = vsel %vm456, %v734, 0
    %767 = vmatpush.msra.mxu0 0.0
    %768 = vmatpush.msra.mxu0 0.0
    %769 = vmatpush.msra.mxu0 0.0
    %770 = vmatpush.msra.mxu0 0.0
    %771 = vmatpush.msra.mxu0 0.0
    %772 = vmatpush.msra.mxu0 0.0
    %773 = vmatpush.msra.mxu0 0.0
    %774 = vmatpush.msra.mxu0 0.0
    %775 = vmatpush.msra.mxu0 0.0
    %776 = vmatpush.msra.mxu0 0.0
    %777 = vmatpush.msra.mxu0 0.0
    %778 = vmatpush.msra.mxu0 0.0
    %779 = vmatpush.msra.mxu0 0.0
    %780 = vmatpush.msra.mxu0 0.0
    %781 = vmatpush.msra.mxu0 0.0
    %782 = vmatpush.msra.mxu0 %v762
    %783 = vmatmul.f32.gmra.mxu0 %v765
    %v784 = vpop.f32.mrf.mxu0
    %v785 = vadd.f32 0.0, %v784
    %786 = vdwg.mxu0
    %787 = vrot.lane.b32.xlu0 %v328, 80
    %v788 = vpop.permute.xlu0 %787
    %789 = vrot.lane.b32.xlu0 %v363, 80
    %v790 = vpop.permute.xlu0 %789
    %v791 = vsel %vm403, %v788, 0
    %v793 = vsel %vm403, %v790, 0
    %795 = vmatpush.xpose.msra.mxu0 0.0
    %796 = vmatpush.xpose.msra.mxu0 0.0
    %797 = vmatpush.xpose.msra.mxu0 0.0
    %798 = vmatpush.xpose.msra.mxu0 0.0
    %799 = vmatpush.xpose.msra.mxu0 0.0
    %800 = vmatpush.xpose.msra.mxu0 0.0
    %801 = vmatpush.xpose.msra.mxu0 0.0
    %802 = vmatpush.xpose.msra.mxu0 0.0
    %803 = vmatpush.xpose.msra.mxu0 0.0
    %804 = vmatpush.xpose.msra.mxu0 0.0
    %805 = vmatpush.xpose.msra.mxu0 0.0
    %806 = vmatpush.xpose.msra.mxu0 0.0
    %807 = vmatpush.xpose.msra.mxu0 0.0
    %808 = vmatpush.xpose.msra.mxu0 0.0
    %809 = vmatpush.xpose.msra.mxu0 0.0
    %810 = vmatpush.xpose.msra.mxu0 %v793
    %811 = vmatmul.f32.gmra.mxu0 %v791
    %v812 = vpop.f32.mrf.mxu0
    %v813 = vadd.f32 0.0, %v812
    %814 = vdwg.mxu0
    %815 = vrot.lane.b32.xlu0 %v331, 80
    %v816 = vpop.permute.xlu0 %815
    %817 = vrot.lane.b32.xlu0 %v366, 80
    %v818 = vpop.permute.xlu0 %817
    %v819 = vsel %vm403, %v816, 0
    %v821 = vsel %vm403, %v818, 0
    %823 = vmatpush.xpose.msra.mxu0 0.0
    %824 = vmatpush.xpose.msra.mxu0 0.0
    %825 = vmatpush.xpose.msra.mxu0 0.0
    %826 = vmatpush.xpose.msra.mxu0 0.0
    %827 = vmatpush.xpose.msra.mxu0 0.0
    %828 = vmatpush.xpose.msra.mxu0 0.0
    %829 = vmatpush.xpose.msra.mxu0 0.0
    %830 = vmatpush.xpose.msra.mxu0 0.0
    %831 = vmatpush.xpose.msra.mxu0 0.0
    %832 = vmatpush.xpose.msra.mxu0 0.0
    %833 = vmatpush.xpose.msra.mxu0 0.0
    %834 = vmatpush.xpose.msra.mxu0 0.0
    %835 = vmatpush.xpose.msra.mxu0 0.0
    %836 = vmatpush.xpose.msra.mxu0 0.0
    %837 = vmatpush.xpose.msra.mxu0 0.0
    %838 = vmatpush.xpose.msra.mxu0 %v821
    %839 = vmatmul.f32.gmra.mxu0 %v819
    %v840 = vpop.f32.mrf.mxu0
    %v841 = vadd.f32 0.0, %v840
    %842 = vdwg.mxu0
    %v843 = vsel %vm456, %v813, -inf
    %844 = vmax.xlane.f32.xlu0 %v843
    %v845 = vpop.xlane.xlu0 %844
    %v846 = vsel %vm456, %v841, -inf
    %847 = vmax.xlane.f32.xlu0 %v846
    %v848 = vpop.xlane.xlu0 %847
    %v849 = vsub.f32 %v813, %v845
    %v850 = vsub.f32 %v841, %v848
    %v851 = vmul.f32 %v849, 1.442695
    %v852 = vpow.pop %v851
    %v853 = vmul.f32 %v850, 1.442695
    %v854 = vpow.pop %v853
    %v855 = vsel %vm456, %v852, 0.0
    %856 = vadd.xlane.f32.xlu0 %v855
    %v857 = vpop.xlane.xlu0 %856
    %v858 = vsel %vm456, %v854, 0.0
    %859 = vadd.xlane.f32.xlu0 %v858
    %v860 = vpop.xlane.xlu0 %859
    %v861 = vrcp.pop %v857
    %v862 = vrcp.pop %v860
    %v863 = vmul.f32 %v852, %v861
    %v864 = vmul.f32 %v854, %v862
    %865 = vrot.lane.b32.xlu0 %v398, 80
    %v866 = vpop.permute.xlu0 %865
    %v869 = vsel %vm456, %v863, 0
    %871 = vmatpush.msra.mxu0 0.0
    %872 = vmatpush.msra.mxu0 0.0
    %873 = vmatpush.msra.mxu0 0.0
    %874 = vmatpush.msra.mxu0 0.0
    %875 = vmatpush.msra.mxu0 0.0
    %876 = vmatpush.msra.mxu0 0.0
    %877 = vmatpush.msra.mxu0 0.0
    %878 = vmatpush.msra.mxu0 0.0
    %879 = vmatpush.msra.mxu0 0.0
    %880 = vmatpush.msra.mxu0 0.0
    %881 = vmatpush.msra.mxu0 0.0
    %882 = vmatpush.msra.mxu0 0.0
    %883 = vmatpush.msra.mxu0 0.0
    %884 = vmatpush.msra.mxu0 0.0
    %885 = vmatpush.msra.mxu0 0.0
    %886 = vmatpush.msra.mxu0 %v866
    %887 = vmatmul.f32.gmra.mxu0 %v869
    %v888 = vpop.f32.mrf.mxu0
    %v889 = vadd.f32 0.0, %v888
    %890 = vdwg.mxu0
    %891 = vrot.lane.b32.xlu0 %v401, 80
    %v892 = vpop.permute.xlu0 %891
    %v895 = vsel %vm456, %v864, 0
    %897 = vmatpush.msra.mxu0 0.0
    %898 = vmatpush.msra.mxu0 0.0
    %899 = vmatpush.msra.mxu0 0.0
    %900 = vmatpush.msra.mxu0 0.0
    %901 = vmatpush.msra.mxu0 0.0
    %902 = vmatpush.msra.mxu0 0.0
    %903 = vmatpush.msra.mxu0 0.0
    %904 = vmatpush.msra.mxu0 0.0
    %905 = vmatpush.msra.mxu0 0.0
    %906 = vmatpush.msra.mxu0 0.0
    %907 = vmatpush.msra.mxu0 0.0
    %908 = vmatpush.msra.mxu0 0.0
    %909 = vmatpush.msra.mxu0 0.0
    %910 = vmatpush.msra.mxu0 0.0
    %911 = vmatpush.msra.mxu0 0.0
    %912 = vmatpush.msra.mxu0 %v892
    %913 = vmatmul.f32.gmra.mxu0 %v895
    %v914 = vpop.f32.mrf.mxu0
    %v915 = vadd.f32 0.0, %v914
    %916 = vdwg.mxu0
    %919 = vrot.lane.b32.xlu0 %v628, 16
    %v920 = vpop.permute.xlu0 %919
    %921 = vrot.lane.b32.xlu0 %v655, 16
    %v922 = vpop.permute.xlu0 %921
    %927 = vrot.lane.b32.xlu0 %v759, 32
    %v928 = vpop.permute.xlu0 %927
    %929 = vrot.lane.b32.xlu0 %v785, 32
    %v930 = vpop.permute.xlu0 %929
    %935 = vrot.lane.b32.xlu0 %v889, 48
    %v936 = vpop.permute.xlu0 %935
    %937 = vrot.lane.b32.xlu0 %v915, 48
    %v938 = vpop.permute.xlu0 %937
    %v941 = vsel %vm403, %v500, %v920
    %v942 = vsel %vm403, %v523, %v922
    %vm943 = vcmask 261120
    %v944 = vsel %vm943, %v941, %v928
    %v945 = vsel %vm943, %v942, %v930
    %vm946 = vcmask 392192
    %v947 = vsel %vm946, %v944, %v936
    %v948 = vsel %vm946, %v945, %v938
    %v949 = vld [vmem:[%s9] sm:$0xff]
    %v950 = vld [vmem:[%s9 + $0x8] sm:$0xff]
    %v951 = vld [vmem:[%s9 + $0x10] sm:$0xff]
    %v952 = vld [vmem:[%s9 + $0x18] sm:$0xff]
    %v953 = vld [vmem:[%s9 + $0x20] sm:$0xff]
    %v954 = vld [vmem:[%s9 + $0x28] sm:$0xff]
    %v955 = vld [vmem:[%s9 + $0x30] sm:$0xff]
    %v956 = vld [vmem:[%s9 + $0x38] sm:$0xff]
    %v957 = vld [vmem:[#allocation13] sm:$0x1]
    %v959 = vperm.slane %v957, 0
    %v962 = vsel %vm303, %v947, 0
    %v965 = vsel %vm303, %v948, 0
    %967 = vmatpush.msra.mxu0 0.0
    %968 = vmatpush.msra.mxu0 0.0
    %969 = vmatpush.msra.mxu0 0.0
    %970 = vmatpush.msra.mxu0 0.0
    %971 = vmatpush.msra.mxu0 0.0
    %972 = vmatpush.msra.mxu0 0.0
    %973 = vmatpush.msra.mxu0 0.0
    %974 = vmatpush.msra.mxu0 0.0
    %975 = vmatpush.msra.mxu0 %v956
    %976 = vmatpush.msra.mxu0 %v955
    %977 = vmatpush.msra.mxu0 %v954
    %978 = vmatpush.msra.mxu0 %v953
    %979 = vmatpush.msra.mxu0 %v952
    %980 = vmatpush.msra.mxu0 %v951
    %981 = vmatpush.msra.mxu0 %v950
    %982 = vmatpush.msra.mxu0 %v949
    %983 = vmatmul.f32.gmra.mxu0 %v962
    %v984 = vpop.f32.mrf.mxu0
    %v985 = vadd.f32 %v959, %v984
    %986 = vmatmul.f32.gmra.mxu0 %v965
    %v987 = vpop.f32.mrf.mxu0
    %v988 = vadd.f32 %v959, %v987
    %989 = vdwg.mxu0
    %v990 = vadd.f32 %v289, %v985
    %v991 = vadd.f32 %v290, %v988
    %v992 = vld [vmem:[%s15] sm:$0x1]
    %v993 = vld [vmem:[%s16] sm:$0x1]
    %v994 = vsel %vm303, %v990, 0.0
    %995 = vadd.xlane.f32.xlu0 %v994
    %v996 = vpop.xlane.xlu0 %995
    %v997 = vsel %vm303, %v991, 0.0
    %998 = vadd.xlane.f32.xlu0 %v997
    %v999 = vpop.xlane.xlu0 %998
    %v1000 = vrcp.pop 64.0
    %v1001 = vmul.f32 64.0, %v1000
    %v1002 = vsub.f32 1.0, %v1001
    %v1003 = vmul.f32 %v1000, %v1002
    %v1004 = vadd.f32 %v1000, %v1003
    %vm1005 = vweird.f32 %v1000
    %v1006 = vsel %vm1005, %v1000, %v1004
    %v1007 = vmul.f32 %v996, %v1006
    %v1008 = vmul.f32 %v999, %v1006
    %v1009 = vsub.f32 %v990, %v1007
    %v1010 = vsub.f32 %v991, %v1008
    %v1011 = vmul.f32 %v1009, %v1009
    %v1012 = vmul.f32 %v1010, %v1010
    %v1013 = vsel %vm303, %v1011, 0.0
    %1014 = vadd.xlane.f32.xlu0 %v1013
    %v1015 = vpop.xlane.xlu0 %1014
    %v1016 = vsel %vm303, %v1012, 0.0
    %1017 = vadd.xlane.f32.xlu0 %v1016
    %v1018 = vpop.xlane.xlu0 %1017
    %v1019 = vmul.f32 %v1015, %v1006
    %v1020 = vmul.f32 %v1018, %v1006
    %v1021 = vadd.f32 %v1019, 1e-05
    %v1022 = vadd.f32 %v1020, 1e-05
    %v1023 = vrsqrt.pop %v1021
    %v1024 = vmul.f32 %v1023, %v1021
    %v1025 = vmul.f32 %v1024, %v1023
    %v1026 = vmul.f32 0.5, %v1025
    %v1027 = vsub.f32 1.5, %v1026
    %v1028 = vmul.f32 %v1023, %v1027
    %vm1029 = vweird.f32 %v1021
    %vm1030 = vweird.f32 %v1023
    %vm1031 = vmor %vm1029, %vm1030
    %v1032 = vsel %vm1031, %v1023, %v1028
    %v1033 = vrsqrt.pop %v1022
    %v1034 = vmul.f32 %v1033, %v1022
    %v1035 = vmul.f32 %v1034, %v1033
    %v1036 = vmul.f32 0.5, %v1035
    %v1037 = vsub.f32 1.5, %v1036
    %v1038 = vmul.f32 %v1033, %v1037
    %vm1039 = vweird.f32 %v1022
    %vm1040 = vweird.f32 %v1033
    %vm1041 = vmor %vm1039, %vm1040
    %v1042 = vsel %vm1041, %v1033, %v1038
    %v1043 = vmul.f32 %v1009, %v1032
    %v1044 = vmul.f32 %v1010, %v1042
    %v1046 = vperm.slane %v992, 0
    %v1048 = vmul.f32 %v1043, %v1046
    %v1049 = vmul.f32 %v1044, %v1046
    %v1051 = vperm.slane %v993, 0
    %v1053 = vadd.f32 %v1048, %v1051
    %v1054 = vadd.f32 %v1049, %v1051
    %v1055 = vld [vmem:[%s11] sm:$0xff]
    %v1056 = vld [vmem:[%s11 + $0x8] sm:$0xff]
    %v1057 = vld [vmem:[%s11 + $0x10] sm:$0xff]
    %v1058 = vld [vmem:[%s11 + $0x18] sm:$0xff]
    %v1059 = vld [vmem:[%s11 + $0x20] sm:$0xff]
    %v1060 = vld [vmem:[%s11 + $0x28] sm:$0xff]
    %v1061 = vld [vmem:[%s11 + $0x30] sm:$0xff]
    %v1062 = vld [vmem:[%s11 + $0x38] sm:$0xff]
    %v1063 = vld [vmem:[%s11 + $0x40] sm:$0xff]
    %v1064 = vld [vmem:[%s11 + $0x48] sm:$0xff]
    %v1065 = vld [vmem:[%s11 + $0x50] sm:$0xff]
    %v1066 = vld [vmem:[%s11 + $0x58] sm:$0xff]
    %v1067 = vld [vmem:[%s11 + $0x60] sm:$0xff]
    %v1068 = vld [vmem:[%s11 + $0x68] sm:$0xff]
    %v1069 = vld [vmem:[%s11 + $0x70] sm:$0xff]
    %v1070 = vld [vmem:[%s11 + $0x78] sm:$0xff]
    %v1071 = vld [vmem:[#allocation14] sm:$0x3]
    %v1073 = vperm.slane %v1071, 0
    %v1074 = vperm.slane %v1071, 1
    %v1078 = vsel %vm303, %v1053, 0
    %v1081 = vsel %vm303, %v1054, 0
    %1083 = vmatpush.msra.mxu0 0.0
    %1084 = vmatpush.msra.mxu0 0.0
    %1085 = vmatpush.msra.mxu0 0.0
    %1086 = vmatpush.msra.mxu0 0.0
    %1087 = vmatpush.msra.mxu0 0.0
    %1088 = vmatpush.msra.mxu0 0.0
    %1089 = vmatpush.msra.mxu0 0.0
    %1090 = vmatpush.msra.mxu0 0.0
    %1091 = vmatpush.msra.mxu0 %v1069
    %1092 = vmatpush.msra.mxu0 %v1067
    %1093 = vmatpush.msra.mxu0 %v1065
    %1094 = vmatpush.msra.mxu0 %v1063
    %1095 = vmatpush.msra.mxu0 %v1061
    %1096 = vmatpush.msra.mxu0 %v1059
    %1097 = vmatpush.msra.mxu0 %v1057
    %1098 = vmatpush.msra.mxu0 %v1055
    %1099 = vmatmul.f32.gmra.mxu0 %v1078
    %v1100 = vpop.f32.mrf.mxu0
    %v1101 = vadd.f32 %v1073, %v1100
    %1102 = vmatmul.f32.gmra.mxu0 %v1081
    %v1103 = vpop.f32.mrf.mxu0
    %v1104 = vadd.f32 %v1073, %v1103
    %1105 = vdwg.mxu0
    %1106 = vmatpush.msra.mxu0 0.0
    %1107 = vmatpush.msra.mxu0 0.0
    %1108 = vmatpush.msra.mxu0 0.0
    %1109 = vmatpush.msra.mxu0 0.0
    %1110 = vmatpush.msra.mxu0 0.0
    %1111 = vmatpush.msra.mxu0 0.0
    %1112 = vmatpush.msra.mxu0 0.0
    %1113 = vmatpush.msra.mxu0 0.0
    %1114 = vmatpush.msra.mxu0 %v1070
    %1115 = vmatpush.msra.mxu0 %v1068
    %1116 = vmatpush.msra.mxu0 %v1066
    %1117 = vmatpush.msra.mxu0 %v1064
    %1118 = vmatpush.msra.mxu0 %v1062
    %1119 = vmatpush.msra.mxu0 %v1060
    %1120 = vmatpush.msra.mxu0 %v1058
    %1121 = vmatpush.msra.mxu0 %v1056
    %1122 = vmatmul.f32.gmra.mxu0 %v1078
    %v1123 = vpop.f32.mrf.mxu0
    %v1124 = vadd.f32 %v1074, %v1123
    %1125 = vmatmul.f32.gmra.mxu0 %v1081
    %v1126 = vpop.f32.mrf.mxu0
    %v1127 = vadd.f32 %v1074, %v1126
    %1128 = vdwg.mxu0
    %v1129 = vmul.f32 %v1101, 0.5
    %v1130 = vmul.f32 %v1124, 0.5
    %v1131 = vmul.f32 %v1104, 0.5
    %v1132 = vmul.f32 %v1127, 0.5
    %v1133 = vmul.f32 %v1101, 0.044715
    %v1134 = vmul.f32 %v1124, 0.044715
    %v1135 = vmul.f32 %v1104, 0.044715
    %v1136 = vmul.f32 %v1127, 0.044715
    %v1137 = vmul.f32 %v1133, %v1101
    %v1138 = vmul.f32 %v1134, %v1124
    %v1139 = vmul.f32 %v1135, %v1104
    %v1140 = vmul.f32 %v1136, %v1127
    %v1141 = vmul.f32 %v1137, %v1101
    %v1142 = vmul.f32 %v1138, %v1124
    %v1143 = vmul.f32 %v1139, %v1104
    %v1144 = vmul.f32 %v1140, %v1127
    %v1145 = vadd.f32 %v1101, %v1141
    %v1146 = vadd.f32 %v1124, %v1142
    %v1147 = vadd.f32 %v1104, %v1143
    %v1148 = vadd.f32 %v1127, %v1144
    %v1149 = vmul.f32 %v1145, 0.7978846
    %v1150 = vmul.f32 %v1146, 0.7978846
    %v1151 = vmul.f32 %v1147, 0.7978846
    %v1152 = vmul.f32 %v1148, 0.7978846
    %v1153 = vtanh.pop %v1149
    %v1154 = vtanh.pop %v1150
    %v1155 = vtanh.pop %v1151
    %v1156 = vtanh.pop %v1152
    %v1157 = vadd.f32 %v1153, 1.0
    %v1158 = vadd.f32 %v1154, 1.0
    %v1159 = vadd.f32 %v1155, 1.0
    %v1160 = vadd.f32 %v1156, 1.0
    %v1161 = vmul.f32 %v1129, %v1157
    %v1162 = vmul.f32 %v1130, %v1158
    %v1163 = vmul.f32 %v1131, %v1159
    %v1164 = vmul.f32 %v1132, %v1160
    %v1165 = vld [vmem:[%s13] sm:$0xff]
    %v1166 = vld [vmem:[%s13 + $0x8] sm:$0xff]
    %v1167 = vld [vmem:[%s13 + $0x10] sm:$0xff]
    %v1168 = vld [vmem:[%s13 + $0x18] sm:$0xff]
    %v1169 = vld [vmem:[%s13 + $0x20] sm:$0xff]
    %v1170 = vld [vmem:[%s13 + $0x28] sm:$0xff]
    %v1171 = vld [vmem:[%s13 + $0x30] sm:$0xff]
    %v1172 = vld [vmem:[%s13 + $0x38] sm:$0xff]
    %v1173 = vld [vmem:[%s13 + $0x40] sm:$0xff]
    %v1174 = vld [vmem:[%s13 + $0x48] sm:$0xff]
    %v1175 = vld [vmem:[%s13 + $0x50] sm:$0xff]
    %v1176 = vld [vmem:[%s13 + $0x58] sm:$0xff]
    %v1177 = vld [vmem:[%s13 + $0x60] sm:$0xff]
    %v1178 = vld [vmem:[%s13 + $0x68] sm:$0xff]
    %v1179 = vld [vmem:[%s13 + $0x70] sm:$0xff]
    %v1180 = vld [vmem:[%s13 + $0x78] sm:$0xff]
    %v1181 = vld [vmem:[%s13 + $0x80] sm:$0xff]
    %v1182 = vld [vmem:[%s13 + $0x88] sm:$0xff]
    %v1183 = vld [vmem:[%s13 + $0x90] sm:$0xff]
    %v1184 = vld [vmem:[%s13 + $0x98] sm:$0xff]
    %v1185 = vld [vmem:[%s13 + $0xa0] sm:$0xff]
    %v1186 = vld [vmem:[%s13 + $0xa8] sm:$0xff]
    %v1187 = vld [vmem:[%s13 + $0xb0] sm:$0xff]
    %v1188 = vld [vmem:[%s13 + $0xb8] sm:$0xff]
    %v1189 = vld [vmem:[%s13 + $0xc0] sm:$0xff]
    %v1190 = vld [vmem:[%s13 + $0xc8] sm:$0xff]
    %v1191 = vld [vmem:[%s13 + $0xd0] sm:$0xff]
    %v1192 = vld [vmem:[%s13 + $0xd8] sm:$0xff]
    %v1193 = vld [vmem:[%s13 + $0xe0] sm:$0xff]
    %v1194 = vld [vmem:[%s13 + $0xe8] sm:$0xff]
    %v1195 = vld [vmem:[%s13 + $0xf0] sm:$0xff]
    %v1196 = vld [vmem:[%s13 + $0xf8] sm:$0xff]
    %v1197 = vld [vmem:[%s14] sm:$0x1]
    %v1199 = vperm.slane %v1197, 0
    %1201 = vmatpush.msra.mxu0 %v1180
    %1202 = vmatpush.msra.mxu0 %v1179
    %1203 = vmatpush.msra.mxu0 %v1178
    %1204 = vmatpush.msra.mxu0 %v1177
    %1205 = vmatpush.msra.mxu0 %v1176
    %1206 = vmatpush.msra.mxu0 %v1175
    %1207 = vmatpush.msra.mxu0 %v1174
    %1208 = vmatpush.msra.mxu0 %v1173
    %1209 = vmatpush.msra.mxu0 %v1172
    %1210 = vmatpush.msra.mxu0 %v1171
    %1211 = vmatpush.msra.mxu0 %v1170
    %1212 = vmatpush.msra.mxu0 %v1169
    %1213 = vmatpush.msra.mxu0 %v1168
    %1214 = vmatpush.msra.mxu0 %v1167
    %1215 = vmatpush.msra.mxu0 %v1166
    %1216 = vmatpush.msra.mxu0 %v1165
    %1217 = vmatmul.f32.gmra.mxu0 %v1161
    %v1218 = vpop.f32.mrf.mxu0
    %v1219 = vadd.f32 %v1199, %v1218
    %1220 = vmatmul.f32.gmra.mxu0 %v1163
    %v1221 = vpop.f32.mrf.mxu0
    %v1222 = vadd.f32 %v1199, %v1221
    %1223 = vdwg.mxu0
    %1224 = vmatpush.msra.mxu0 %v1196
    %1225 = vmatpush.msra.mxu0 %v1195
    %1226 = vmatpush.msra.mxu0 %v1194
    %1227 = vmatpush.msra.mxu0 %v1193
    %1228 = vmatpush.msra.mxu0 %v1192
    %1229 = vmatpush.msra.mxu0 %v1191
    %1230 = vmatpush.msra.mxu0 %v1190
    %1231 = vmatpush.msra.mxu0 %v1189
    %1232 = vmatpush.msra.mxu0 %v1188
    %1233 = vmatpush.msra.mxu0 %v1187
    %1234 = vmatpush.msra.mxu0 %v1186
    %1235 = vmatpush.msra.mxu0 %v1185
    %1236 = vmatpush.msra.mxu0 %v1184
    %1237 = vmatpush.msra.mxu0 %v1183
    %1238 = vmatpush.msra.mxu0 %v1182
    %1239 = vmatpush.msra.mxu0 %v1181
    %1240 = vmatmul.f32.gmra.mxu0 %v1162
    %v1241 = vpop.f32.mrf.mxu0
    %v1242 = vadd.f32 %v1219, %v1241
    %1243 = vmatmul.f32.gmra.mxu0 %v1164
    %v1244 = vpop.f32.mrf.mxu0
    %v1245 = vadd.f32 %v1222, %v1244
    %1246 = vdwg.mxu0
    %v1247 = vadd.f32 %v1053, %v1242
    %v1248 = vadd.f32 %v1054, %v1245
    %v1249 = vld [vmem:[%s17] sm:$0x1]
    %v1250 = vld [vmem:[#allocation16] sm:$0x1]
    %v1251 = vsel %vm303, %v1247, 0.0
    %1252 = vadd.xlane.f32.xlu0 %v1251
    %v1253 = vpop.xlane.xlu0 %1252
    %v1254 = vsel %vm303, %v1248, 0.0
    %1255 = vadd.xlane.f32.xlu0 %v1254
    %v1256 = vpop.xlane.xlu0 %1255
    %v1257 = vmul.f32 %v1253, %v1006
    %v1258 = vmul.f32 %v1256, %v1006
    %v1259 = vsub.f32 %v1247, %v1257
    %v1260 = vsub.f32 %v1248, %v1258
    %v1261 = vmul.f32 %v1259, %v1259
    %v1262 = vmul.f32 %v1260, %v1260
    %v1263 = vsel %vm303, %v1261, 0.0
    %1264 = vadd.xlane.f32.xlu0 %v1263
    %v1265 = vpop.xlane.xlu0 %1264
    %v1266 = vsel %vm303, %v1262, 0.0
    %1267 = vadd.xlane.f32.xlu0 %v1266
    %v1268 = vpop.xlane.xlu0 %1267
    %v1269 = vmul.f32 %v1265, %v1006
    %v1270 = vmul.f32 %v1268, %v1006
    %v1271 = vadd.f32 %v1269, 1e-05
    %v1272 = vadd.f32 %v1270, 1e-05
    %v1273 = vrsqrt.pop %v1271
    %v1274 = vmul.f32 %v1273, %v1271
    %v1275 = vmul.f32 %v1274, %v1273
    %v1276 = vmul.f32 0.5, %v1275
    %v1277 = vsub.f32 1.5, %v1276
    %v1278 = vmul.f32 %v1273, %v1277
    %vm1279 = vweird.f32 %v1271
    %vm1280 = vweird.f32 %v1273
    %vm1281 = vmor %vm1279, %vm1280
    %v1282 = vsel %vm1281, %v1273, %v1278
    %v1283 = vrsqrt.pop %v1272
    %v1284 = vmul.f32 %v1283, %v1272
    %v1285 = vmul.f32 %v1284, %v1283
    %v1286 = vmul.f32 0.5, %v1285
    %v1287 = vsub.f32 1.5, %v1286
    %v1288 = vmul.f32 %v1283, %v1287
    %vm1289 = vweird.f32 %v1272
    %vm1290 = vweird.f32 %v1283
    %vm1291 = vmor %vm1289, %vm1290
    %v1292 = vsel %vm1291, %v1283, %v1288
    %v1293 = vmul.f32 %v1259, %v1282
    %v1294 = vmul.f32 %v1260, %v1292
    %v1296 = vperm.slane %v1249, 0
    %v1298 = vmul.f32 %v1293, %v1296
    %v1299 = vmul.f32 %v1294, %v1296
    %v1301 = vperm.slane %v1250, 0
    %v1303 = vadd.f32 %v1298, %v1301
    %v1304 = vadd.f32 %v1299, %v1301
    %s1305 = scalar_lea.vmem %s3, 64
    %v1306 = vld [vmem:[%s1305] sm:$0xff]
    %v1307 = vld [vmem:[%s1305 + $0x8] sm:$0xff]
    %v1308 = vld [vmem:[%s1305 + $0x10] sm:$0xff]
    %v1309 = vld [vmem:[%s1305 + $0x18] sm:$0xff]
    %v1310 = vld [vmem:[%s1305 + $0x20] sm:$0xff]
    %v1311 = vld [vmem:[%s1305 + $0x28] sm:$0xff]
    %v1312 = vld [vmem:[%s1305 + $0x30] sm:$0xff]
    %v1313 = vld [vmem:[%s1305 + $0x38] sm:$0xff]
    %s1314 = scalar_lea.vmem [#allocation8], 1
    %v1315 = vld [vmem:[%s1314] sm:$0x1]
    %v1317 = vperm.slane %v1315, 0
    %v1320 = vsel %vm303, %v1303, 0
    %v1323 = vsel %vm303, %v1304, 0
    %1325 = vmatpush.msra.mxu0 0.0
    %1326 = vmatpush.msra.mxu0 0.0
    %1327 = vmatpush.msra.mxu0 0.0
    %1328 = vmatpush.msra.mxu0 0.0
    %1329 = vmatpush.msra.mxu0 0.0
    %1330 = vmatpush.msra.mxu0 0.0
    %1331 = vmatpush.msra.mxu0 0.0
    %1332 = vmatpush.msra.mxu0 0.0
    %1333 = vmatpush.msra.mxu0 %v1313
    %1334 = vmatpush.msra.mxu0 %v1312
    %1335 = vmatpush.msra.mxu0 %v1311
    %1336 = vmatpush.msra.mxu0 %v1310
    %1337 = vmatpush.msra.mxu0 %v1309
    %1338 = vmatpush.msra.mxu0 %v1308
    %1339 = vmatpush.msra.mxu0 %v1307
    %1340 = vmatpush.msra.mxu0 %v1306
    %1341 = vmatmul.f32.gmra.mxu0 %v1320
    %v1342 = vpop.f32.mrf.mxu0
    %v1343 = vadd.f32 %v1317, %v1342
    %1344 = vmatmul.f32.gmra.mxu0 %v1323
    %v1345 = vpop.f32.mrf.mxu0
    %v1346 = vadd.f32 %v1317, %v1345
    %1347 = vdwg.mxu0
    %s1348 = scalar_lea.vmem %s5, 64
    %v1349 = vld [vmem:[%s1348] sm:$0xff]
    %v1350 = vld [vmem:[%s1348 + $0x8] sm:$0xff]
    %v1351 = vld [vmem:[%s1348 + $0x10] sm:$0xff]
    %v1352 = vld [vmem:[%s1348 + $0x18] sm:$0xff]
    %v1353 = vld [vmem:[%s1348 + $0x20] sm:$0xff]
    %v1354 = vld [vmem:[%s1348 + $0x28] sm:$0xff]
    %v1355 = vld [vmem:[%s1348 + $0x30] sm:$0xff]
    %v1356 = vld [vmem:[%s1348 + $0x38] sm:$0xff]
    %s1357 = scalar_lea.vmem [#allocation10], 1
    %v1358 = vld [vmem:[%s1357] sm:$0x1]
    %v1360 = vperm.slane %v1358, 0
    %1362 = vmatpush.msra.mxu0 0.0
    %1363 = vmatpush.msra.mxu0 0.0
    %1364 = vmatpush.msra.mxu0 0.0
    %1365 = vmatpush.msra.mxu0 0.0
    %1366 = vmatpush.msra.mxu0 0.0
    %1367 = vmatpush.msra.mxu0 0.0
    %1368 = vmatpush.msra.mxu0 0.0
    %1369 = vmatpush.msra.mxu0 0.0
    %1370 = vmatpush.msra.mxu0 %v1356
    %1371 = vmatpush.msra.mxu0 %v1355
    %1372 = vmatpush.msra.mxu0 %v1354
    %1373 = vmatpush.msra.mxu0 %v1353
    %1374 = vmatpush.msra.mxu0 %v1352
    %1375 = vmatpush.msra.mxu0 %v1351
    %1376 = vmatpush.msra.mxu0 %v1350
    %1377 = vmatpush.msra.mxu0 %v1349
    %1378 = vmatmul.f32.gmra.mxu0 %v1320
    %v1379 = vpop.f32.mrf.mxu0
    %v1380 = vadd.f32 %v1360, %v1379
    %1381 = vmatmul.f32.gmra.mxu0 %v1323
    %v1382 = vpop.f32.mrf.mxu0
    %v1383 = vadd.f32 %v1360, %v1382
    %1384 = vdwg.mxu0
    %s1385 = scalar_lea.vmem %s7, 64
    %v1386 = vld [vmem:[%s1385] sm:$0xff]
    %v1387 = vld [vmem:[%s1385 + $0x8] sm:$0xff]
    %v1388 = vld [vmem:[%s1385 + $0x10] sm:$0xff]
    %v1389 = vld [vmem:[%s1385 + $0x18] sm:$0xff]
    %v1390 = vld [vmem:[%s1385 + $0x20] sm:$0xff]
    %v1391 = vld [vmem:[%s1385 + $0x28] sm:$0xff]
    %v1392 = vld [vmem:[%s1385 + $0x30] sm:$0xff]
    %v1393 = vld [vmem:[%s1385 + $0x38] sm:$0xff]
    %s1394 = scalar_lea.vmem [#allocation11], 1
    %v1395 = vld [vmem:[%s1394] sm:$0x1]
    %v1397 = vperm.slane %v1395, 0
    %1399 = vmatpush.msra.mxu0 0.0
    %1400 = vmatpush.msra.mxu0 0.0
    %1401 = vmatpush.msra.mxu0 0.0
    %1402 = vmatpush.msra.mxu0 0.0
    %1403 = vmatpush.msra.mxu0 0.0
    %1404 = vmatpush.msra.mxu0 0.0
    %1405 = vmatpush.msra.mxu0 0.0
    %1406 = vmatpush.msra.mxu0 0.0
    %1407 = vmatpush.msra.mxu0 %v1393
    %1408 = vmatpush.msra.mxu0 %v1392
    %1409 = vmatpush.msra.mxu0 %v1391
    %1410 = vmatpush.msra.mxu0 %v1390
    %1411 = vmatpush.msra.mxu0 %v1389
    %1412 = vmatpush.msra.mxu0 %v1388
    %1413 = vmatpush.msra.mxu0 %v1387
    %1414 = vmatpush.msra.mxu0 %v1386
    %1415 = vmatmul.f32.gmra.mxu0 %v1320
    %v1416 = vpop.f32.mrf.mxu0
    %v1417 = vadd.f32 %v1397, %v1416
    %1418 = vmatmul.f32.gmra.mxu0 %v1323
    %v1419 = vpop.f32.mrf.mxu0
    %v1420 = vadd.f32 %v1397, %v1419
    %1421 = vdwg.mxu0
    %v1423 = vsel %vm403, %v1343, 0
    %v1426 = vsel %vm403, %v1380, 0
    %1428 = vmatpush.xpose.msra.mxu0 0.0
    %1429 = vmatpush.xpose.msra.mxu0 0.0
    %1430 = vmatpush.xpose.msra.mxu0 0.0
    %1431 = vmatpush.xpose.msra.mxu0 0.0
    %1432 = vmatpush.xpose.msra.mxu0 0.0
    %1433 = vmatpush.xpose.msra.mxu0 0.0
    %1434 = vmatpush.xpose.msra.mxu0 0.0
    %1435 = vmatpush.xpose.msra.mxu0 0.0
    %1436 = vmatpush.xpose.msra.mxu0 0.0
    %1437 = vmatpush.xpose.msra.mxu0 0.0
    %1438 = vmatpush.xpose.msra.mxu0 0.0
    %1439 = vmatpush.xpose.msra.mxu0 0.0
    %1440 = vmatpush.xpose.msra.mxu0 0.0
    %1441 = vmatpush.xpose.msra.mxu0 0.0
    %1442 = vmatpush.xpose.msra.mxu0 0.0
    %1443 = vmatpush.xpose.msra.mxu0 %v1426
    %1444 = vmatmul.f32.gmra.mxu0 %v1423
    %v1445 = vpop.f32.mrf.mxu0
    %v1446 = vadd.f32 0.0, %v1445
    %1447 = vdwg.mxu0
    %v1449 = vsel %vm403, %v1346, 0
    %v1452 = vsel %vm403, %v1383, 0
    %1454 = vmatpush.xpose.msra.mxu0 0.0
    %1455 = vmatpush.xpose.msra.mxu0 0.0
    %1456 = vmatpush.xpose.msra.mxu0 0.0
    %1457 = vmatpush.xpose.msra.mxu0 0.0
    %1458 = vmatpush.xpose.msra.mxu0 0.0
    %1459 = vmatpush.xpose.msra.mxu0 0.0
    %1460 = vmatpush.xpose.msra.mxu0 0.0
    %1461 = vmatpush.xpose.msra.mxu0 0.0
    %1462 = vmatpush.xpose.msra.mxu0 0.0
    %1463 = vmatpush.xpose.msra.mxu0 0.0
    %1464 = vmatpush.xpose.msra.mxu0 0.0
    %1465 = vmatpush.xpose.msra.mxu0 0.0
    %1466 = vmatpush.xpose.msra.mxu0 0.0
    %1467 = vmatpush.xpose.msra.mxu0 0.0
    %1468 = vmatpush.xpose.msra.mxu0 0.0
    %1469 = vmatpush.xpose.msra.mxu0 %v1452
    %1470 = vmatmul.f32.gmra.mxu0 %v1449
    %v1471 = vpop.f32.mrf.mxu0
    %v1472 = vadd.f32 0.0, %v1471
    %1473 = vdwg.mxu0
    %v1474 = vsel %vm456, %v1446, -inf
    %1475 = vmax.xlane.f32.xlu0 %v1474
    %v1476 = vpop.xlane.xlu0 %1475
    %v1477 = vsel %vm456, %v1472, -inf
    %1478 = vmax.xlane.f32.xlu0 %v1477
    %v1479 = vpop.xlane.xlu0 %1478
    %v1480 = vsub.f32 %v1446, %v1476
    %v1481 = vsub.f32 %v1472, %v1479
    %v1482 = vmul.f32 %v1480, 1.442695
    %v1483 = vpow.pop %v1482
    %v1484 = vmul.f32 %v1481, 1.442695
    %v1485 = vpow.pop %v1484
    %v1486 = vsel %vm456, %v1483, 0.0
    %1487 = vadd.xlane.f32.xlu0 %v1486
    %v1488 = vpop.xlane.xlu0 %1487
    %v1489 = vsel %vm456, %v1485, 0.0
    %1490 = vadd.xlane.f32.xlu0 %v1489
    %v1491 = vpop.xlane.xlu0 %1490
    %v1492 = vrcp.pop %v1488
    %v1493 = vrcp.pop %v1491
    %v1494 = vmul.f32 %v1483, %v1492
    %v1495 = vmul.f32 %v1485, %v1493
    %v1497 = vsel %vm456, %v1494, 0
    %1499 = vmatpush.msra.mxu0 0.0
    %1500 = vmatpush.msra.mxu0 0.0
    %1501 = vmatpush.msra.mxu0 0.0
    %1502 = vmatpush.msra.mxu0 0.0
    %1503 = vmatpush.msra.mxu0 0.0
    %1504 = vmatpush.msra.mxu0 0.0
    %1505 = vmatpush.msra.mxu0 0.0
    %1506 = vmatpush.msra.mxu0 0.0
    %1507 = vmatpush.msra.mxu0 0.0
    %1508 = vmatpush.msra.mxu0 0.0
    %1509 = vmatpush.msra.mxu0 0.0
    %1510 = vmatpush.msra.mxu0 0.0
    %1511 = vmatpush.msra.mxu0 0.0
    %1512 = vmatpush.msra.mxu0 0.0
    %1513 = vmatpush.msra.mxu0 0.0
    %1514 = vmatpush.msra.mxu0 %v1417
    %1515 = vmatmul.f32.gmra.mxu0 %v1497
    %v1516 = vpop.f32.mrf.mxu0
    %v1517 = vadd.f32 0.0, %v1516
    %1518 = vdwg.mxu0
    %v1520 = vsel %vm456, %v1495, 0
    %1522 = vmatpush.msra.mxu0 0.0
    %1523 = vmatpush.msra.mxu0 0.0
    %1524 = vmatpush.msra.mxu0 0.0
    %1525 = vmatpush.msra.mxu0 0.0
    %1526 = vmatpush.msra.mxu0 0.0
    %1527 = vmatpush.msra.mxu0 0.0
    %1528 = vmatpush.msra.mxu0 0.0
    %1529 = vmatpush.msra.mxu0 0.0
    %1530 = vmatpush.msra.mxu0 0.0
    %1531 = vmatpush.msra.mxu0 0.0
    %1532 = vmatpush.msra.mxu0 0.0
    %1533 = vmatpush.msra.mxu0 0.0
    %1534 = vmatpush.msra.mxu0 0.0
    %1535 = vmatpush.msra.mxu0 0.0
    %1536 = vmatpush.msra.mxu0 0.0
    %1537 = vmatpush.msra.mxu0 %v1420
    %1538 = vmatmul.f32.gmra.mxu0 %v1520
    %v1539 = vpop.f32.mrf.mxu0
    %v1540 = vadd.f32 0.0, %v1539
    %1541 = vdwg.mxu0
    %1542 = vrot.lane.b32.xlu0 %v1343, 112
    %v1543 = vpop.permute.xlu0 %1542
    %1544 = vrot.lane.b32.xlu0 %v1380, 112
    %v1545 = vpop.permute.xlu0 %1544
    %v1546 = vsel %vm403, %v1543, 0
    %v1548 = vsel %vm403, %v1545, 0
    %1550 = vmatpush.xpose.msra.mxu0 0.0
    %1551 = vmatpush.xpose.msra.mxu0 0.0
    %1552 = vmatpush.xpose.msra.mxu0 0.0
    %1553 = vmatpush.xpose.msra.mxu0 0.0
    %1554 = vmatpush.xpose.msra.mxu0 0.0
    %1555 = vmatpush.xpose.msra.mxu0 0.0
    %1556 = vmatpush.xpose.msra.mxu0 0.0
    %1557 = vmatpush.xpose.msra.mxu0 0.0
    %1558 = vmatpush.xpose.msra.mxu0 0.0
    %1559 = vmatpush.xpose.msra.mxu0 0.0
    %1560 = vmatpush.xpose.msra.mxu0 0.0
    %1561 = vmatpush.xpose.msra.mxu0 0.0
    %1562 = vmatpush.xpose.msra.mxu0 0.0
    %1563 = vmatpush.xpose.msra.mxu0 0.0
    %1564 = vmatpush.xpose.msra.mxu0 0.0
    %1565 = vmatpush.xpose.msra.mxu0 %v1548
    %1566 = vmatmul.f32.gmra.mxu0 %v1546
    %v1567 = vpop.f32.mrf.mxu0
    %v1568 = vadd.f32 0.0, %v1567
    %1569 = vdwg.mxu0
    %1570 = vrot.lane.b32.xlu0 %v1346, 112
    %v1571 = vpop.permute.xlu0 %1570
    %1572 = vrot.lane.b32.xlu0 %v1383, 112
    %v1573 = vpop.permute.xlu0 %1572
    %v1574 = vsel %vm403, %v1571, 0
    %v1576 = vsel %vm403, %v1573, 0
    %1578 = vmatpush.xpose.msra.mxu0 0.0
    %1579 = vmatpush.xpose.msra.mxu0 0.0
    %1580 = vmatpush.xpose.msra.mxu0 0.0
    %1581 = vmatpush.xpose.msra.mxu0 0.0
    %1582 = vmatpush.xpose.msra.mxu0 0.0
    %1583 = vmatpush.xpose.msra.mxu0 0.0
    %1584 = vmatpush.xpose.msra.mxu0 0.0
    %1585 = vmatpush.xpose.msra.mxu0 0.0
    %1586 = vmatpush.xpose.msra.mxu0 0.0
    %1587 = vmatpush.xpose.msra.mxu0 0.0
    %1588 = vmatpush.xpose.msra.mxu0 0.0
    %1589 = vmatpush.xpose.msra.mxu0 0.0
    %1590 = vmatpush.xpose.msra.mxu0 0.0
    %1591 = vmatpush.xpose.msra.mxu0 0.0
    %1592 = vmatpush.xpose.msra.mxu0 0.0
    %1593 = vmatpush.xpose.msra.mxu0 %v1576
    %1594 = vmatmul.f32.gmra.mxu0 %v1574
    %v1595 = vpop.f32.mrf.mxu0
    %v1596 = vadd.f32 0.0, %v1595
    %1597 = vdwg.mxu0
    %v1598 = vsel %vm456, %v1568, -inf
    %1599 = vmax.xlane.f32.xlu0 %v1598
    %v1600 = vpop.xlane.xlu0 %1599
    %v1601 = vsel %vm456, %v1596, -inf
    %1602 = vmax.xlane.f32.xlu0 %v1601
    %v1603 = vpop.xlane.xlu0 %1602
    %v1604 = vsub.f32 %v1568, %v1600
    %v1605 = vsub.f32 %v1596, %v1603
    %v1606 = vmul.f32 %v1604, 1.442695
    %v1607 = vpow.pop %v1606
    %v1608 = vmul.f32 %v1605, 1.442695
    %v1609 = vpow.pop %v1608
    %v1610 = vsel %vm456, %v1607, 0.0
    %1611 = vadd.xlane.f32.xlu0 %v1610
    %v1612 = vpop.xlane.xlu0 %1611
    %v1613 = vsel %vm456, %v1609, 0.0
    %1614 = vadd.xlane.f32.xlu0 %v1613
    %v1615 = vpop.xlane.xlu0 %1614
    %v1616 = vrcp.pop %v1612
    %v1617 = vrcp.pop %v1615
    %v1618 = vmul.f32 %v1607, %v1616
    %v1619 = vmul.f32 %v1609, %v1617
    %1621 = vrot.lane.b32.xlu0 %v1417, 112
    %v1622 = vpop.permute.xlu0 %1621
    %v1625 = vsel %vm456, %v1618, 0
    %1627 = vmatpush.msra.mxu0 0.0
    %1628 = vmatpush.msra.mxu0 0.0
    %1629 = vmatpush.msra.mxu0 0.0
    %1630 = vmatpush.msra.mxu0 0.0
    %1631 = vmatpush.msra.mxu0 0.0
    %1632 = vmatpush.msra.mxu0 0.0
    %1633 = vmatpush.msra.mxu0 0.0
    %1634 = vmatpush.msra.mxu0 0.0
    %1635 = vmatpush.msra.mxu0 0.0
    %1636 = vmatpush.msra.mxu0 0.0
    %1637 = vmatpush.msra.mxu0 0.0
    %1638 = vmatpush.msra.mxu0 0.0
    %1639 = vmatpush.msra.mxu0 0.0
    %1640 = vmatpush.msra.mxu0 0.0
    %1641 = vmatpush.msra.mxu0 0.0
    %1642 = vmatpush.msra.mxu0 %v1622
    %1643 = vmatmul.f32.gmra.mxu0 %v1625
    %v1644 = vpop.f32.mrf.mxu0
    %v1645 = vadd.f32 0.0, %v1644
    %1646 = vdwg.mxu0
    %1648 = vrot.lane.b32.xlu0 %v1420, 112
    %v1649 = vpop.permute.xlu0 %1648
    %v1652 = vsel %vm456, %v1619, 0
    %1654 = vmatpush.msra.mxu0 0.0
    %1655 = vmatpush.msra.mxu0 0.0
    %1656 = vmatpush.msra.mxu0 0.0
    %1657 = vmatpush.msra.mxu0 0.0
    %1658 = vmatpush.msra.mxu0 0.0
    %1659 = vmatpush.msra.mxu0 0.0
    %1660 = vmatpush.msra.mxu0 0.0
    %1661 = vmatpush.msra.mxu0 0.0
    %1662 = vmatpush.msra.mxu0 0.0
    %1663 = vmatpush.msra.mxu0 0.0
    %1664 = vmatpush.msra.mxu0 0.0
    %1665 = vmatpush.msra.mxu0 0.0
    %1666 = vmatpush.msra.mxu0 0.0
    %1667 = vmatpush.msra.mxu0 0.0
    %1668 = vmatpush.msra.mxu0 0.0
    %1669 = vmatpush.msra.mxu0 %v1649
    %1670 = vmatmul.f32.gmra.mxu0 %v1652
    %v1671 = vpop.f32.mrf.mxu0
    %v1672 = vadd.f32 0.0, %v1671
    %1673 = vdwg.mxu0
    %1674 = vrot.lane.b32.xlu0 %v1343, 96
    %v1675 = vpop.permute.xlu0 %1674
    %1676 = vrot.lane.b32.xlu0 %v1380, 96
    %v1677 = vpop.permute.xlu0 %1676
    %v1678 = vsel %vm403, %v1675, 0
    %v1680 = vsel %vm403, %v1677, 0
    %1682 = vmatpush.xpose.msra.mxu0 0.0
    %1683 = vmatpush.xpose.msra.mxu0 0.0
    %1684 = vmatpush.xpose.msra.mxu0 0.0
    %1685 = vmatpush.xpose.msra.mxu0 0.0
    %1686 = vmatpush.xpose.msra.mxu0 0.0
    %1687 = vmatpush.xpose.msra.mxu0 0.0
    %1688 = vmatpush.xpose.msra.mxu0 0.0
    %1689 = vmatpush.xpose.msra.mxu0 0.0
    %1690 = vmatpush.xpose.msra.mxu0 0.0
    %1691 = vmatpush.xpose.msra.mxu0 0.0
    %1692 = vmatpush.xpose.msra.mxu0 0.0
    %1693 = vmatpush.xpose.msra.mxu0 0.0
    %1694 = vmatpush.xpose.msra.mxu0 0.0
    %1695 = vmatpush.xpose.msra.mxu0 0.0
    %1696 = vmatpush.xpose.msra.mxu0 0.0
    %1697 = vmatpush.xpose.msra.mxu0 %v1680
    %1698 = vmatmul.f32.gmra.mxu0 %v1678
    %v1699 = vpop.f32.mrf.mxu0
    %v1700 = vadd.f32 0.0, %v1699
    %1701 = vdwg.mxu0
    %1702 = vrot.lane.b32.xlu0 %v1346, 96
    %v1703 = vpop.permute.xlu0 %1702
    %1704 = vrot.lane.b32.xlu0 %v1383, 96
    %v1705 = vpop.permute.xlu0 %1704
    %v1706 = vsel %vm403, %v1703, 0
    %v1708 = vsel %vm403, %v1705, 0
    %1710 = vmatpush.xpose.msra.mxu0 0.0
    %1711 = vmatpush.xpose.msra.mxu0 0.0
    %1712 = vmatpush.xpose.msra.mxu0 0.0
    %1713 = vmatpush.xpose.msra.mxu0 0.0
    %1714 = vmatpush.xpose.msra.mxu0 0.0
    %1715 = vmatpush.xpose.msra.mxu0 0.0
    %1716 = vmatpush.xpose.msra.mxu0 0.0
    %1717 = vmatpush.xpose.msra.mxu0 0.0
    %1718 = vmatpush.xpose.msra.mxu0 0.0
    %1719 = vmatpush.xpose.msra.mxu0 0.0
    %1720 = vmatpush.xpose.msra.mxu0 0.0
    %1721 = vmatpush.xpose.msra.mxu0 0.0
    %1722 = vmatpush.xpose.msra.mxu0 0.0
    %1723 = vmatpush.xpose.msra.mxu0 0.0
    %1724 = vmatpush.xpose.msra.mxu0 0.0
    %1725 = vmatpush.xpose.msra.mxu0 %v1708
    %1726 = vmatmul.f32.gmra.mxu0 %v1706
    %v1727 = vpop.f32.mrf.mxu0
    %v1728 = vadd.f32 0.0, %v1727
    %1729 = vdwg.mxu0
    %v1730 = vsel %vm456, %v1700, -inf
    %1731 = vmax.xlane.f32.xlu0 %v1730
    %v1732 = vpop.xlane.xlu0 %1731
    %v1733 = vsel %vm456, %v1728, -inf
    %1734 = vmax.xlane.f32.xlu0 %v1733
    %v1735 = vpop.xlane.xlu0 %1734
    %v1736 = vsub.f32 %v1700, %v1732
    %v1737 = vsub.f32 %v1728, %v1735
    %v1738 = vmul.f32 %v1736, 1.442695
    %v1739 = vpow.pop %v1738
    %v1740 = vmul.f32 %v1737, 1.442695
    %v1741 = vpow.pop %v1740
    %v1742 = vsel %vm456, %v1739, 0.0
    %1743 = vadd.xlane.f32.xlu0 %v1742
    %v1744 = vpop.xlane.xlu0 %1743
    %v1745 = vsel %vm456, %v1741, 0.0
    %1746 = vadd.xlane.f32.xlu0 %v1745
    %v1747 = vpop.xlane.xlu0 %1746
    %v1748 = vrcp.pop %v1744
    %v1749 = vrcp.pop %v1747
    %v1750 = vmul.f32 %v1739, %v1748
    %v1751 = vmul.f32 %v1741, %v1749
    %1752 = vrot.lane.b32.xlu0 %v1417, 96
    %v1753 = vpop.permute.xlu0 %1752
    %v1756 = vsel %vm456, %v1750, 0
    %1758 = vmatpush.msra.mxu0 0.0
    %1759 = vmatpush.msra.mxu0 0.0
    %1760 = vmatpush.msra.mxu0 0.0
    %1761 = vmatpush.msra.mxu0 0.0
    %1762 = vmatpush.msra.mxu0 0.0
    %1763 = vmatpush.msra.mxu0 0.0
    %1764 = vmatpush.msra.mxu0 0.0
    %1765 = vmatpush.msra.mxu0 0.0
    %1766 = vmatpush.msra.mxu0 0.0
    %1767 = vmatpush.msra.mxu0 0.0
    %1768 = vmatpush.msra.mxu0 0.0
    %1769 = vmatpush.msra.mxu0 0.0
    %1770 = vmatpush.msra.mxu0 0.0
    %1771 = vmatpush.msra.mxu0 0.0
    %1772 = vmatpush.msra.mxu0 0.0
    %1773 = vmatpush.msra.mxu0 %v1753
    %1774 = vmatmul.f32.gmra.mxu0 %v1756
    %v1775 = vpop.f32.mrf.mxu0
    %v1776 = vadd.f32 0.0, %v1775
    %1777 = vdwg.mxu0
    %1778 = vrot.lane.b32.xlu0 %v1420, 96
    %v1779 = vpop.permute.xlu0 %1778
    %v1782 = vsel %vm456, %v1751, 0
    %1784 = vmatpush.msra.mxu0 0.0
    %1785 = vmatpush.msra.mxu0 0.0
    %1786 = vmatpush.msra.mxu0 0.0
    %1787 = vmatpush.msra.mxu0 0.0
    %1788 = vmatpush.msra.mxu0 0.0
    %1789 = vmatpush.msra.mxu0 0.0
    %1790 = vmatpush.msra.mxu0 0.0
    %1791 = vmatpush.msra.mxu0 0.0
    %1792 = vmatpush.msra.mxu0 0.0
    %1793 = vmatpush.msra.mxu0 0.0
    %1794 = vmatpush.msra.mxu0 0.0
    %1795 = vmatpush.msra.mxu0 0.0
    %1796 = vmatpush.msra.mxu0 0.0
    %1797 = vmatpush.msra.mxu0 0.0
    %1798 = vmatpush.msra.mxu0 0.0
    %1799 = vmatpush.msra.mxu0 %v1779
    %1800 = vmatmul.f32.gmra.mxu0 %v1782
    %v1801 = vpop.f32.mrf.mxu0
    %v1802 = vadd.f32 0.0, %v1801
    %1803 = vdwg.mxu0
    %1804 = vrot.lane.b32.xlu0 %v1343, 80
    %v1805 = vpop.permute.xlu0 %1804
    %1806 = vrot.lane.b32.xlu0 %v1380, 80
    %v1807 = vpop.permute.xlu0 %1806
    %v1808 = vsel %vm403, %v1805, 0
    %v1810 = vsel %vm403, %v1807, 0
    %1812 = vmatpush.xpose.msra.mxu0 0.0
    %1813 = vmatpush.xpose.msra.mxu0 0.0
    %1814 = vmatpush.xpose.msra.mxu0 0.0
    %1815 = vmatpush.xpose.msra.mxu0 0.0
    %1816 = vmatpush.xpose.msra.mxu0 0.0
    %1817 = vmatpush.xpose.msra.mxu0 0.0
    %1818 = vmatpush.xpose.msra.mxu0 0.0
    %1819 = vmatpush.xpose.msra.mxu0 0.0
    %1820 = vmatpush.xpose.msra.mxu0 0.0
    %1821 = vmatpush.xpose.msra.mxu0 0.0
    %1822 = vmatpush.xpose.msra.mxu0 0.0
    %1823 = vmatpush.xpose.msra.mxu0 0.0
    %1824 = vmatpush.xpose.msra.mxu0 0.0
    %1825 = vmatpush.xpose.msra.mxu0 0.0
    %1826 = vmatpush.xpose.msra.mxu0 0.0
    %1827 = vmatpush.xpose.msra.mxu0 %v1810
    %1828 = vmatmul.f32.gmra.mxu0 %v1808
    %v1829 = vpop.f32.mrf.mxu0
    %v1830 = vadd.f32 0.0, %v1829
    %1831 = vdwg.mxu0
    %1832 = vrot.lane.b32.xlu0 %v1346, 80
    %v1833 = vpop.permute.xlu0 %1832
    %1834 = vrot.lane.b32.xlu0 %v1383, 80
    %v1835 = vpop.permute.xlu0 %1834
    %v1836 = vsel %vm403, %v1833, 0
    %v1838 = vsel %vm403, %v1835, 0
    %1840 = vmatpush.xpose.msra.mxu0 0.0
    %1841 = vmatpush.xpose.msra.mxu0 0.0
    %1842 = vmatpush.xpose.msra.mxu0 0.0
    %1843 = vmatpush.xpose.msra.mxu0 0.0
    %1844 = vmatpush.xpose.msra.mxu0 0.0
    %1845 = vmatpush.xpose.msra.mxu0 0.0
    %1846 = vmatpush.xpose.msra.mxu0 0.0
    %1847 = vmatpush.xpose.msra.mxu0 0.0
    %1848 = vmatpush.xpose.msra.mxu0 0.0
    %1849 = vmatpush.xpose.msra.mxu0 0.0
    %1850 = vmatpush.xpose.msra.mxu0 0.0
    %1851 = vmatpush.xpose.msra.mxu0 0.0
    %1852 = vmatpush.xpose.msra.mxu0 0.0
    %1853 = vmatpush.xpose.msra.mxu0 0.0
    %1854 = vmatpush.xpose.msra.mxu0 0.0
    %1855 = vmatpush.xpose.msra.mxu0 %v1838
    %1856 = vmatmul.f32.gmra.mxu0 %v1836
    %v1857 = vpop.f32.mrf.mxu0
    %v1858 = vadd.f32 0.0, %v1857
    %1859 = vdwg.mxu0
    %v1860 = vsel %vm456, %v1830, -inf
    %1861 = vmax.xlane.f32.xlu0 %v1860
    %v1862 = vpop.xlane.xlu0 %1861
    %v1863 = vsel %vm456, %v1858, -inf
    %1864 = vmax.xlane.f32.xlu0 %v1863
    %v1865 = vpop.xlane.xlu0 %1864
    %v1866 = vsub.f32 %v1830, %v1862
    %v1867 = vsub.f32 %v1858, %v1865
    %v1868 = vmul.f32 %v1866, 1.442695
    %v1869 = vpow.pop %v1868
    %v1870 = vmul.f32 %v1867, 1.442695
    %v1871 = vpow.pop %v1870
    %v1872 = vsel %vm456, %v1869, 0.0
    %1873 = vadd.xlane.f32.xlu0 %v1872
    %v1874 = vpop.xlane.xlu0 %1873
    %v1875 = vsel %vm456, %v1871, 0.0
    %1876 = vadd.xlane.f32.xlu0 %v1875
    %v1877 = vpop.xlane.xlu0 %1876
    %v1878 = vrcp.pop %v1874
    %v1879 = vrcp.pop %v1877
    %v1880 = vmul.f32 %v1869, %v1878
    %v1881 = vmul.f32 %v1871, %v1879
    %1882 = vrot.lane.b32.xlu0 %v1417, 80
    %v1883 = vpop.permute.xlu0 %1882
    %v1886 = vsel %vm456, %v1880, 0
    %1888 = vmatpush.msra.mxu0 0.0
    %1889 = vmatpush.msra.mxu0 0.0
    %1890 = vmatpush.msra.mxu0 0.0
    %1891 = vmatpush.msra.mxu0 0.0
    %1892 = vmatpush.msra.mxu0 0.0
    %1893 = vmatpush.msra.mxu0 0.0
    %1894 = vmatpush.msra.mxu0 0.0
    %1895 = vmatpush.msra.mxu0 0.0
    %1896 = vmatpush.msra.mxu0 0.0
    %1897 = vmatpush.msra.mxu0 0.0
    %1898 = vmatpush.msra.mxu0 0.0
    %1899 = vmatpush.msra.mxu0 0.0
    %1900 = vmatpush.msra.mxu0 0.0
    %1901 = vmatpush.msra.mxu0 0.0
    %1902 = vmatpush.msra.mxu0 0.0
    %1903 = vmatpush.msra.mxu0 %v1883
    %1904 = vmatmul.f32.gmra.mxu0 %v1886
    %v1905 = vpop.f32.mrf.mxu0
    %v1906 = vadd.f32 0.0, %v1905
    %1907 = vdwg.mxu0
    %1908 = vrot.lane.b32.xlu0 %v1420, 80
    %v1909 = vpop.permute.xlu0 %1908
    %v1912 = vsel %vm456, %v1881, 0
    %1914 = vmatpush.msra.mxu0 0.0
    %1915 = vmatpush.msra.mxu0 0.0
    %1916 = vmatpush.msra.mxu0 0.0
    %1917 = vmatpush.msra.mxu0 0.0
    %1918 = vmatpush.msra.mxu0 0.0
    %1919 = vmatpush.msra.mxu0 0.0
    %1920 = vmatpush.msra.mxu0 0.0
    %1921 = vmatpush.msra.mxu0 0.0
    %1922 = vmatpush.msra.mxu0 0.0
    %1923 = vmatpush.msra.mxu0 0.0
    %1924 = vmatpush.msra.mxu0 0.0
    %1925 = vmatpush.msra.mxu0 0.0
    %1926 = vmatpush.msra.mxu0 0.0
    %1927 = vmatpush.msra.mxu0 0.0
    %1928 = vmatpush.msra.mxu0 0.0
    %1929 = vmatpush.msra.mxu0 %v1909
    %1930 = vmatmul.f32.gmra.mxu0 %v1912
    %v1931 = vpop.f32.mrf.mxu0
    %v1932 = vadd.f32 0.0, %v1931
    %1933 = vdwg.mxu0
    %1936 = vrot.lane.b32.xlu0 %v1645, 16
    %v1937 = vpop.permute.xlu0 %1936
    %1938 = vrot.lane.b32.xlu0 %v1672, 16
    %v1939 = vpop.permute.xlu0 %1938
    %1944 = vrot.lane.b32.xlu0 %v1776, 32
    %v1945 = vpop.permute.xlu0 %1944
    %1946 = vrot.lane.b32.xlu0 %v1802, 32
    %v1947 = vpop.permute.xlu0 %1946
    %1952 = vrot.lane.b32.xlu0 %v1906, 48
    %v1953 = vpop.permute.xlu0 %1952
    %1954 = vrot.lane.b32.xlu0 %v1932, 48
    %v1955 = vpop.permute.xlu0 %1954
    %v1958 = vsel %vm403, %v1517, %v1937
    %v1959 = vsel %vm403, %v1540, %v1939
    %v1960 = vsel %vm943, %v1958, %v1945
    %v1961 = vsel %vm943, %v1959, %v1947
    %v1962 = vsel %vm946, %v1960, %v1953
    %v1963 = vsel %vm946, %v1961, %v1955
    %s1964 = scalar_lea.vmem %s9, 64
    %v1965 = vld [vmem:[%s1964] sm:$0xff]
    %v1966 = vld [vmem:[%s1964 + $0x8] sm:$0xff]
    %v1967 = vld [vmem:[%s1964 + $0x10] sm:$0xff]
    %v1968 = vld [vmem:[%s1964 + $0x18] sm:$0xff]
    %v1969 = vld [vmem:[%s1964 + $0x20] sm:$0xff]
    %v1970 = vld [vmem:[%s1964 + $0x28] sm:$0xff]
    %v1971 = vld [vmem:[%s1964 + $0x30] sm:$0xff]
    %v1972 = vld [vmem:[%s1964 + $0x38] sm:$0xff]
    %s1973 = scalar_lea.vmem [#allocation13], 1
    %v1974 = vld [vmem:[%s1973] sm:$0x1]
    %v1976 = vperm.slane %v1974, 0
    %v1979 = vsel %vm303, %v1962, 0
    %v1982 = vsel %vm303, %v1963, 0
    %1984 = vmatpush.msra.mxu0 0.0
    %1985 = vmatpush.msra.mxu0 0.0
    %1986 = vmatpush.msra.mxu0 0.0
    %1987 = vmatpush.msra.mxu0 0.0
    %1988 = vmatpush.msra.mxu0 0.0
    %1989 = vmatpush.msra.mxu0 0.0
    %1990 = vmatpush.msra.mxu0 0.0
    %1991 = vmatpush.msra.mxu0 0.0
    %1992 = vmatpush.msra.mxu0 %v1972
    %1993 = vmatpush.msra.mxu0 %v1971
    %1994 = vmatpush.msra.mxu0 %v1970
    %1995 = vmatpush.msra.mxu0 %v1969
    %1996 = vmatpush.msra.mxu0 %v1968
    %1997 = vmatpush.msra.mxu0 %v1967
    %1998 = vmatpush.msra.mxu0 %v1966
    %1999 = vmatpush.msra.mxu0 %v1965
    %2000 = vmatmul.f32.gmra.mxu0 %v1979
    %v2001 = vpop.f32.mrf.mxu0
    %v2002 = vadd.f32 %v1976, %v2001
    %2003 = vmatmul.f32.gmra.mxu0 %v1982
    %v2004 = vpop.f32.mrf.mxu0
    %v2005 = vadd.f32 %v1976, %v2004
    %2006 = vdwg.mxu0
    %v2007 = vadd.f32 %v1303, %v2002
    %v2008 = vadd.f32 %v1304, %v2005
    %s2009 = scalar_lea.vmem %s15, 1
    %v2010 = vld [vmem:[%s2009] sm:$0x1]
    %s2011 = scalar_lea.vmem %s16, 1
    %v2012 = vld [vmem:[%s2011] sm:$0x1]
    %v2013 = vsel %vm303, %v2007, 0.0
    %2014 = vadd.xlane.f32.xlu0 %v2013
    %v2015 = vpop.xlane.xlu0 %2014
    %v2016 = vsel %vm303, %v2008, 0.0
    %2017 = vadd.xlane.f32.xlu0 %v2016
    %v2018 = vpop.xlane.xlu0 %2017
    %v2019 = vmul.f32 %v2015, %v1006
    %v2020 = vmul.f32 %v2018, %v1006
    %v2021 = vsub.f32 %v2007, %v2019
    %v2022 = vsub.f32 %v2008, %v2020
    %v2023 = vmul.f32 %v2021, %v2021
    %v2024 = vmul.f32 %v2022, %v2022
    %v2025 = vsel %vm303, %v2023, 0.0
    %2026 = vadd.xlane.f32.xlu0 %v2025
    %v2027 = vpop.xlane.xlu0 %2026
    %v2028 = vsel %vm303, %v2024, 0.0
    %2029 = vadd.xlane.f32.xlu0 %v2028
    %v2030 = vpop.xlane.xlu0 %2029
    %v2031 = vmul.f32 %v2027, %v1006
    %v2032 = vmul.f32 %v2030, %v1006
    %v2033 = vadd.f32 %v2031, 1e-05
    %v2034 = vadd.f32 %v2032, 1e-05
    %v2035 = vrsqrt.pop %v2033
    %v2036 = vmul.f32 %v2035, %v2033
    %v2037 = vmul.f32 %v2036, %v2035
    %v2038 = vmul.f32 0.5, %v2037
    %v2039 = vsub.f32 1.5, %v2038
    %v2040 = vmul.f32 %v2035, %v2039
    %vm2041 = vweird.f32 %v2033
    %vm2042 = vweird.f32 %v2035
    %vm2043 = vmor %vm2041, %vm2042
    %v2044 = vsel %vm2043, %v2035, %v2040
    %v2045 = vrsqrt.pop %v2034
    %v2046 = vmul.f32 %v2045, %v2034
    %v2047 = vmul.f32 %v2046, %v2045
    %v2048 = vmul.f32 0.5, %v2047
    %v2049 = vsub.f32 1.5, %v2048
    %v2050 = vmul.f32 %v2045, %v2049
    %vm2051 = vweird.f32 %v2034
    %vm2052 = vweird.f32 %v2045
    %vm2053 = vmor %vm2051, %vm2052
    %v2054 = vsel %vm2053, %v2045, %v2050
    %v2055 = vmul.f32 %v2021, %v2044
    %v2056 = vmul.f32 %v2022, %v2054
    %v2058 = vperm.slane %v2010, 0
    %v2060 = vmul.f32 %v2055, %v2058
    %v2061 = vmul.f32 %v2056, %v2058
    %v2063 = vperm.slane %v2012, 0
    %v2065 = vadd.f32 %v2060, %v2063
    %v2066 = vadd.f32 %v2061, %v2063
    %s2067 = scalar_lea.vmem %s11, 128
    %v2068 = vld [vmem:[%s2067] sm:$0xff]
    %v2069 = vld [vmem:[%s2067 + $0x8] sm:$0xff]
    %v2070 = vld [vmem:[%s2067 + $0x10] sm:$0xff]
    %v2071 = vld [vmem:[%s2067 + $0x18] sm:$0xff]
    %v2072 = vld [vmem:[%s2067 + $0x20] sm:$0xff]
    %v2073 = vld [vmem:[%s2067 + $0x28] sm:$0xff]
    %v2074 = vld [vmem:[%s2067 + $0x30] sm:$0xff]
    %v2075 = vld [vmem:[%s2067 + $0x38] sm:$0xff]
    %v2076 = vld [vmem:[%s2067 + $0x40] sm:$0xff]
    %v2077 = vld [vmem:[%s2067 + $0x48] sm:$0xff]
    %v2078 = vld [vmem:[%s2067 + $0x50] sm:$0xff]
    %v2079 = vld [vmem:[%s2067 + $0x58] sm:$0xff]
    %v2080 = vld [vmem:[%s2067 + $0x60] sm:$0xff]
    %v2081 = vld [vmem:[%s2067 + $0x68] sm:$0xff]
    %v2082 = vld [vmem:[%s2067 + $0x70] sm:$0xff]
    %v2083 = vld [vmem:[%s2067 + $0x78] sm:$0xff]
    %s2084 = scalar_lea.vmem [#allocation14], 2
    %v2085 = vld [vmem:[%s2084] sm:$0x3]
    %v2087 = vperm.slane %v2085, 0
    %v2088 = vperm.slane %v2085, 1
    %v2092 = vsel %vm303, %v2065, 0
    %v2095 = vsel %vm303, %v2066, 0
    %2097 = vmatpush.msra.mxu0 0.0
    %2098 = vmatpush.msra.mxu0 0.0
    %2099 = vmatpush.msra.mxu0 0.0
    %2100 = vmatpush.msra.mxu0 0.0
    %2101 = vmatpush.msra.mxu0 0.0
    %2102 = vmatpush.msra.mxu0 0.0
    %2103 = vmatpush.msra.mxu0 0.0
    %2104 = vmatpush.msra.mxu0 0.0
    %2105 = vmatpush.msra.mxu0 %v2082
    %2106 = vmatpush.msra.mxu0 %v2080
    %2107 = vmatpush.msra.mxu0 %v2078
    %2108 = vmatpush.msra.mxu0 %v2076
    %2109 = vmatpush.msra.mxu0 %v2074
    %2110 = vmatpush.msra.mxu0 %v2072
    %2111 = vmatpush.msra.mxu0 %v2070
    %2112 = vmatpush.msra.mxu0 %v2068
    %2113 = vmatmul.f32.gmra.mxu0 %v2092
    %v2114 = vpop.f32.mrf.mxu0
    %v2115 = vadd.f32 %v2087, %v2114
    %2116 = vmatmul.f32.gmra.mxu0 %v2095
    %v2117 = vpop.f32.mrf.mxu0
    %v2118 = vadd.f32 %v2087, %v2117
    %2119 = vdwg.mxu0
    %2120 = vmatpush.msra.mxu0 0.0
    %2121 = vmatpush.msra.mxu0 0.0
    %2122 = vmatpush.msra.mxu0 0.0
    %2123 = vmatpush.msra.mxu0 0.0
    %2124 = vmatpush.msra.mxu0 0.0
    %2125 = vmatpush.msra.mxu0 0.0
    %2126 = vmatpush.msra.mxu0 0.0
    %2127 = vmatpush.msra.mxu0 0.0
    %2128 = vmatpush.msra.mxu0 %v2083
    %2129 = vmatpush.msra.mxu0 %v2081
    %2130 = vmatpush.msra.mxu0 %v2079
    %2131 = vmatpush.msra.mxu0 %v2077
    %2132 = vmatpush.msra.mxu0 %v2075
    %2133 = vmatpush.msra.mxu0 %v2073
    %2134 = vmatpush.msra.mxu0 %v2071
    %2135 = vmatpush.msra.mxu0 %v2069
    %2136 = vmatmul.f32.gmra.mxu0 %v2092
    %v2137 = vpop.f32.mrf.mxu0
    %v2138 = vadd.f32 %v2088, %v2137
    %2139 = vmatmul.f32.gmra.mxu0 %v2095
    %v2140 = vpop.f32.mrf.mxu0
    %v2141 = vadd.f32 %v2088, %v2140
    %2142 = vdwg.mxu0
    %v2143 = vmul.f32 %v2115, 0.5
    %v2144 = vmul.f32 %v2138, 0.5
    %v2145 = vmul.f32 %v2118, 0.5
    %v2146 = vmul.f32 %v2141, 0.5
    %v2147 = vmul.f32 %v2115, 0.044715
    %v2148 = vmul.f32 %v2138, 0.044715
    %v2149 = vmul.f32 %v2118, 0.044715
    %v2150 = vmul.f32 %v2141, 0.044715
    %v2151 = vmul.f32 %v2147, %v2115
    %v2152 = vmul.f32 %v2148, %v2138
    %v2153 = vmul.f32 %v2149, %v2118
    %v2154 = vmul.f32 %v2150, %v2141
    %v2155 = vmul.f32 %v2151, %v2115
    %v2156 = vmul.f32 %v2152, %v2138
    %v2157 = vmul.f32 %v2153, %v2118
    %v2158 = vmul.f32 %v2154, %v2141
    %v2159 = vadd.f32 %v2115, %v2155
    %v2160 = vadd.f32 %v2138, %v2156
    %v2161 = vadd.f32 %v2118, %v2157
    %v2162 = vadd.f32 %v2141, %v2158
    %v2163 = vmul.f32 %v2159, 0.7978846
    %v2164 = vmul.f32 %v2160, 0.7978846
    %v2165 = vmul.f32 %v2161, 0.7978846
    %v2166 = vmul.f32 %v2162, 0.7978846
    %v2167 = vtanh.pop %v2163
    %v2168 = vtanh.pop %v2164
    %v2169 = vtanh.pop %v2165
    %v2170 = vtanh.pop %v2166
    %v2171 = vadd.f32 %v2167, 1.0
    %v2172 = vadd.f32 %v2168, 1.0
    %v2173 = vadd.f32 %v2169, 1.0
    %v2174 = vadd.f32 %v2170, 1.0
    %v2175 = vmul.f32 %v2143, %v2171
    %v2176 = vmul.f32 %v2144, %v2172
    %v2177 = vmul.f32 %v2145, %v2173
    %v2178 = vmul.f32 %v2146, %v2174
    %s2179 = scalar_lea.vmem %s13, 256
    %v2180 = vld [vmem:[%s2179] sm:$0xff]
    %v2181 = vld [vmem:[%s2179 + $0x8] sm:$0xff]
    %v2182 = vld [vmem:[%s2179 + $0x10] sm:$0xff]
    %v2183 = vld [vmem:[%s2179 + $0x18] sm:$0xff]
    %v2184 = vld [vmem:[%s2179 + $0x20] sm:$0xff]
    %v2185 = vld [vmem:[%s2179 + $0x28] sm:$0xff]
    %v2186 = vld [vmem:[%s2179 + $0x30] sm:$0xff]
    %v2187 = vld [vmem:[%s2179 + $0x38] sm:$0xff]
    %v2188 = vld [vmem:[%s2179 + $0x40] sm:$0xff]
    %v2189 = vld [vmem:[%s2179 + $0x48] sm:$0xff]
    %v2190 = vld [vmem:[%s2179 + $0x50] sm:$0xff]
    %v2191 = vld [vmem:[%s2179 + $0x58] sm:$0xff]
    %v2192 = vld [vmem:[%s2179 + $0x60] sm:$0xff]
    %v2193 = vld [vmem:[%s2179 + $0x68] sm:$0xff]
    %v2194 = vld [vmem:[%s2179 + $0x70] sm:$0xff]
    %v2195 = vld [vmem:[%s2179 + $0x78] sm:$0xff]
    %v2196 = vld [vmem:[%s2179 + $0x80] sm:$0xff]
    %v2197 = vld [vmem:[%s2179 + $0x88] sm:$0xff]
    %v2198 = vld [vmem:[%s2179 + $0x90] sm:$0xff]
    %v2199 = vld [vmem:[%s2179 + $0x98] sm:$0xff]
    %v2200 = vld [vmem:[%s2179 + $0xa0] sm:$0xff]
    %v2201 = vld [vmem:[%s2179 + $0xa8] sm:$0xff]
    %v2202 = vld [vmem:[%s2179 + $0xb0] sm:$0xff]
    %v2203 = vld [vmem:[%s2179 + $0xb8] sm:$0xff]
    %v2204 = vld [vmem:[%s2179 + $0xc0] sm:$0xff]
    %v2205 = vld [vmem:[%s2179 + $0xc8] sm:$0xff]
    %v2206 = vld [vmem:[%s2179 + $0xd0] sm:$0xff]
    %v2207 = vld [vmem:[%s2179 + $0xd8] sm:$0xff]
    %v2208 = vld [vmem:[%s2179 + $0xe0] sm:$0xff]
    %v2209 = vld [vmem:[%s2179 + $0xe8] sm:$0xff]
    %v2210 = vld [vmem:[%s2179 + $0xf0] sm:$0xff]
    %v2211 = vld [vmem:[%s2179 + $0xf8] sm:$0xff]
    %s2212 = scalar_lea.vmem %s14, 1
    %v2213 = vld [vmem:[%s2212] sm:$0x1]
    %v2215 = vperm.slane %v2213, 0
    %2217 = vmatpush.msra.mxu0 %v2195
    %2218 = vmatpush.msra.mxu0 %v2194
    %2219 = vmatpush.msra.mxu0 %v2193
    %2220 = vmatpush.msra.mxu0 %v2192
    %2221 = vmatpush.msra.mxu0 %v2191
    %2222 = vmatpush.msra.mxu0 %v2190
    %2223 = vmatpush.msra.mxu0 %v2189
    %2224 = vmatpush.msra.mxu0 %v2188
    %2225 = vmatpush.msra.mxu0 %v2187
    %2226 = vmatpush.msra.mxu0 %v2186
    %2227 = vmatpush.msra.mxu0 %v2185
    %2228 = vmatpush.msra.mxu0 %v2184
    %2229 = vmatpush.msra.mxu0 %v2183
    %2230 = vmatpush.msra.mxu0 %v2182
    %2231 = vmatpush.msra.mxu0 %v2181
    %2232 = vmatpush.msra.mxu0 %v2180
    %2233 = vmatmul.f32.gmra.mxu0 %v2175
    %v2234 = vpop.f32.mrf.mxu0
    %v2235 = vadd.f32 %v2215, %v2234
    %2236 = vmatmul.f32.gmra.mxu0 %v2177
    %v2237 = vpop.f32.mrf.mxu0
    %v2238 = vadd.f32 %v2215, %v2237
    %2239 = vdwg.mxu0
    %2240 = vmatpush.msra.mxu0 %v2211
    %2241 = vmatpush.msra.mxu0 %v2210
    %2242 = vmatpush.msra.mxu0 %v2209
    %2243 = vmatpush.msra.mxu0 %v2208
    %2244 = vmatpush.msra.mxu0 %v2207
    %2245 = vmatpush.msra.mxu0 %v2206
    %2246 = vmatpush.msra.mxu0 %v2205
    %2247 = vmatpush.msra.mxu0 %v2204
    %2248 = vmatpush.msra.mxu0 %v2203
    %2249 = vmatpush.msra.mxu0 %v2202
    %2250 = vmatpush.msra.mxu0 %v2201
    %2251 = vmatpush.msra.mxu0 %v2200
    %2252 = vmatpush.msra.mxu0 %v2199
    %2253 = vmatpush.msra.mxu0 %v2198
    %2254 = vmatpush.msra.mxu0 %v2197
    %2255 = vmatpush.msra.mxu0 %v2196
    %2256 = vmatmul.f32.gmra.mxu0 %v2176
    %v2257 = vpop.f32.mrf.mxu0
    %v2258 = vadd.f32 %v2235, %v2257
    %2259 = vmatmul.f32.gmra.mxu0 %v2178
    %v2260 = vpop.f32.mrf.mxu0
    %v2261 = vadd.f32 %v2238, %v2260
    %2262 = vdwg.mxu0
    %v2263 = vadd.f32 %v2065, %v2258
    %v2264 = vadd.f32 %v2066, %v2261
    %s2265 = scalar_lea.vmem %s17, 1
    %v2266 = vld [vmem:[%s2265] sm:$0x1]
    %s2267 = scalar_lea.vmem [#allocation16], 1
    %v2268 = vld [vmem:[%s2267] sm:$0x1]
    %v2269 = vsel %vm303, %v2263, 0.0
    %2270 = vadd.xlane.f32.xlu0 %v2269
    %v2271 = vpop.xlane.xlu0 %2270
    %v2272 = vsel %vm303, %v2264, 0.0
    %2273 = vadd.xlane.f32.xlu0 %v2272
    %v2274 = vpop.xlane.xlu0 %2273
    %v2275 = vmul.f32 %v2271, %v1006
    %v2276 = vmul.f32 %v2274, %v1006
    %v2277 = vsub.f32 %v2263, %v2275
    %v2278 = vsub.f32 %v2264, %v2276
    %v2279 = vmul.f32 %v2277, %v2277
    %v2280 = vmul.f32 %v2278, %v2278
    %v2281 = vsel %vm303, %v2279, 0.0
    %2282 = vadd.xlane.f32.xlu0 %v2281
    %v2283 = vpop.xlane.xlu0 %2282
    %v2284 = vsel %vm303, %v2280, 0.0
    %2285 = vadd.xlane.f32.xlu0 %v2284
    %v2286 = vpop.xlane.xlu0 %2285
    %v2287 = vmul.f32 %v2283, %v1006
    %v2288 = vmul.f32 %v2286, %v1006
    %v2289 = vadd.f32 %v2287, 1e-05
    %v2290 = vadd.f32 %v2288, 1e-05
    %v2291 = vrsqrt.pop %v2289
    %v2292 = vmul.f32 %v2291, %v2289
    %v2293 = vmul.f32 %v2292, %v2291
    %v2294 = vmul.f32 0.5, %v2293
    %v2295 = vsub.f32 1.5, %v2294
    %v2296 = vmul.f32 %v2291, %v2295
    %vm2297 = vweird.f32 %v2289
    %vm2298 = vweird.f32 %v2291
    %vm2299 = vmor %vm2297, %vm2298
    %v2300 = vsel %vm2299, %v2291, %v2296
    %v2301 = vrsqrt.pop %v2290
    %v2302 = vmul.f32 %v2301, %v2290
    %v2303 = vmul.f32 %v2302, %v2301
    %v2304 = vmul.f32 0.5, %v2303
    %v2305 = vsub.f32 1.5, %v2304
    %v2306 = vmul.f32 %v2301, %v2305
    %vm2307 = vweird.f32 %v2290
    %vm2308 = vweird.f32 %v2301
    %vm2309 = vmor %vm2307, %vm2308
    %v2310 = vsel %vm2309, %v2301, %v2306
    %v2311 = vmul.f32 %v2277, %v2300
    %v2312 = vmul.f32 %v2278, %v2310
    %v2314 = vperm.slane %v2266, 0
    %v2316 = vmul.f32 %v2311, %v2314
    %v2317 = vmul.f32 %v2312, %v2314
    %v2319 = vperm.slane %v2268, 0
    %v2321 = vadd.f32 %v2316, %v2319
    %v2322 = vadd.f32 %v2317, %v2319
    %s2323 = scalar_lea.vmem %s3, 128
    %v2324 = vld [vmem:[%s2323] sm:$0xff]
    %v2325 = vld [vmem:[%s2323 + $0x8] sm:$0xff]
    %v2326 = vld [vmem:[%s2323 + $0x10] sm:$0xff]
    %v2327 = vld [vmem:[%s2323 + $0x18] sm:$0xff]
    %v2328 = vld [vmem:[%s2323 + $0x20] sm:$0xff]
    %v2329 = vld [vmem:[%s2323 + $0x28] sm:$0xff]
    %v2330 = vld [vmem:[%s2323 + $0x30] sm:$0xff]
    %v2331 = vld [vmem:[%s2323 + $0x38] sm:$0xff]
    %s2332 = scalar_lea.vmem [#allocation8], 2
    %v2333 = vld [vmem:[%s2332] sm:$0x1]
    %v2335 = vperm.slane %v2333, 0
    %v2338 = vsel %vm303, %v2321, 0
    %v2341 = vsel %vm303, %v2322, 0
    %2343 = vmatpush.msra.mxu0 0.0
    %2344 = vmatpush.msra.mxu0 0.0
    %2345 = vmatpush.msra.mxu0 0.0
    %2346 = vmatpush.msra.mxu0 0.0
    %2347 = vmatpush.msra.mxu0 0.0
    %2348 = vmatpush.msra.mxu0 0.0
    %2349 = vmatpush.msra.mxu0 0.0
    %2350 = vmatpush.msra.mxu0 0.0
    %2351 = vmatpush.msra.mxu0 %v2331
    %2352 = vmatpush.msra.mxu0 %v2330
    %2353 = vmatpush.msra.mxu0 %v2329
    %2354 = vmatpush.msra.mxu0 %v2328
    %2355 = vmatpush.msra.mxu0 %v2327
    %2356 = vmatpush.msra.mxu0 %v2326
    %2357 = vmatpush.msra.mxu0 %v2325
    %2358 = vmatpush.msra.mxu0 %v2324
    %2359 = vmatmul.f32.gmra.mxu0 %v2338
    %v2360 = vpop.f32.mrf.mxu0
    %v2361 = vadd.f32 %v2335, %v2360
    %2362 = vmatmul.f32.gmra.mxu0 %v2341
    %v2363 = vpop.f32.mrf.mxu0
    %v2364 = vadd.f32 %v2335, %v2363
    %2365 = vdwg.mxu0
    %s2366 = scalar_lea.vmem %s5, 128
    %v2367 = vld [vmem:[%s2366] sm:$0xff]
    %v2368 = vld [vmem:[%s2366 + $0x8] sm:$0xff]
    %v2369 = vld [vmem:[%s2366 + $0x10] sm:$0xff]
    %v2370 = vld [vmem:[%s2366 + $0x18] sm:$0xff]
    %v2371 = vld [vmem:[%s2366 + $0x20] sm:$0xff]
    %v2372 = vld [vmem:[%s2366 + $0x28] sm:$0xff]
    %v2373 = vld [vmem:[%s2366 + $0x30] sm:$0xff]
    %v2374 = vld [vmem:[%s2366 + $0x38] sm:$0xff]
    %s2375 = scalar_lea.vmem [#allocation10], 2
    %v2376 = vld [vmem:[%s2375] sm:$0x1]
    %v2378 = vperm.slane %v2376, 0
    %2380 = vmatpush.msra.mxu0 0.0
    %2381 = vmatpush.msra.mxu0 0.0
    %2382 = vmatpush.msra.mxu0 0.0
    %2383 = vmatpush.msra.mxu0 0.0
    %2384 = vmatpush.msra.mxu0 0.0
    %2385 = vmatpush.msra.mxu0 0.0
    %2386 = vmatpush.msra.mxu0 0.0
    %2387 = vmatpush.msra.mxu0 0.0
    %2388 = vmatpush.msra.mxu0 %v2374
    %2389 = vmatpush.msra.mxu0 %v2373
    %2390 = vmatpush.msra.mxu0 %v2372
    %2391 = vmatpush.msra.mxu0 %v2371
    %2392 = vmatpush.msra.mxu0 %v2370
    %2393 = vmatpush.msra.mxu0 %v2369
    %2394 = vmatpush.msra.mxu0 %v2368
    %2395 = vmatpush.msra.mxu0 %v2367
    %2396 = vmatmul.f32.gmra.mxu0 %v2338
    %v2397 = vpop.f32.mrf.mxu0
    %v2398 = vadd.f32 %v2378, %v2397
    %2399 = vmatmul.f32.gmra.mxu0 %v2341
    %v2400 = vpop.f32.mrf.mxu0
    %v2401 = vadd.f32 %v2378, %v2400
    %2402 = vdwg.mxu0
    %s2403 = scalar_lea.vmem %s7, 128
    %v2404 = vld [vmem:[%s2403] sm:$0xff]
    %v2405 = vld [vmem:[%s2403 + $0x8] sm:$0xff]
    %v2406 = vld [vmem:[%s2403 + $0x10] sm:$0xff]
    %v2407 = vld [vmem:[%s2403 + $0x18] sm:$0xff]
    %v2408 = vld [vmem:[%s2403 + $0x20] sm:$0xff]
    %v2409 = vld [vmem:[%s2403 + $0x28] sm:$0xff]
    %v2410 = vld [vmem:[%s2403 + $0x30] sm:$0xff]
    %v2411 = vld [vmem:[%s2403 + $0x38] sm:$0xff]
    %s2412 = scalar_lea.vmem [#allocation11], 2
    %v2413 = vld [vmem:[%s2412] sm:$0x1]
    %v2415 = vperm.slane %v2413, 0
    %2417 = vmatpush.msra.mxu0 0.0
    %2418 = vmatpush.msra.mxu0 0.0
    %2419 = vmatpush.msra.mxu0 0.0
    %2420 = vmatpush.msra.mxu0 0.0
    %2421 = vmatpush.msra.mxu0 0.0
    %2422 = vmatpush.msra.mxu0 0.0
    %2423 = vmatpush.msra.mxu0 0.0
    %2424 = vmatpush.msra.mxu0 0.0
    %2425 = vmatpush.msra.mxu0 %v2411
    %2426 = vmatpush.msra.mxu0 %v2410
    %2427 = vmatpush.msra.mxu0 %v2409
    %2428 = vmatpush.msra.mxu0 %v2408
    %2429 = vmatpush.msra.mxu0 %v2407
    %2430 = vmatpush.msra.mxu0 %v2406
    %2431 = vmatpush.msra.mxu0 %v2405
    %2432 = vmatpush.msra.mxu0 %v2404
    %2433 = vmatmul.f32.gmra.mxu0 %v2338
    %v2434 = vpop.f32.mrf.mxu0
    %v2435 = vadd.f32 %v2415, %v2434
    %2436 = vmatmul.f32.gmra.mxu0 %v2341
    %v2437 = vpop.f32.mrf.mxu0
    %v2438 = vadd.f32 %v2415, %v2437
    %2439 = vdwg.mxu0
    %v2441 = vsel %vm403, %v2361, 0
    %v2444 = vsel %vm403, %v2398, 0
    %2446 = vmatpush.xpose.msra.mxu0 0.0
    %2447 = vmatpush.xpose.msra.mxu0 0.0
    %2448 = vmatpush.xpose.msra.mxu0 0.0
    %2449 = vmatpush.xpose.msra.mxu0 0.0
    %2450 = vmatpush.xpose.msra.mxu0 0.0
    %2451 = vmatpush.xpose.msra.mxu0 0.0
    %2452 = vmatpush.xpose.msra.mxu0 0.0
    %2453 = vmatpush.xpose.msra.mxu0 0.0
    %2454 = vmatpush.xpose.msra.mxu0 0.0
    %2455 = vmatpush.xpose.msra.mxu0 0.0
    %2456 = vmatpush.xpose.msra.mxu0 0.0
    %2457 = vmatpush.xpose.msra.mxu0 0.0
    %2458 = vmatpush.xpose.msra.mxu0 0.0
    %2459 = vmatpush.xpose.msra.mxu0 0.0
    %2460 = vmatpush.xpose.msra.mxu0 0.0
    %2461 = vmatpush.xpose.msra.mxu0 %v2444
    %2462 = vmatmul.f32.gmra.mxu0 %v2441
    %v2463 = vpop.f32.mrf.mxu0
    %v2464 = vadd.f32 0.0, %v2463
    %2465 = vdwg.mxu0
    %v2467 = vsel %vm403, %v2364, 0
    %v2470 = vsel %vm403, %v2401, 0
    %2472 = vmatpush.xpose.msra.mxu0 0.0
    %2473 = vmatpush.xpose.msra.mxu0 0.0
    %2474 = vmatpush.xpose.msra.mxu0 0.0
    %2475 = vmatpush.xpose.msra.mxu0 0.0
    %2476 = vmatpush.xpose.msra.mxu0 0.0
    %2477 = vmatpush.xpose.msra.mxu0 0.0
    %2478 = vmatpush.xpose.msra.mxu0 0.0
    %2479 = vmatpush.xpose.msra.mxu0 0.0
    %2480 = vmatpush.xpose.msra.mxu0 0.0
    %2481 = vmatpush.xpose.msra.mxu0 0.0
    %2482 = vmatpush.xpose.msra.mxu0 0.0
    %2483 = vmatpush.xpose.msra.mxu0 0.0
    %2484 = vmatpush.xpose.msra.mxu0 0.0
    %2485 = vmatpush.xpose.msra.mxu0 0.0
    %2486 = vmatpush.xpose.msra.mxu0 0.0
    %2487 = vmatpush.xpose.msra.mxu0 %v2470
    %2488 = vmatmul.f32.gmra.mxu0 %v2467
    %v2489 = vpop.f32.mrf.mxu0
    %v2490 = vadd.f32 0.0, %v2489
    %2491 = vdwg.mxu0
    %v2492 = vsel %vm456, %v2464, -inf
    %2493 = vmax.xlane.f32.xlu0 %v2492
    %v2494 = vpop.xlane.xlu0 %2493
    %v2495 = vsel %vm456, %v2490, -inf
    %2496 = vmax.xlane.f32.xlu0 %v2495
    %v2497 = vpop.xlane.xlu0 %2496
    %v2498 = vsub.f32 %v2464, %v2494
    %v2499 = vsub.f32 %v2490, %v2497
    %v2500 = vmul.f32 %v2498, 1.442695
    %v2501 = vpow.pop %v2500
    %v2502 = vmul.f32 %v2499, 1.442695
    %v2503 = vpow.pop %v2502
    %v2504 = vsel %vm456, %v2501, 0.0
    %2505 = vadd.xlane.f32.xlu0 %v2504
    %v2506 = vpop.xlane.xlu0 %2505
    %v2507 = vsel %vm456, %v2503, 0.0
    %2508 = vadd.xlane.f32.xlu0 %v2507
    %v2509 = vpop.xlane.xlu0 %2508
    %v2510 = vrcp.pop %v2506
    %v2511 = vrcp.pop %v2509
    %v2512 = vmul.f32 %v2501, %v2510
    %v2513 = vmul.f32 %v2503, %v2511
    %v2515 = vsel %vm456, %v2512, 0
    %2517 = vmatpush.msra.mxu0 0.0
    %2518 = vmatpush.msra.mxu0 0.0
    %2519 = vmatpush.msra.mxu0 0.0
    %2520 = vmatpush.msra.mxu0 0.0
    %2521 = vmatpush.msra.mxu0 0.0
    %2522 = vmatpush.msra.mxu0 0.0
    %2523 = vmatpush.msra.mxu0 0.0
    %2524 = vmatpush.msra.mxu0 0.0
    %2525 = vmatpush.msra.mxu0 0.0
    %2526 = vmatpush.msra.mxu0 0.0
    %2527 = vmatpush.msra.mxu0 0.0
    %2528 = vmatpush.msra.mxu0 0.0
    %2529 = vmatpush.msra.mxu0 0.0
    %2530 = vmatpush.msra.mxu0 0.0
    %2531 = vmatpush.msra.mxu0 0.0
    %2532 = vmatpush.msra.mxu0 %v2435
    %2533 = vmatmul.f32.gmra.mxu0 %v2515
    %v2534 = vpop.f32.mrf.mxu0
    %v2535 = vadd.f32 0.0, %v2534
    %2536 = vdwg.mxu0
    %v2538 = vsel %vm456, %v2513, 0
    %2540 = vmatpush.msra.mxu0 0.0
    %2541 = vmatpush.msra.mxu0 0.0
    %2542 = vmatpush.msra.mxu0 0.0
    %2543 = vmatpush.msra.mxu0 0.0
    %2544 = vmatpush.msra.mxu0 0.0
    %2545 = vmatpush.msra.mxu0 0.0
    %2546 = vmatpush.msra.mxu0 0.0
    %2547 = vmatpush.msra.mxu0 0.0
    %2548 = vmatpush.msra.mxu0 0.0
    %2549 = vmatpush.msra.mxu0 0.0
    %2550 = vmatpush.msra.mxu0 0.0
    %2551 = vmatpush.msra.mxu0 0.0
    %2552 = vmatpush.msra.mxu0 0.0
    %2553 = vmatpush.msra.mxu0 0.0
    %2554 = vmatpush.msra.mxu0 0.0
    %2555 = vmatpush.msra.mxu0 %v2438
    %2556 = vmatmul.f32.gmra.mxu0 %v2538
    %v2557 = vpop.f32.mrf.mxu0
    %v2558 = vadd.f32 0.0, %v2557
    %2559 = vdwg.mxu0
    %2560 = vrot.lane.b32.xlu0 %v2361, 112
    %v2561 = vpop.permute.xlu0 %2560
    %2562 = vrot.lane.b32.xlu0 %v2398, 112
    %v2563 = vpop.permute.xlu0 %2562
    %v2564 = vsel %vm403, %v2561, 0
    %v2566 = vsel %vm403, %v2563, 0
    %2568 = vmatpush.xpose.msra.mxu0 0.0
    %2569 = vmatpush.xpose.msra.mxu0 0.0
    %2570 = vmatpush.xpose.msra.mxu0 0.0
    %2571 = vmatpush.xpose.msra.mxu0 0.0
    %2572 = vmatpush.xpose.msra.mxu0 0.0
    %2573 = vmatpush.xpose.msra.mxu0 0.0
    %2574 = vmatpush.xpose.msra.mxu0 0.0
    %2575 = vmatpush.xpose.msra.mxu0 0.0
    %2576 = vmatpush.xpose.msra.mxu0 0.0
    %2577 = vmatpush.xpose.msra.mxu0 0.0
    %2578 = vmatpush.xpose.msra.mxu0 0.0
    %2579 = vmatpush.xpose.msra.mxu0 0.0
    %2580 = vmatpush.xpose.msra.mxu0 0.0
    %2581 = vmatpush.xpose.msra.mxu0 0.0
    %2582 = vmatpush.xpose.msra.mxu0 0.0
    %2583 = vmatpush.xpose.msra.mxu0 %v2566
    %2584 = vmatmul.f32.gmra.mxu0 %v2564
    %v2585 = vpop.f32.mrf.mxu0
    %v2586 = vadd.f32 0.0, %v2585
    %2587 = vdwg.mxu0
    %2588 = vrot.lane.b32.xlu0 %v2364, 112
    %v2589 = vpop.permute.xlu0 %2588
    %2590 = vrot.lane.b32.xlu0 %v2401, 112
    %v2591 = vpop.permute.xlu0 %2590
    %v2592 = vsel %vm403, %v2589, 0
    %v2594 = vsel %vm403, %v2591, 0
    %2596 = vmatpush.xpose.msra.mxu0 0.0
    %2597 = vmatpush.xpose.msra.mxu0 0.0
    %2598 = vmatpush.xpose.msra.mxu0 0.0
    %2599 = vmatpush.xpose.msra.mxu0 0.0
    %2600 = vmatpush.xpose.msra.mxu0 0.0
    %2601 = vmatpush.xpose.msra.mxu0 0.0
    %2602 = vmatpush.xpose.msra.mxu0 0.0
    %2603 = vmatpush.xpose.msra.mxu0 0.0
    %2604 = vmatpush.xpose.msra.mxu0 0.0
    %2605 = vmatpush.xpose.msra.mxu0 0.0
    %2606 = vmatpush.xpose.msra.mxu0 0.0
    %2607 = vmatpush.xpose.msra.mxu0 0.0
    %2608 = vmatpush.xpose.msra.mxu0 0.0
    %2609 = vmatpush.xpose.msra.mxu0 0.0
    %2610 = vmatpush.xpose.msra.mxu0 0.0
    %2611 = vmatpush.xpose.msra.mxu0 %v2594
    %2612 = vmatmul.f32.gmra.mxu0 %v2592
    %v2613 = vpop.f32.mrf.mxu0
    %v2614 = vadd.f32 0.0, %v2613
    %2615 = vdwg.mxu0
    %v2616 = vsel %vm456, %v2586, -inf
    %2617 = vmax.xlane.f32.xlu0 %v2616
    %v2618 = vpop.xlane.xlu0 %2617
    %v2619 = vsel %vm456, %v2614, -inf
    %2620 = vmax.xlane.f32.xlu0 %v2619
    %v2621 = vpop.xlane.xlu0 %2620
    %v2622 = vsub.f32 %v2586, %v2618
    %v2623 = vsub.f32 %v2614, %v2621
    %v2624 = vmul.f32 %v2622, 1.442695
    %v2625 = vpow.pop %v2624
    %v2626 = vmul.f32 %v2623, 1.442695
    %v2627 = vpow.pop %v2626
    %v2628 = vsel %vm456, %v2625, 0.0
    %2629 = vadd.xlane.f32.xlu0 %v2628
    %v2630 = vpop.xlane.xlu0 %2629
    %v2631 = vsel %vm456, %v2627, 0.0
    %2632 = vadd.xlane.f32.xlu0 %v2631
    %v2633 = vpop.xlane.xlu0 %2632
    %v2634 = vrcp.pop %v2630
    %v2635 = vrcp.pop %v2633
    %v2636 = vmul.f32 %v2625, %v2634
    %v2637 = vmul.f32 %v2627, %v2635
    %2639 = vrot.lane.b32.xlu0 %v2435, 112
    %v2640 = vpop.permute.xlu0 %2639
    %v2643 = vsel %vm456, %v2636, 0
    %2645 = vmatpush.msra.mxu0 0.0
    %2646 = vmatpush.msra.mxu0 0.0
    %2647 = vmatpush.msra.mxu0 0.0
    %2648 = vmatpush.msra.mxu0 0.0
    %2649 = vmatpush.msra.mxu0 0.0
    %2650 = vmatpush.msra.mxu0 0.0
    %2651 = vmatpush.msra.mxu0 0.0
    %2652 = vmatpush.msra.mxu0 0.0
    %2653 = vmatpush.msra.mxu0 0.0
    %2654 = vmatpush.msra.mxu0 0.0
    %2655 = vmatpush.msra.mxu0 0.0
    %2656 = vmatpush.msra.mxu0 0.0
    %2657 = vmatpush.msra.mxu0 0.0
    %2658 = vmatpush.msra.mxu0 0.0
    %2659 = vmatpush.msra.mxu0 0.0
    %2660 = vmatpush.msra.mxu0 %v2640
    %2661 = vmatmul.f32.gmra.mxu0 %v2643
    %v2662 = vpop.f32.mrf.mxu0
    %v2663 = vadd.f32 0.0, %v2662
    %2664 = vdwg.mxu0
    %2666 = vrot.lane.b32.xlu0 %v2438, 112
    %v2667 = vpop.permute.xlu0 %2666
    %v2670 = vsel %vm456, %v2637, 0
    %2672 = vmatpush.msra.mxu0 0.0
    %2673 = vmatpush.msra.mxu0 0.0
    %2674 = vmatpush.msra.mxu0 0.0
    %2675 = vmatpush.msra.mxu0 0.0
    %2676 = vmatpush.msra.mxu0 0.0
    %2677 = vmatpush.msra.mxu0 0.0
    %2678 = vmatpush.msra.mxu0 0.0
    %2679 = vmatpush.msra.mxu0 0.0
    %2680 = vmatpush.msra.mxu0 0.0
    %2681 = vmatpush.msra.mxu0 0.0
    %2682 = vmatpush.msra.mxu0 0.0
    %2683 = vmatpush.msra.mxu0 0.0
    %2684 = vmatpush.msra.mxu0 0.0
    %2685 = vmatpush.msra.mxu0 0.0
    %2686 = vmatpush.msra.mxu0 0.0
    %2687 = vmatpush.msra.mxu0 %v2667
    %2688 = vmatmul.f32.gmra.mxu0 %v2670
    %v2689 = vpop.f32.mrf.mxu0
    %v2690 = vadd.f32 0.0, %v2689
    %2691 = vdwg.mxu0
    %2692 = vrot.lane.b32.xlu0 %v2361, 96
    %v2693 = vpop.permute.xlu0 %2692
    %2694 = vrot.lane.b32.xlu0 %v2398, 96
    %v2695 = vpop.permute.xlu0 %2694
    %v2696 = vsel %vm403, %v2693, 0
    %v2698 = vsel %vm403, %v2695, 0
    %2700 = vmatpush.xpose.msra.mxu0 0.0
    %2701 = vmatpush.xpose.msra.mxu0 0.0
    %2702 = vmatpush.xpose.msra.mxu0 0.0
    %2703 = vmatpush.xpose.msra.mxu0 0.0
    %2704 = vmatpush.xpose.msra.mxu0 0.0
    %2705 = vmatpush.xpose.msra.mxu0 0.0
    %2706 = vmatpush.xpose.msra.mxu0 0.0
    %2707 = vmatpush.xpose.msra.mxu0 0.0
    %2708 = vmatpush.xpose.msra.mxu0 0.0
    %2709 = vmatpush.xpose.msra.mxu0 0.0
    %2710 = vmatpush.xpose.msra.mxu0 0.0
    %2711 = vmatpush.xpose.msra.mxu0 0.0
    %2712 = vmatpush.xpose.msra.mxu0 0.0
    %2713 = vmatpush.xpose.msra.mxu0 0.0
    %2714 = vmatpush.xpose.msra.mxu0 0.0
    %2715 = vmatpush.xpose.msra.mxu0 %v2698
    %2716 = vmatmul.f32.gmra.mxu0 %v2696
    %v2717 = vpop.f32.mrf.mxu0
    %v2718 = vadd.f32 0.0, %v2717
    %2719 = vdwg.mxu0
    %2720 = vrot.lane.b32.xlu0 %v2364, 96
    %v2721 = vpop.permute.xlu0 %2720
    %2722 = vrot.lane.b32.xlu0 %v2401, 96
    %v2723 = vpop.permute.xlu0 %2722
    %v2724 = vsel %vm403, %v2721, 0
    %v2726 = vsel %vm403, %v2723, 0
    %2728 = vmatpush.xpose.msra.mxu0 0.0
    %2729 = vmatpush.xpose.msra.mxu0 0.0
    %2730 = vmatpush.xpose.msra.mxu0 0.0
    %2731 = vmatpush.xpose.msra.mxu0 0.0
    %2732 = vmatpush.xpose.msra.mxu0 0.0
    %2733 = vmatpush.xpose.msra.mxu0 0.0
    %2734 = vmatpush.xpose.msra.mxu0 0.0
    %2735 = vmatpush.xpose.msra.mxu0 0.0
    %2736 = vmatpush.xpose.msra.mxu0 0.0
    %2737 = vmatpush.xpose.msra.mxu0 0.0
    %2738 = vmatpush.xpose.msra.mxu0 0.0
    %2739 = vmatpush.xpose.msra.mxu0 0.0
    %2740 = vmatpush.xpose.msra.mxu0 0.0
    %2741 = vmatpush.xpose.msra.mxu0 0.0
    %2742 = vmatpush.xpose.msra.mxu0 0.0
    %2743 = vmatpush.xpose.msra.mxu0 %v2726
    %2744 = vmatmul.f32.gmra.mxu0 %v2724
    %v2745 = vpop.f32.mrf.mxu0
    %v2746 = vadd.f32 0.0, %v2745
    %2747 = vdwg.mxu0
    %v2748 = vsel %vm456, %v2718, -inf
    %2749 = vmax.xlane.f32.xlu0 %v2748
    %v2750 = vpop.xlane.xlu0 %2749
    %v2751 = vsel %vm456, %v2746, -inf
    %2752 = vmax.xlane.f32.xlu0 %v2751
    %v2753 = vpop.xlane.xlu0 %2752
    %v2754 = vsub.f32 %v2718, %v2750
    %v2755 = vsub.f32 %v2746, %v2753
    %v2756 = vmul.f32 %v2754, 1.442695
    %v2757 = vpow.pop %v2756
    %v2758 = vmul.f32 %v2755, 1.442695
    %v2759 = vpow.pop %v2758
    %v2760 = vsel %vm456, %v2757, 0.0
    %2761 = vadd.xlane.f32.xlu0 %v2760
    %v2762 = vpop.xlane.xlu0 %2761
    %v2763 = vsel %vm456, %v2759, 0.0
    %2764 = vadd.xlane.f32.xlu0 %v2763
    %v2765 = vpop.xlane.xlu0 %2764
    %v2766 = vrcp.pop %v2762
    %v2767 = vrcp.pop %v2765
    %v2768 = vmul.f32 %v2757, %v2766
    %v2769 = vmul.f32 %v2759, %v2767
    %2770 = vrot.lane.b32.xlu0 %v2435, 96
    %v2771 = vpop.permute.xlu0 %2770
    %v2774 = vsel %vm456, %v2768, 0
    %2776 = vmatpush.msra.mxu0 0.0
    %2777 = vmatpush.msra.mxu0 0.0
    %2778 = vmatpush.msra.mxu0 0.0
    %2779 = vmatpush.msra.mxu0 0.0
    %2780 = vmatpush.msra.mxu0 0.0
    %2781 = vmatpush.msra.mxu0 0.0
    %2782 = vmatpush.msra.mxu0 0.0
    %2783 = vmatpush.msra.mxu0 0.0
    %2784 = vmatpush.msra.mxu0 0.0
    %2785 = vmatpush.msra.mxu0 0.0
    %2786 = vmatpush.msra.mxu0 0.0
    %2787 = vmatpush.msra.mxu0 0.0
    %2788 = vmatpush.msra.mxu0 0.0
    %2789 = vmatpush.msra.mxu0 0.0
    %2790 = vmatpush.msra.mxu0 0.0
    %2791 = vmatpush.msra.mxu0 %v2771
    %2792 = vmatmul.f32.gmra.mxu0 %v2774
    %v2793 = vpop.f32.mrf.mxu0
    %v2794 = vadd.f32 0.0, %v2793
    %2795 = vdwg.mxu0
    %2796 = vrot.lane.b32.xlu0 %v2438, 96
    %v2797 = vpop.permute.xlu0 %2796
    %v2800 = vsel %vm456, %v2769, 0
    %2802 = vmatpush.msra.mxu0 0.0
    %2803 = vmatpush.msra.mxu0 0.0
    %2804 = vmatpush.msra.mxu0 0.0
    %2805 = vmatpush.msra.mxu0 0.0
    %2806 = vmatpush.msra.mxu0 0.0
    %2807 = vmatpush.msra.mxu0 0.0
    %2808 = vmatpush.msra.mxu0 0.0
    %2809 = vmatpush.msra.mxu0 0.0
    %2810 = vmatpush.msra.mxu0 0.0
    %2811 = vmatpush.msra.mxu0 0.0
    %2812 = vmatpush.msra.mxu0 0.0
    %2813 = vmatpush.msra.mxu0 0.0
    %2814 = vmatpush.msra.mxu0 0.0
    %2815 = vmatpush.msra.mxu0 0.0
    %2816 = vmatpush.msra.mxu0 0.0
    %2817 = vmatpush.msra.mxu0 %v2797
    %2818 = vmatmul.f32.gmra.mxu0 %v2800
    %v2819 = vpop.f32.mrf.mxu0
    %v2820 = vadd.f32 0.0, %v2819
    %2821 = vdwg.mxu0
    %2822 = vrot.lane.b32.xlu0 %v2361, 80
    %v2823 = vpop.permute.xlu0 %2822
    %2824 = vrot.lane.b32.xlu0 %v2398, 80
    %v2825 = vpop.permute.xlu0 %2824
    %v2826 = vsel %vm403, %v2823, 0
    %v2828 = vsel %vm403, %v2825, 0
    %2830 = vmatpush.xpose.msra.mxu0 0.0
    %2831 = vmatpush.xpose.msra.mxu0 0.0
    %2832 = vmatpush.xpose.msra.mxu0 0.0
    %2833 = vmatpush.xpose.msra.mxu0 0.0
    %2834 = vmatpush.xpose.msra.mxu0 0.0
    %2835 = vmatpush.xpose.msra.mxu0 0.0
    %2836 = vmatpush.xpose.msra.mxu0 0.0
    %2837 = vmatpush.xpose.msra.mxu0 0.0
    %2838 = vmatpush.xpose.msra.mxu0 0.0
    %2839 = vmatpush.xpose.msra.mxu0 0.0
    %2840 = vmatpush.xpose.msra.mxu0 0.0
    %2841 = vmatpush.xpose.msra.mxu0 0.0
    %2842 = vmatpush.xpose.msra.mxu0 0.0
    %2843 = vmatpush.xpose.msra.mxu0 0.0
    %2844 = vmatpush.xpose.msra.mxu0 0.0
    %2845 = vmatpush.xpose.msra.mxu0 %v2828
    %2846 = vmatmul.f32.gmra.mxu0 %v2826
    %v2847 = vpop.f32.mrf.mxu0
    %v2848 = vadd.f32 0.0, %v2847
    %2849 = vdwg.mxu0
    %2850 = vrot.lane.b32.xlu0 %v2364, 80
    %v2851 = vpop.permute.xlu0 %2850
    %2852 = vrot.lane.b32.xlu0 %v2401, 80
    %v2853 = vpop.permute.xlu0 %2852
    %v2854 = vsel %vm403, %v2851, 0
    %v2856 = vsel %vm403, %v2853, 0
    %2858 = vmatpush.xpose.msra.mxu0 0.0
    %2859 = vmatpush.xpose.msra.mxu0 0.0
    %2860 = vmatpush.xpose.msra.mxu0 0.0
    %2861 = vmatpush.xpose.msra.mxu0 0.0
    %2862 = vmatpush.xpose.msra.mxu0 0.0
    %2863 = vmatpush.xpose.msra.mxu0 0.0
    %2864 = vmatpush.xpose.msra.mxu0 0.0
    %2865 = vmatpush.xpose.msra.mxu0 0.0
    %2866 = vmatpush.xpose.msra.mxu0 0.0
    %2867 = vmatpush.xpose.msra.mxu0 0.0
    %2868 = vmatpush.xpose.msra.mxu0 0.0
    %2869 = vmatpush.xpose.msra.mxu0 0.0
    %2870 = vmatpush.xpose.msra.mxu0 0.0
    %2871 = vmatpush.xpose.msra.mxu0 0.0
    %2872 = vmatpush.xpose.msra.mxu0 0.0
    %2873 = vmatpush.xpose.msra.mxu0 %v2856
    %2874 = vmatmul.f32.gmra.mxu0 %v2854
    %v2875 = vpop.f32.mrf.mxu0
    %v2876 = vadd.f32 0.0, %v2875
    %2877 = vdwg.mxu0
    %v2878 = vsel %vm456, %v2848, -inf
    %2879 = vmax.xlane.f32.xlu0 %v2878
    %v2880 = vpop.xlane.xlu0 %2879
    %v2881 = vsel %vm456, %v2876, -inf
    %2882 = vmax.xlane.f32.xlu0 %v2881
    %v2883 = vpop.xlane.xlu0 %2882
    %v2884 = vsub.f32 %v2848, %v2880
    %v2885 = vsub.f32 %v2876, %v2883
    %v2886 = vmul.f32 %v2884, 1.442695
    %v2887 = vpow.pop %v2886
    %v2888 = vmul.f32 %v2885, 1.442695
    %v2889 = vpow.pop %v2888
    %v2890 = vsel %vm456, %v2887, 0.0
    %2891 = vadd.xlane.f32.xlu0 %v2890
    %v2892 = vpop.xlane.xlu0 %2891
    %v2893 = vsel %vm456, %v2889, 0.0
    %2894 = vadd.xlane.f32.xlu0 %v2893
    %v2895 = vpop.xlane.xlu0 %2894
    %v2896 = vrcp.pop %v2892
    %v2897 = vrcp.pop %v2895
    %v2898 = vmul.f32 %v2887, %v2896
    %v2899 = vmul.f32 %v2889, %v2897
    %2900 = vrot.lane.b32.xlu0 %v2435, 80
    %v2901 = vpop.permute.xlu0 %2900
    %v2904 = vsel %vm456, %v2898, 0
    %2906 = vmatpush.msra.mxu0 0.0
    %2907 = vmatpush.msra.mxu0 0.0
    %2908 = vmatpush.msra.mxu0 0.0
    %2909 = vmatpush.msra.mxu0 0.0
    %2910 = vmatpush.msra.mxu0 0.0
    %2911 = vmatpush.msra.mxu0 0.0
    %2912 = vmatpush.msra.mxu0 0.0
    %2913 = vmatpush.msra.mxu0 0.0
    %2914 = vmatpush.msra.mxu0 0.0
    %2915 = vmatpush.msra.mxu0 0.0
    %2916 = vmatpush.msra.mxu0 0.0
    %2917 = vmatpush.msra.mxu0 0.0
    %2918 = vmatpush.msra.mxu0 0.0
    %2919 = vmatpush.msra.mxu0 0.0
    %2920 = vmatpush.msra.mxu0 0.0
    %2921 = vmatpush.msra.mxu0 %v2901
    %2922 = vmatmul.f32.gmra.mxu0 %v2904
    %v2923 = vpop.f32.mrf.mxu0
    %v2924 = vadd.f32 0.0, %v2923
    %2925 = vdwg.mxu0
    %2926 = vrot.lane.b32.xlu0 %v2438, 80
    %v2927 = vpop.permute.xlu0 %2926
    %v2930 = vsel %vm456, %v2899, 0
    %2932 = vmatpush.msra.mxu0 0.0
    %2933 = vmatpush.msra.mxu0 0.0
    %2934 = vmatpush.msra.mxu0 0.0
    %2935 = vmatpush.msra.mxu0 0.0
    %2936 = vmatpush.msra.mxu0 0.0
    %2937 = vmatpush.msra.mxu0 0.0
    %2938 = vmatpush.msra.mxu0 0.0
    %2939 = vmatpush.msra.mxu0 0.0
    %2940 = vmatpush.msra.mxu0 0.0
    %2941 = vmatpush.msra.mxu0 0.0
    %2942 = vmatpush.msra.mxu0 0.0
    %2943 = vmatpush.msra.mxu0 0.0
    %2944 = vmatpush.msra.mxu0 0.0
    %2945 = vmatpush.msra.mxu0 0.0
    %2946 = vmatpush.msra.mxu0 0.0
    %2947 = vmatpush.msra.mxu0 %v2927
    %2948 = vmatmul.f32.gmra.mxu0 %v2930
    %v2949 = vpop.f32.mrf.mxu0
    %v2950 = vadd.f32 0.0, %v2949
    %2951 = vdwg.mxu0
    %2954 = vrot.lane.b32.xlu0 %v2663, 16
    %v2955 = vpop.permute.xlu0 %2954
    %2956 = vrot.lane.b32.xlu0 %v2690, 16
    %v2957 = vpop.permute.xlu0 %2956
    %2962 = vrot.lane.b32.xlu0 %v2794, 32
    %v2963 = vpop.permute.xlu0 %2962
    %2964 = vrot.lane.b32.xlu0 %v2820, 32
    %v2965 = vpop.permute.xlu0 %2964
    %2970 = vrot.lane.b32.xlu0 %v2924, 48
    %v2971 = vpop.permute.xlu0 %2970
    %2972 = vrot.lane.b32.xlu0 %v2950, 48
    %v2973 = vpop.permute.xlu0 %2972
    %v2976 = vsel %vm403, %v2535, %v2955
    %v2977 = vsel %vm403, %v2558, %v2957
    %v2978 = vsel %vm943, %v2976, %v2963
    %v2979 = vsel %vm943, %v2977, %v2965
    %v2980 = vsel %vm946, %v2978, %v2971
    %v2981 = vsel %vm946, %v2979, %v2973
    %s2982 = scalar_lea.vmem %s9, 128
    %v2983 = vld [vmem:[%s2982] sm:$0xff]
    %v2984 = vld [vmem:[%s2982 + $0x8] sm:$0xff]
    %v2985 = vld [vmem:[%s2982 + $0x10] sm:$0xff]
    %v2986 = vld [vmem:[%s2982 + $0x18] sm:$0xff]
    %v2987 = vld [vmem:[%s2982 + $0x20] sm:$0xff]
    %v2988 = vld [vmem:[%s2982 + $0x28] sm:$0xff]
    %v2989 = vld [vmem:[%s2982 + $0x30] sm:$0xff]
    %v2990 = vld [vmem:[%s2982 + $0x38] sm:$0xff]
    %s2991 = scalar_lea.vmem [#allocation13], 2
    %v2992 = vld [vmem:[%s2991] sm:$0x1]
    %v2994 = vperm.slane %v2992, 0
    %v2997 = vsel %vm303, %v2980, 0
    %v3000 = vsel %vm303, %v2981, 0
    %3002 = vmatpush.msra.mxu0 0.0
    %3003 = vmatpush.msra.mxu0 0.0
    %3004 = vmatpush.msra.mxu0 0.0
    %3005 = vmatpush.msra.mxu0 0.0
    %3006 = vmatpush.msra.mxu0 0.0
    %3007 = vmatpush.msra.mxu0 0.0
    %3008 = vmatpush.msra.mxu0 0.0
    %3009 = vmatpush.msra.mxu0 0.0
    %3010 = vmatpush.msra.mxu0 %v2990
    %3011 = vmatpush.msra.mxu0 %v2989
    %3012 = vmatpush.msra.mxu0 %v2988
    %3013 = vmatpush.msra.mxu0 %v2987
    %3014 = vmatpush.msra.mxu0 %v2986
    %3015 = vmatpush.msra.mxu0 %v2985
    %3016 = vmatpush.msra.mxu0 %v2984
    %3017 = vmatpush.msra.mxu0 %v2983
    %3018 = vmatmul.f32.gmra.mxu0 %v2997
    %v3019 = vpop.f32.mrf.mxu0
    %v3020 = vadd.f32 %v2994, %v3019
    %3021 = vmatmul.f32.gmra.mxu0 %v3000
    %v3022 = vpop.f32.mrf.mxu0
    %v3023 = vadd.f32 %v2994, %v3022
    %3024 = vdwg.mxu0
    %v3025 = vadd.f32 %v2321, %v3020
    %v3026 = vadd.f32 %v2322, %v3023
    %s3027 = scalar_lea.vmem %s15, 2
    %v3028 = vld [vmem:[%s3027] sm:$0x1]
    %s3029 = scalar_lea.vmem %s16, 2
    %v3030 = vld [vmem:[%s3029] sm:$0x1]
    %v3031 = vsel %vm303, %v3025, 0.0
    %3032 = vadd.xlane.f32.xlu0 %v3031
    %v3033 = vpop.xlane.xlu0 %3032
    %v3034 = vsel %vm303, %v3026, 0.0
    %3035 = vadd.xlane.f32.xlu0 %v3034
    %v3036 = vpop.xlane.xlu0 %3035
    %v3037 = vmul.f32 %v3033, %v1006
    %v3038 = vmul.f32 %v3036, %v1006
    %v3039 = vsub.f32 %v3025, %v3037
    %v3040 = vsub.f32 %v3026, %v3038
    %v3041 = vmul.f32 %v3039, %v3039
    %v3042 = vmul.f32 %v3040, %v3040
    %v3043 = vsel %vm303, %v3041, 0.0
    %3044 = vadd.xlane.f32.xlu0 %v3043
    %v3045 = vpop.xlane.xlu0 %3044
    %v3046 = vsel %vm303, %v3042, 0.0
    %3047 = vadd.xlane.f32.xlu0 %v3046
    %v3048 = vpop.xlane.xlu0 %3047
    %v3049 = vmul.f32 %v3045, %v1006
    %v3050 = vmul.f32 %v3048, %v1006
    %v3051 = vadd.f32 %v3049, 1e-05
    %v3052 = vadd.f32 %v3050, 1e-05
    %v3053 = vrsqrt.pop %v3051
    %v3054 = vmul.f32 %v3053, %v3051
    %v3055 = vmul.f32 %v3054, %v3053
    %v3056 = vmul.f32 0.5, %v3055
    %v3057 = vsub.f32 1.5, %v3056
    %v3058 = vmul.f32 %v3053, %v3057
    %vm3059 = vweird.f32 %v3051
    %vm3060 = vweird.f32 %v3053
    %vm3061 = vmor %vm3059, %vm3060
    %v3062 = vsel %vm3061, %v3053, %v3058
    %v3063 = vrsqrt.pop %v3052
    %v3064 = vmul.f32 %v3063, %v3052
    %v3065 = vmul.f32 %v3064, %v3063
    %v3066 = vmul.f32 0.5, %v3065
    %v3067 = vsub.f32 1.5, %v3066
    %v3068 = vmul.f32 %v3063, %v3067
    %vm3069 = vweird.f32 %v3052
    %vm3070 = vweird.f32 %v3063
    %vm3071 = vmor %vm3069, %vm3070
    %v3072 = vsel %vm3071, %v3063, %v3068
    %v3073 = vmul.f32 %v3039, %v3062
    %v3074 = vmul.f32 %v3040, %v3072
    %v3076 = vperm.slane %v3028, 0
    %v3078 = vmul.f32 %v3073, %v3076
    %v3079 = vmul.f32 %v3074, %v3076
    %v3081 = vperm.slane %v3030, 0
    %v3083 = vadd.f32 %v3078, %v3081
    %v3084 = vadd.f32 %v3079, %v3081
    %s3085 = scalar_lea.vmem %s11, 256
    %v3086 = vld [vmem:[%s3085] sm:$0xff]
    %v3087 = vld [vmem:[%s3085 + $0x8] sm:$0xff]
    %v3088 = vld [vmem:[%s3085 + $0x10] sm:$0xff]
    %v3089 = vld [vmem:[%s3085 + $0x18] sm:$0xff]
    %v3090 = vld [vmem:[%s3085 + $0x20] sm:$0xff]
    %v3091 = vld [vmem:[%s3085 + $0x28] sm:$0xff]
    %v3092 = vld [vmem:[%s3085 + $0x30] sm:$0xff]
    %v3093 = vld [vmem:[%s3085 + $0x38] sm:$0xff]
    %v3094 = vld [vmem:[%s3085 + $0x40] sm:$0xff]
    %v3095 = vld [vmem:[%s3085 + $0x48] sm:$0xff]
    %v3096 = vld [vmem:[%s3085 + $0x50] sm:$0xff]
    %v3097 = vld [vmem:[%s3085 + $0x58] sm:$0xff]
    %v3098 = vld [vmem:[%s3085 + $0x60] sm:$0xff]
    %v3099 = vld [vmem:[%s3085 + $0x68] sm:$0xff]
    %v3100 = vld [vmem:[%s3085 + $0x70] sm:$0xff]
    %v3101 = vld [vmem:[%s3085 + $0x78] sm:$0xff]
    %s3102 = scalar_lea.vmem [#allocation14], 4
    %v3103 = vld [vmem:[%s3102] sm:$0x3]
    %v3105 = vperm.slane %v3103, 0
    %v3106 = vperm.slane %v3103, 1
    %v3110 = vsel %vm303, %v3083, 0
    %v3113 = vsel %vm303, %v3084, 0
    %3115 = vmatpush.msra.mxu0 0.0
    %3116 = vmatpush.msra.mxu0 0.0
    %3117 = vmatpush.msra.mxu0 0.0
    %3118 = vmatpush.msra.mxu0 0.0
    %3119 = vmatpush.msra.mxu0 0.0
    %3120 = vmatpush.msra.mxu0 0.0
    %3121 = vmatpush.msra.mxu0 0.0
    %3122 = vmatpush.msra.mxu0 0.0
    %3123 = vmatpush.msra.mxu0 %v3100
    %3124 = vmatpush.msra.mxu0 %v3098
    %3125 = vmatpush.msra.mxu0 %v3096
    %3126 = vmatpush.msra.mxu0 %v3094
    %3127 = vmatpush.msra.mxu0 %v3092
    %3128 = vmatpush.msra.mxu0 %v3090
    %3129 = vmatpush.msra.mxu0 %v3088
    %3130 = vmatpush.msra.mxu0 %v3086
    %3131 = vmatmul.f32.gmra.mxu0 %v3110
    %v3132 = vpop.f32.mrf.mxu0
    %v3133 = vadd.f32 %v3105, %v3132
    %3134 = vmatmul.f32.gmra.mxu0 %v3113
    %v3135 = vpop.f32.mrf.mxu0
    %v3136 = vadd.f32 %v3105, %v3135
    %3137 = vdwg.mxu0
    %3138 = vmatpush.msra.mxu0 0.0
    %3139 = vmatpush.msra.mxu0 0.0
    %3140 = vmatpush.msra.mxu0 0.0
    %3141 = vmatpush.msra.mxu0 0.0
    %3142 = vmatpush.msra.mxu0 0.0
    %3143 = vmatpush.msra.mxu0 0.0
    %3144 = vmatpush.msra.mxu0 0.0
    %3145 = vmatpush.msra.mxu0 0.0
    %3146 = vmatpush.msra.mxu0 %v3101
    %3147 = vmatpush.msra.mxu0 %v3099
    %3148 = vmatpush.msra.mxu0 %v3097
    %3149 = vmatpush.msra.mxu0 %v3095
    %3150 = vmatpush.msra.mxu0 %v3093
    %3151 = vmatpush.msra.mxu0 %v3091
    %3152 = vmatpush.msra.mxu0 %v3089
    %3153 = vmatpush.msra.mxu0 %v3087
    %3154 = vmatmul.f32.gmra.mxu0 %v3110
    %v3155 = vpop.f32.mrf.mxu0
    %v3156 = vadd.f32 %v3106, %v3155
    %3157 = vmatmul.f32.gmra.mxu0 %v3113
    %v3158 = vpop.f32.mrf.mxu0
    %v3159 = vadd.f32 %v3106, %v3158
    %3160 = vdwg.mxu0
    %v3161 = vmul.f32 %v3133, 0.5
    %v3162 = vmul.f32 %v3156, 0.5
    %v3163 = vmul.f32 %v3136, 0.5
    %v3164 = vmul.f32 %v3159, 0.5
    %v3165 = vmul.f32 %v3133, 0.044715
    %v3166 = vmul.f32 %v3156, 0.044715
    %v3167 = vmul.f32 %v3136, 0.044715
    %v3168 = vmul.f32 %v3159, 0.044715
    %v3169 = vmul.f32 %v3165, %v3133
    %v3170 = vmul.f32 %v3166, %v3156
    %v3171 = vmul.f32 %v3167, %v3136
    %v3172 = vmul.f32 %v3168, %v3159
    %v3173 = vmul.f32 %v3169, %v3133
    %v3174 = vmul.f32 %v3170, %v3156
    %v3175 = vmul.f32 %v3171, %v3136
    %v3176 = vmul.f32 %v3172, %v3159
    %v3177 = vadd.f32 %v3133, %v3173
    %v3178 = vadd.f32 %v3156, %v3174
    %v3179 = vadd.f32 %v3136, %v3175
    %v3180 = vadd.f32 %v3159, %v3176
    %v3181 = vmul.f32 %v3177, 0.7978846
    %v3182 = vmul.f32 %v3178, 0.7978846
    %v3183 = vmul.f32 %v3179, 0.7978846
    %v3184 = vmul.f32 %v3180, 0.7978846
    %v3185 = vtanh.pop %v3181
    %v3186 = vtanh.pop %v3182
    %v3187 = vtanh.pop %v3183
    %v3188 = vtanh.pop %v3184
    %v3189 = vadd.f32 %v3185, 1.0
    %v3190 = vadd.f32 %v3186, 1.0
    %v3191 = vadd.f32 %v3187, 1.0
    %v3192 = vadd.f32 %v3188, 1.0
    %v3193 = vmul.f32 %v3161, %v3189
    %v3194 = vmul.f32 %v3162, %v3190
    %v3195 = vmul.f32 %v3163, %v3191
    %v3196 = vmul.f32 %v3164, %v3192
    %s3197 = scalar_lea.vmem %s13, 512
    %v3198 = vld [vmem:[%s3197] sm:$0xff]
    %v3199 = vld [vmem:[%s3197 + $0x8] sm:$0xff]
    %v3200 = vld [vmem:[%s3197 + $0x10] sm:$0xff]
    %v3201 = vld [vmem:[%s3197 + $0x18] sm:$0xff]
    %v3202 = vld [vmem:[%s3197 + $0x20] sm:$0xff]
    %v3203 = vld [vmem:[%s3197 + $0x28] sm:$0xff]
    %v3204 = vld [vmem:[%s3197 + $0x30] sm:$0xff]
    %v3205 = vld [vmem:[%s3197 + $0x38] sm:$0xff]
    %v3206 = vld [vmem:[%s3197 + $0x40] sm:$0xff]
    %v3207 = vld [vmem:[%s3197 + $0x48] sm:$0xff]
    %v3208 = vld [vmem:[%s3197 + $0x50] sm:$0xff]
    %v3209 = vld [vmem:[%s3197 + $0x58] sm:$0xff]
    %v3210 = vld [vmem:[%s3197 + $0x60] sm:$0xff]
    %v3211 = vld [vmem:[%s3197 + $0x68] sm:$0xff]
    %v3212 = vld [vmem:[%s3197 + $0x70] sm:$0xff]
    %v3213 = vld [vmem:[%s3197 + $0x78] sm:$0xff]
    %v3214 = vld [vmem:[%s3197 + $0x80] sm:$0xff]
    %v3215 = vld [vmem:[%s3197 + $0x88] sm:$0xff]
    %v3216 = vld [vmem:[%s3197 + $0x90] sm:$0xff]
    %v3217 = vld [vmem:[%s3197 + $0x98] sm:$0xff]
    %v3218 = vld [vmem:[%s3197 + $0xa0] sm:$0xff]
    %v3219 = vld [vmem:[%s3197 + $0xa8] sm:$0xff]
    %v3220 = vld [vmem:[%s3197 + $0xb0] sm:$0xff]
    %v3221 = vld [vmem:[%s3197 + $0xb8] sm:$0xff]
    %v3222 = vld [vmem:[%s3197 + $0xc0] sm:$0xff]
    %v3223 = vld [vmem:[%s3197 + $0xc8] sm:$0xff]
    %v3224 = vld [vmem:[%s3197 + $0xd0] sm:$0xff]
    %v3225 = vld [vmem:[%s3197 + $0xd8] sm:$0xff]
    %v3226 = vld [vmem:[%s3197 + $0xe0] sm:$0xff]
    %v3227 = vld [vmem:[%s3197 + $0xe8] sm:$0xff]
    %v3228 = vld [vmem:[%s3197 + $0xf0] sm:$0xff]
    %v3229 = vld [vmem:[%s3197 + $0xf8] sm:$0xff]
    %s3230 = scalar_lea.vmem %s14, 2
    %v3231 = vld [vmem:[%s3230] sm:$0x1]
    %v3233 = vperm.slane %v3231, 0
    %3235 = vmatpush.msra.mxu0 %v3213
    %3236 = vmatpush.msra.mxu0 %v3212
    %3237 = vmatpush.msra.mxu0 %v3211
    %3238 = vmatpush.msra.mxu0 %v3210
    %3239 = vmatpush.msra.mxu0 %v3209
    %3240 = vmatpush.msra.mxu0 %v3208
    %3241 = vmatpush.msra.mxu0 %v3207
    %3242 = vmatpush.msra.mxu0 %v3206
    %3243 = vmatpush.msra.mxu0 %v3205
    %3244 = vmatpush.msra.mxu0 %v3204
    %3245 = vmatpush.msra.mxu0 %v3203
    %3246 = vmatpush.msra.mxu0 %v3202
    %3247 = vmatpush.msra.mxu0 %v3201
    %3248 = vmatpush.msra.mxu0 %v3200
    %3249 = vmatpush.msra.mxu0 %v3199
    %3250 = vmatpush.msra.mxu0 %v3198
    %3251 = vmatmul.f32.gmra.mxu0 %v3193
    %v3252 = vpop.f32.mrf.mxu0
    %v3253 = vadd.f32 %v3233, %v3252
    %3254 = vmatmul.f32.gmra.mxu0 %v3195
    %v3255 = vpop.f32.mrf.mxu0
    %v3256 = vadd.f32 %v3233, %v3255
    %3257 = vdwg.mxu0
    %3258 = vmatpush.msra.mxu0 %v3229
    %3259 = vmatpush.msra.mxu0 %v3228
    %3260 = vmatpush.msra.mxu0 %v3227
    %3261 = vmatpush.msra.mxu0 %v3226
    %3262 = vmatpush.msra.mxu0 %v3225
    %3263 = vmatpush.msra.mxu0 %v3224
    %3264 = vmatpush.msra.mxu0 %v3223
    %3265 = vmatpush.msra.mxu0 %v3222
    %3266 = vmatpush.msra.mxu0 %v3221
    %3267 = vmatpush.msra.mxu0 %v3220
    %3268 = vmatpush.msra.mxu0 %v3219
    %3269 = vmatpush.msra.mxu0 %v3218
    %3270 = vmatpush.msra.mxu0 %v3217
    %3271 = vmatpush.msra.mxu0 %v3216
    %3272 = vmatpush.msra.mxu0 %v3215
    %3273 = vmatpush.msra.mxu0 %v3214
    %3274 = vmatmul.f32.gmra.mxu0 %v3194
    %v3275 = vpop.f32.mrf.mxu0
    %v3276 = vadd.f32 %v3253, %v3275
    %3277 = vmatmul.f32.gmra.mxu0 %v3196
    %v3278 = vpop.f32.mrf.mxu0
    %v3279 = vadd.f32 %v3256, %v3278
    %3280 = vdwg.mxu0
    %v3281 = vadd.f32 %v3083, %v3276
    %v3282 = vadd.f32 %v3084, %v3279
    %s3283 = scalar_lea.vmem %s17, 2
    %v3284 = vld [vmem:[%s3283] sm:$0x1]
    %s3285 = scalar_lea.vmem [#allocation16], 2
    %v3286 = vld [vmem:[%s3285] sm:$0x1]
    %v3287 = vsel %vm303, %v3281, 0.0
    %3288 = vadd.xlane.f32.xlu0 %v3287
    %v3289 = vpop.xlane.xlu0 %3288
    %v3290 = vsel %vm303, %v3282, 0.0
    %3291 = vadd.xlane.f32.xlu0 %v3290
    %v3292 = vpop.xlane.xlu0 %3291
    %v3293 = vmul.f32 %v3289, %v1006
    %v3294 = vmul.f32 %v3292, %v1006
    %v3295 = vsub.f32 %v3281, %v3293
    %v3296 = vsub.f32 %v3282, %v3294
    %v3297 = vmul.f32 %v3295, %v3295
    %v3298 = vmul.f32 %v3296, %v3296
    %v3299 = vsel %vm303, %v3297, 0.0
    %3300 = vadd.xlane.f32.xlu0 %v3299
    %v3301 = vpop.xlane.xlu0 %3300
    %v3302 = vsel %vm303, %v3298, 0.0
    %3303 = vadd.xlane.f32.xlu0 %v3302
    %v3304 = vpop.xlane.xlu0 %3303
    %v3305 = vmul.f32 %v3301, %v1006
    %v3306 = vmul.f32 %v3304, %v1006
    %v3307 = vadd.f32 %v3305, 1e-05
    %v3308 = vadd.f32 %v3306, 1e-05
    %v3309 = vrsqrt.pop %v3307
    %v3310 = vmul.f32 %v3309, %v3307
    %v3311 = vmul.f32 %v3310, %v3309
    %v3312 = vmul.f32 0.5, %v3311
    %v3313 = vsub.f32 1.5, %v3312
    %v3314 = vmul.f32 %v3309, %v3313
    %vm3315 = vweird.f32 %v3307
    %vm3316 = vweird.f32 %v3309
    %vm3317 = vmor %vm3315, %vm3316
    %v3318 = vsel %vm3317, %v3309, %v3314
    %v3319 = vrsqrt.pop %v3308
    %v3320 = vmul.f32 %v3319, %v3308
    %v3321 = vmul.f32 %v3320, %v3319
    %v3322 = vmul.f32 0.5, %v3321
    %v3323 = vsub.f32 1.5, %v3322
    %v3324 = vmul.f32 %v3319, %v3323
    %vm3325 = vweird.f32 %v3308
    %vm3326 = vweird.f32 %v3319
    %vm3327 = vmor %vm3325, %vm3326
    %v3328 = vsel %vm3327, %v3319, %v3324
    %v3329 = vmul.f32 %v3295, %v3318
    %v3330 = vmul.f32 %v3296, %v3328
    %v3332 = vperm.slane %v3284, 0
    %v3334 = vmul.f32 %v3329, %v3332
    %v3335 = vmul.f32 %v3330, %v3332
    %v3337 = vperm.slane %v3286, 0
    %v3339 = vadd.f32 %v3334, %v3337
    %v3340 = vadd.f32 %v3335, %v3337
    %v3341 = vld [vmem:[#allocation17] sm:$0xff]
    %v3342 = vld [vmem:[#allocation17 + $0x8] sm:$0xff]
    %v3343 = vld [vmem:[#allocation17 + $0x10] sm:$0xff]
    %v3344 = vld [vmem:[#allocation17 + $0x18] sm:$0xff]
    %v3345 = vld [vmem:[#allocation17 + $0x20] sm:$0xff]
    %v3346 = vld [vmem:[#allocation17 + $0x28] sm:$0xff]
    %v3347 = vld [vmem:[#allocation17 + $0x30] sm:$0xff]
    %v3348 = vld [vmem:[#allocation17 + $0x38] sm:$0xff]
    %v3349 = vld [vmem:[#allocation19] sm:$0x1]
    %v3351 = vperm.slane %v3349, 0
    %v3355 = vrot.slane %v3339, 7
    %v3356 = vrot.slane %v3340, 6
    %vm3357 = vcmask 1041409
    %v3358 = vsel %vm3357, %v3356, %v3355
    %v3359 = vsel %vm303, %v3358, 0
    %3361 = vmatpush.msra.mxu0 0.0
    %3362 = vmatpush.msra.mxu0 0.0
    %3363 = vmatpush.msra.mxu0 0.0
    %3364 = vmatpush.msra.mxu0 0.0
    %3365 = vmatpush.msra.mxu0 0.0
    %3366 = vmatpush.msra.mxu0 0.0
    %3367 = vmatpush.msra.mxu0 0.0
    %3368 = vmatpush.msra.mxu0 0.0
    %3369 = vmatpush.msra.mxu0 %v3348
    %3370 = vmatpush.msra.mxu0 %v3347
    %3371 = vmatpush.msra.mxu0 %v3346
    %3372 = vmatpush.msra.mxu0 %v3345
    %3373 = vmatpush.msra.mxu0 %v3344
    %3374 = vmatpush.msra.mxu0 %v3343
    %3375 = vmatpush.msra.mxu0 %v3342
    %3376 = vmatpush.msra.mxu0 %v3341
    %3377 = vmatmul.f32.gmra.mxu0 %v3359
    %v3378 = vpop.f32.mrf.mxu0
    %v3379 = vadd.f32 %v3351, %v3378
    %3380 = vdwg.mxu0
    %v3381 = vmax.f32 %v3379, 0.0
    %v3382 = vld [vmem:[#allocation20] sm:$0xff]
    %v3383 = vld [vmem:[#allocation20 + $0x8] sm:$0xff]
    %v3384 = vld [vmem:[#allocation20 + $0x10] sm:$0xff]
    %v3385 = vld [vmem:[#allocation20 + $0x18] sm:$0xff]
    %v3386 = vld [vmem:[#allocation20 + $0x20] sm:$0xff]
    %v3387 = vld [vmem:[#allocation20 + $0x28] sm:$0xff]
    %v3388 = vld [vmem:[#allocation20 + $0x30] sm:$0xff]
    %v3389 = vld [vmem:[#allocation20 + $0x38] sm:$0xff]
    %v3390 = vld [vmem:[#allocation22] sm:$0x1]
    %v3392 = vperm.slane %v3390, 0
    %v3395 = vsel %vm303, %v3381, 0
    %3397 = vmatpush.msra.mxu0 0.0
    %3398 = vmatpush.msra.mxu0 0.0
    %3399 = vmatpush.msra.mxu0 0.0
    %3400 = vmatpush.msra.mxu0 0.0
    %3401 = vmatpush.msra.mxu0 0.0
    %3402 = vmatpush.msra.mxu0 0.0
    %3403 = vmatpush.msra.mxu0 0.0
    %3404 = vmatpush.msra.mxu0 0.0
    %3405 = vmatpush.msra.mxu0 %v3389
    %3406 = vmatpush.msra.mxu0 %v3388
    %3407 = vmatpush.msra.mxu0 %v3387
    %3408 = vmatpush.msra.mxu0 %v3386
    %3409 = vmatpush.msra.mxu0 %v3385
    %3410 = vmatpush.msra.mxu0 %v3384
    %3411 = vmatpush.msra.mxu0 %v3383
    %3412 = vmatpush.msra.mxu0 %v3382
    %3413 = vmatmul.f32.gmra.mxu0 %v3395
    %v3414 = vpop.f32.mrf.mxu0
    %v3415 = vadd.f32 %v3392, %v3414
    %3416 = vdwg.mxu0
    %3417 = vst [vmem:[#allocation23] sm:$0x3] %v3415
    // Predicated region
    $region146: #{tpu_custom_call.1} parent=1 // pred_check
      _
    $region147: #{tpu_custom_call.1} parent=1 // pred_check_branch
      %3419 = sbr.rel (0) target = $region149
    $region148: #{tpu_custom_call.1} parent=1 // pred_region
      %3421 = vsyncadd [#allocation4], 0
      %s3423 = sshll.u32 [#allocation23], 4
      %s3424 = int_to_ptr.vmem [resolvable:$true] %s3423
      %s3425 = sshll.u32 %s23, 4
      %s3426 = int_to_ptr.hbm [resolvable:$true] %s3425
      %3428 = dma.vmem_to_hbm [thread:$0]  %s3424, 32, %s3426, [#allocation4]
    $region149: #{tpu_custom_call.1} parent=1 // pred_fallthru
      _
    // Predicated region
    $region150: #{tpu_custom_call.1} parent=1 // pred_check
      _
    $region151: #{tpu_custom_call.1} parent=1 // pred_check_branch
      %3430 = sbr.rel (0) target = $region153
    $region152: #{tpu_custom_call.1} parent=1 // pred_region
      %3432 = dma.done [#allocation4], 32
    $region153: #{tpu_custom_call.1} parent=1 // pred_fallthru
      _
    %3433 = vsyncpa [#allocation3], 1
    %3434 = vsyncpa [#allocation6], 1
    %3435 = vsyncpa [#allocation9], 1
    %3436 = vsyncpa [#allocation12], 1
    %3437 = vsyncpa [#allocation15], 1
    %3438 = vsyncpa [#allocation18], 1
    %3439 = vsyncpa [#allocation21], 1
    %3440 = vsyncpa [#allocation4], 1

</llo_original>
